<compile_context>
chip_gen: v5e
topology: v5e:2x2
jax: 0.10.0
libtpu: 0.0.40
codegen_flags: <defaults>
</compile_context>

<pallas_src>
import functools

import jax
import jax.numpy as jnp
from jax.experimental import pallas as pl
from jax.experimental.pallas import tpu as pltpu


# ----------------------------- fused Pallas kernel -------------------------- #

def _bottleneck_kernel(x_ref, w1_ref, w2_ref, w3_ref, b1_ref, b2_ref, b3_ref,
                       o_ref, y1_scr, col_scr, *, W, TH, R):
    """One (image, row-tile) grid step of the fused bottleneck.

    x_ref   : (H*W, Cin)        f32   full image (residual + conv1 input)
    w1_ref  : (Cin, C)          bf16  BN1-folded 1x1 weights
    w2_ref  : (9*C, C)          bf16  BN2-folded 3x3 weights, row = (kh*3+kw)*C + cin
    w3_ref  : (C, Cout)         bf16  BN3-folded 1x1 weights
    b*_ref  : (1, C)/(1, Cout)  f32   folded BN biases
    o_ref   : (TH*W, Cout)      f32   output row tile
    y1_scr  : (TH+2, W+2, C)    bf16  conv1 output for this tile + zero halo
    col_scr : (TH*W, 9*C)       bf16  im2col LHS for the single conv2 matmul
    """
    C = w1_ref.shape[1]
    bf16 = jnp.bfloat16
    r = pl.program_id(1)
    base = r * TH                                     # first image row of tile
    row0 = pl.multiple_of(base * W, TH * W)           # flattened tile start

    # ---- conv1 (1x1) + folded bn1 + relu into the haloed scratch ----------- #
    # Left/right zero-padding columns (never written by anything else).
    zcol = jnp.zeros((TH + 2, 1, C), bf16)
    y1_scr[:, 0:1, :] = zcol
    y1_scr[:, W + 1:W + 2, :] = zcol

    # Main TH rows of this tile (cast f32 -> bf16 in-kernel for the MXU).
    xt = x_ref[pl.ds(row0, TH * W), :].astype(bf16)
    y1 = jnp.dot(xt, w1_ref[...], preferred_element_type=jnp.float32)
    y1 = jnp.maximum(y1 + b1_ref[...], 0.0).astype(bf16)
    y1_scr[1:TH + 1, 1:W + 1, :] = y1.reshape(TH, W, C)

    # Top / bottom halo rows: conv1 of the neighboring image row (recomputed),
    # or zeros at the image border.  With R == 1 both halos are static zeros.
    zrow = jnp.zeros((1, W, C), bf16)
    if R == 1:
        y1_scr[0:1, 1:W + 1, :] = zrow
        y1_scr[TH + 1:TH + 2, 1:W + 1, :] = zrow
    else:
        def _halo_row(row_idx):
            xh = x_ref[pl.ds(row_idx * W, W), :].astype(bf16)
            yh = jnp.dot(xh, w1_ref[...], preferred_element_type=jnp.float32)
            return jnp.maximum(yh + b1_ref[...], 0.0).astype(bf16).reshape(1, W, C)

        @pl.when(r == 0)
        def _():
            y1_scr[0:1, 1:W + 1, :] = zrow

        @pl.when(r > 0)
        def _():
            y1_scr[0:1, 1:W + 1, :] = _halo_row(base - 1)

        @pl.when(r == R - 1)
        def _():
            y1_scr[TH + 1:TH + 2, 1:W + 1, :] = zrow

        @pl.when(r < R - 1)
        def _():
            y1_scr[TH + 1:TH + 2, 1:W + 1, :] = _halo_row(base + TH)

    # ---- conv2 (3x3, pad=1) + folded bn2 + relu: single K=9*C matmul -------- #
    # Build the im2col LHS once per tile; the nine taps become one deep dot that
    # accumulates in vregs (no VMEM accumulator round-trips).
    for kh in range(3):
        rows = y1_scr[kh:kh + TH]                           # (TH, W+2, C), static slice
        for kw in range(3):
            t = kh * 3 + kw
            col_scr[:, t * C:(t + 1) * C] = rows[:, kw:kw + W, :].reshape(TH * W, C)
    y2 = jnp.dot(col_scr[...], w2_ref[...], preferred_element_type=jnp.float32)
    y2 = jnp.maximum(y2 + b2_ref[...], 0.0).astype(bf16)

    # ---- conv3 (1x1) + folded bn3 + identity residual + relu ---------------- #
    y3 = jnp.dot(y2, w3_ref[...], preferred_element_type=jnp.float32) + b3_ref[...]
    res = x_ref[pl.ds(row0, TH * W), :]                     # exact f32 residual
    o_ref[...] = jnp.maximum(y3 + res, 0.0).astype(o_ref.dtype)


# ------------------------------ Pallas wrapper ------------------------------ #

def _estimate_vmem_bytes(H, W, Cin, C, Cout, TH):
    f32, bf16 = 4, 2
    x_block = H * W * Cin * f32 * 2                # full-image input, double-buffered
    o_block = TH * W * Cout * f32 * 2              # output tile, double-buffered
    weights = (Cin * C + 9 * C * C + C * Cout) * bf16 * 2
    biases = (2 * C + Cout) * f32 * 2
    scratch = (TH + 2) * (W + 2) * C * bf16 + TH * W * 9 * C * bf16
    return x_block + o_block + weights + biases + scratch


def _pick_tile_h(H, W, Cin, C, Cout, budget_bytes=40 << 20):
    # Largest divisor of H whose per-step working set fits the VMEM budget;
    # for small images this is H itself (one step per image).
    for th in range(H, 0, -1):
        if H % th == 0 and _estimate_vmem_bytes(H, W, Cin, C, Cout, th) <= budget_bytes:
            return th
    return 1


def bottleneck_block(x_nhwc, folded, *, tile_h=None):
    """x_nhwc: (N, H, W, Cin) f32 -> (N, H, W, Cout) f32, Cin == Cout."""
    N, H, W, Cin = x_nhwc.shape
    C = folded["w1"].shape[1]
    Cout = folded["w3"].shape[1]
    assert Cin == Cout, "identity residual requires inplanes == planes * expansion"

    if tile_h is None:
        tile_h = _pick_tile_h(H, W, Cin, C, Cout)
    assert H % tile_h == 0, "tile_h must divide H"
    R = H // tile_h

    # Per-shape VMEM budget (v7x has only 64 MiB physical VMEM).
    est = _estimate_vmem_bytes(H, W, Cin, C, Cout, tile_h)
    vmem_limit = int(min(max(2 * est + (8 << 20), 16 << 20), 64 << 20))

    xf = x_nhwc.reshape(N, H * W, Cin)                 # f32; cast to bf16 in-kernel
    w1 = folded["w1"]                                  # (Cin, C)   bf16, BN-folded
    w2 = folded["w2"].reshape(9 * C, C)                # (9C, C)    bf16, BN-folded
    w3 = folded["w3"]                                  # (C, Cout)  bf16, BN-folded
    b1, b2, b3 = folded["b1"], folded["b2"], folded["b3"]

    def const2d(shape):
        # Same block every grid step -> DMA'd once, stays resident in VMEM.
        return pl.BlockSpec(shape, lambda n, r: (0, 0))

    out = pl.pallas_call(
        functools.partial(_bottleneck_kernel, W=W, TH=tile_h, R=R),
        out_shape=jax.ShapeDtypeStruct((N, H * W, Cout), jnp.float32),
        grid=(N, R),
        in_specs=[
            pl.BlockSpec((None, H * W, Cin), lambda n, r: (n, 0, 0)),    # x (full image)
            const2d((Cin, C)),                                            # w1
            const2d((9 * C, C)),                                          # w2 (im2col layout)
            const2d((C, Cout)),                                           # w3
            const2d((1, C)), const2d((1, C)), const2d((1, Cout)),         # b1, b2, b3
        ],
        out_specs=pl.BlockSpec((None, tile_h * W, Cout), lambda n, r: (n, r, 0)),
        scratch_shapes=[
            pltpu.VMEM((tile_h + 2, W + 2, C), jnp.bfloat16),   # conv1 tile + zero halo
            pltpu.VMEM((tile_h * W, 9 * C), jnp.bfloat16),      # im2col LHS
        ],
        compiler_params=pltpu.CompilerParams(
            # Per-tile conv1 removed all cross-step state -> both axes parallel.
            dimension_semantics=("parallel", "parallel"),
            vmem_limit_bytes=vmem_limit,
        ),
    )(xf, w1, w2, w3, b1, b2, b3)
    return out.reshape(N, H, W, Cout)


# ------------------------------ BasicBlock glue ----------------------------- #

def fold_bn(gamma, beta, mean, var, eps=1e-5):
    scale = gamma / jnp.sqrt(var + eps)
    bias = beta - mean * scale
    return scale, bias


def init_params(key, inplanes, planes, expansion=4):
    cout = planes * expansion
    ks = jax.random.split(key, 6)

    def bn_params(k, c):
        k0, k1, k2, k3 = jax.random.split(k, 4)
        gamma = 1.0 + 0.1 * jax.random.normal(k0, (c,), jnp.float32)
        beta = 0.1 * jax.random.normal(k1, (c,), jnp.float32)
        mean = 0.1 * jax.random.normal(k2, (c,), jnp.float32)
        var = jnp.abs(1.0 + 0.1 * jax.random.normal(k3, (c,), jnp.float32))
        return fold_bn(gamma, beta, mean, var)

    # Conv weights created in PyTorch layout (Cout, Cin, kh, kw), then converted.
    w1_t = 0.1 * jax.random.normal(ks[0], (planes, inplanes, 1, 1), jnp.float32)
    w2_t = 0.1 * jax.random.normal(ks[1], (planes, planes, 3, 3), jnp.float32)
    w3_t = 0.1 * jax.random.normal(ks[2], (cout, planes, 1, 1), jnp.float32)

    s1, b1 = bn_params(ks[3], planes)
    s2, b2 = bn_params(ks[4], planes)
    s3, b3 = bn_params(ks[5], cout)

    return {
        "w1": jnp.transpose(w1_t[:, :, 0, 0], (1, 0)),    # (Cin, C)
        "w2": jnp.transpose(w2_t, (2, 3, 1, 0)),          # (kh, kw, Cin, Cout) = HWIO
        "w3": jnp.transpose(w3_t[:, :, 0, 0], (1, 0)),    # (C, Cout)
        "s1": s1, "b1": b1, "s2": s2, "b2": b2, "s3": s3, "b3": b3,
    }


def fold_params(params):
    """Fold BN scales into bf16 conv weights; keep f32 biases (conv->BN is affine)."""
    bf16 = jnp.bfloat16
    C = params["w1"].shape[1]
    Cout = params["w3"].shape[1]
    return {
        "w1": (params["w1"] * params["s1"][None, :]).astype(bf16),
        "w2": (params["w2"] * params["s2"][None, None, None, :]).astype(bf16),
        "w3": (params["w3"] * params["s3"][None, :]).astype(bf16),
        "b1": params["b1"].reshape(1, C).astype(jnp.float32),
        "b2": params["b2"].reshape(1, C).astype(jnp.float32),
        "b3": params["b3"].reshape(1, Cout).astype(jnp.float32),
    }


@jax.jit
def basic_block_forward(x_nchw, folded):
    # PyTorch NCHW at the module boundary; NHWC (channels-last) inside.
    # TODO(synk): in a full network keep activations NHWC end-to-end and drop these transposes.
    x = jnp.transpose(x_nchw, (0, 2, 3, 1))
    out = bottleneck_block(x, folded)
    return jnp.transpose(out, (0, 3, 1, 2))


@jax.jit
def reference_forward(x_nchw, folded):
    # Pure-JAX reference using the SAME folded bf16 weights / f32-accumulate pipeline.
    x = jnp.transpose(x_nchw, (0, 2, 3, 1))               # NHWC f32
    dn = ("NHWC", "HWIO", "NHWC")

    def conv(inp, w):
        return jax.lax.conv_general_dilated(
            inp, w, window_strides=(1, 1), padding="SAME",
            dimension_numbers=dn, preferred_element_type=jnp.float32)

    xb = x.astype(jnp.bfloat16)
    y1 = jnp.maximum(conv(xb, folded["w1"][None, None]) + folded["b1"], 0.0)
    y1 = y1.astype(jnp.bfloat16)
    y2 = jnp.maximum(conv(y1, folded["w2"]) + folded["b2"], 0.0)
    y2 = y2.astype(jnp.bfloat16)
    y3 = conv(y2, folded["w3"][None, None]) + folded["b3"]
    out = jnp.maximum(y3 + x, 0.0)                        # exact f32 residual
    return jnp.transpose(out, (0, 3, 1, 2))


if __name__ == "__main__":
    # Identity residual path: inplanes == planes * expansion (downsample=None,
    # gcb_config=None).  Lane-dense channels (Cin = Cout = 128).
    N, planes, H, W = 2, 32, 16, 16
    inplanes = planes * 4

    key = jax.random.PRNGKey(0)
    kx, kp = jax.random.split(key)
    x = jax.random.normal(kx, (N, inplanes, H, W), jnp.float32)
    params = init_params(kp, inplanes, planes)
    folded = fold_params(params)

    out = jax.block_until_ready(basic_block_forward(x, folded))
    assert out.shape == (N, planes * 4, H, W)

    ref = jax.block_until_ready(reference_forward(x, folded))
    max_err = float(jnp.max(jnp.abs(out - ref)))
    assert jnp.allclose(out, ref, atol=2e-2, rtol=2e-2), (
        f"mismatch vs reference (max err {max_err})")

    print("KERNEL_OK")
</pallas_src>

<mosaic_0001>
module attributes {stable_mosaic.version = 11 : i64} {
  func.func @_bottleneck_kernel(%arg0: i32, %arg1: i32, %arg2: memref<1x256x128xf32, #tpu.memory_space<vmem>>, %arg3: memref<128x32xbf16, #tpu.memory_space<vmem>>, %arg4: memref<288x32xbf16, #tpu.memory_space<vmem>>, %arg5: memref<32x128xbf16, #tpu.memory_space<vmem>>, %arg6: memref<1x32xf32, #tpu.memory_space<vmem>>, %arg7: memref<1x32xf32, #tpu.memory_space<vmem>>, %arg8: memref<1x128xf32, #tpu.memory_space<vmem>>, %arg9: memref<1x256x128xf32, #tpu.memory_space<vmem>>, %arg10: memref<18x18x32xbf16, #tpu.memory_space<vmem>>, %arg11: memref<256x288xbf16, #tpu.memory_space<vmem>>) attributes {dimension_semantics = [#tpu.dimension_semantics<parallel>, #tpu.dimension_semantics<parallel>], iteration_bounds = array<i64: 2, 1>, scalar_prefetch = 0 : i64, scratch_operands = 2 : i64, tpu.core_type = #tpu.core_type<tc>, window_params = [{transform_indices = @transform_0, window_bounds = array<i64: 1, 256, 128>}, {pipeline_mode = #tpu.pipeline_mode<synchronous>, transform_indices = @transform_1, window_bounds = array<i64: 128, 32>}, {pipeline_mode = #tpu.pipeline_mode<synchronous>, transform_indices = @transform_2, window_bounds = array<i64: 288, 32>}, {pipeline_mode = #tpu.pipeline_mode<synchronous>, transform_indices = @transform_3, window_bounds = array<i64: 32, 128>}, {pipeline_mode = #tpu.pipeline_mode<synchronous>, transform_indices = @transform_4, window_bounds = array<i64: 1, 32>}, {pipeline_mode = #tpu.pipeline_mode<synchronous>, transform_indices = @transform_5, window_bounds = array<i64: 1, 32>}, {pipeline_mode = #tpu.pipeline_mode<synchronous>, transform_indices = @transform_6, window_bounds = array<i64: 1, 128>}, {transform_indices = @transform_7, window_bounds = array<i64: 1, 256, 128>}]} {
    %c16_i32 = arith.constant 16 : i32
    %0 = arith.muli %arg1, %c16_i32 : i32
    %c16_i32_0 = arith.constant 16 : i32
    %1 = arith.muli %0, %c16_i32_0 : i32
    %2 = tpu.assume_multiple %1, 256 : i32
    %cst = arith.constant 0.000000e+00 : bf16
    %3 = vector.broadcast %cst : bf16 to vector<18x1x32xbf16>
    %c0 = arith.constant 0 : index
    %c0_1 = arith.constant 0 : index
    %c0_2 = arith.constant 0 : index
    %4 = vector.load %arg10[%c0, %c0_1, %c0_2] : memref<18x18x32xbf16, #tpu.memory_space<vmem>>, vector<18x1x32xbf16>
    tpu.vector_store %arg10[%c0, %c0_1, %c0_2], %3 {strides = array<i32>} : memref<18x18x32xbf16, #tpu.memory_space<vmem>>, vector<18x1x32xbf16>,
    %c0_3 = arith.constant 0 : index
    %c17 = arith.constant 17 : index
    %c0_4 = arith.constant 0 : index
    %5 = vector.load %arg10[%c0_3, %c17, %c0_4] : memref<18x18x32xbf16, #tpu.memory_space<vmem>>, vector<18x1x32xbf16>
    tpu.vector_store %arg10[%c0_3, %c17, %c0_4], %3 {strides = array<i32>} : memref<18x18x32xbf16, #tpu.memory_space<vmem>>, vector<18x1x32xbf16>,
    %c0_5 = arith.constant 0 : index
    %6 = arith.index_cast %2 : i32 to index
    %c0_6 = arith.constant 0 : index
    %7 = vector.load %arg2[%c0_5, %6, %c0_6] : memref<1x256x128xf32, #tpu.memory_space<vmem>>, vector<1x256x128xf32>
    %8 = vector.shape_cast %7 : vector<1x256x128xf32> to vector<256x128xf32>
    %9 = arith.truncf %8 : vector<256x128xf32> to vector<256x128xbf16>
    %c0_7 = arith.constant 0 : index
    %c0_8 = arith.constant 0 : index
    %10 = vector.load %arg3[%c0_7, %c0_8] : memref<128x32xbf16, #tpu.memory_space<vmem>>, vector<128x32xbf16>
    %cst_9 = arith.constant dense<0.000000e+00> : vector<256x32xf32>
    %11 = tpu.matmul %9, %10, %cst_9 {dimension_numbers = #tpu.dot_dimension_numbers<[1], [0], [0], [1], [0, 0, 1, 1], [], []>} : vector<256x128xbf16>, vector<128x32xbf16>, vector<256x32xf32> -> vector<256x32xf32>
    %c0_10 = arith.constant 0 : index
    %c0_11 = arith.constant 0 : index
    %12 = vector.load %arg6[%c0_10, %c0_11] : memref<1x32xf32, #tpu.memory_space<vmem>>, vector<1x32xf32>
    %13 = vector.broadcast %12 : vector<1x32xf32> to vector<256x32xf32>
    %14 = arith.addf %11, %13 : vector<256x32xf32>
    %cst_12 = arith.constant 0.000000e+00 : f32
    %15 = vector.broadcast %cst_12 : f32 to vector<256x32xf32>
    %16 = arith.maximumf %14, %15 : vector<256x32xf32>
    %17 = arith.truncf %16 : vector<256x32xf32> to vector<256x32xbf16>
    %18 = vector.shape_cast %17 : vector<256x32xbf16> to vector<16x16x32xbf16>
    %c1 = arith.constant 1 : index
    %c1_13 = arith.constant 1 : index
    %c0_14 = arith.constant 0 : index
    %19 = vector.load %arg10[%c1, %c1_13, %c0_14] : memref<18x18x32xbf16, #tpu.memory_space<vmem>>, vector<16x16x32xbf16>
    tpu.vector_store %arg10[%c1, %c1_13, %c0_14], %18 {strides = array<i32>} : memref<18x18x32xbf16, #tpu.memory_space<vmem>>, vector<16x16x32xbf16>,
    %cst_15 = arith.constant 0.000000e+00 : bf16
    %20 = vector.broadcast %cst_15 : bf16 to vector<1x16x32xbf16>
    %c0_16 = arith.constant 0 : index
    %c1_17 = arith.constant 1 : index
    %c0_18 = arith.constant 0 : index
    %21 = vector.load %arg10[%c0_16, %c1_17, %c0_18] : memref<18x18x32xbf16, #tpu.memory_space<vmem>>, vector<1x16x32xbf16>
    tpu.vector_store %arg10[%c0_16, %c1_17, %c0_18], %20 {strides = array<i32>} : memref<18x18x32xbf16, #tpu.memory_space<vmem>>, vector<1x16x32xbf16>,
    %c17_19 = arith.constant 17 : index
    %c1_20 = arith.constant 1 : index
    %c0_21 = arith.constant 0 : index
    %22 = vector.load %arg10[%c17_19, %c1_20, %c0_21] : memref<18x18x32xbf16, #tpu.memory_space<vmem>>, vector<1x16x32xbf16>
    tpu.vector_store %arg10[%c17_19, %c1_20, %c0_21], %20 {strides = array<i32>} : memref<18x18x32xbf16, #tpu.memory_space<vmem>>, vector<1x16x32xbf16>,
    %c0_22 = arith.constant 0 : index
    %c0_23 = arith.constant 0 : index
    %c0_24 = arith.constant 0 : index
    %23 = vector.load %arg10[%c0_22, %c0_23, %c0_24] : memref<18x18x32xbf16, #tpu.memory_space<vmem>>, vector<16x18x32xbf16>
    %24 = vector.extract_strided_slice %23 {offsets = [0, 0, 0], sizes = [16, 16, 32], strides = [1, 1, 1]} : vector<16x18x32xbf16> to vector<16x16x32xbf16>
    %25 = vector.shape_cast %24 : vector<16x16x32xbf16> to vector<256x32xbf16>
    %c0_25 = arith.constant 0 : index
    %c0_26 = arith.constant 0 : index
    %26 = vector.load %arg11[%c0_25, %c0_26] : memref<256x288xbf16, #tpu.memory_space<vmem>>, vector<256x32xbf16>
    tpu.vector_store %arg11[%c0_25, %c0_26], %25 {strides = array<i32>} : memref<256x288xbf16, #tpu.memory_space<vmem>>, vector<256x32xbf16>,
    %27 = vector.extract_strided_slice %23 {offsets = [0, 1, 0], sizes = [16, 16, 32], strides = [1, 1, 1]} : vector<16x18x32xbf16> to vector<16x16x32xbf16>
    %28 = vector.shape_cast %27 : vector<16x16x32xbf16> to vector<256x32xbf16>
    %c0_27 = arith.constant 0 : index
    %c32 = arith.constant 32 : index
    %29 = vector.load %arg11[%c0_27, %c32] : memref<256x288xbf16, #tpu.memory_space<vmem>>, vector<256x32xbf16>
    tpu.vector_store %arg11[%c0_27, %c32], %28 {strides = array<i32>} : memref<256x288xbf16, #tpu.memory_space<vmem>>, vector<256x32xbf16>,
    %30 = vector.extract_strided_slice %23 {offsets = [0, 2, 0], sizes = [16, 16, 32], strides = [1, 1, 1]} : vector<16x18x32xbf16> to vector<16x16x32xbf16>
    %31 = vector.shape_cast %30 : vector<16x16x32xbf16> to vector<256x32xbf16>
    %c0_28 = arith.constant 0 : index
    %c64 = arith.constant 64 : index
    %32 = vector.load %arg11[%c0_28, %c64] : memref<256x288xbf16, #tpu.memory_space<vmem>>, vector<256x32xbf16>
    tpu.vector_store %arg11[%c0_28, %c64], %31 {strides = array<i32>} : memref<256x288xbf16, #tpu.memory_space<vmem>>, vector<256x32xbf16>,
    %c1_29 = arith.constant 1 : index
    %c0_30 = arith.constant 0 : index
    %c0_31 = arith.constant 0 : index
    %33 = vector.load %arg10[%c1_29, %c0_30, %c0_31] : memref<18x18x32xbf16, #tpu.memory_space<vmem>>, vector<16x18x32xbf16>
    %34 = vector.extract_strided_slice %33 {offsets = [0, 0, 0], sizes = [16, 16, 32], strides = [1, 1, 1]} : vector<16x18x32xbf16> to vector<16x16x32xbf16>
    %35 = vector.shape_cast %34 : vector<16x16x32xbf16> to vector<256x32xbf16>
    %c0_32 = arith.constant 0 : index
    %c96 = arith.constant 96 : index
    %36 = vector.load %arg11[%c0_32, %c96] : memref<256x288xbf16, #tpu.memory_space<vmem>>, vector<256x32xbf16>
    tpu.vector_store %arg11[%c0_32, %c96], %35 {strides = array<i32>} : memref<256x288xbf16, #tpu.memory_space<vmem>>, vector<256x32xbf16>,
    %37 = vector.extract_strided_slice %33 {offsets = [0, 1, 0], sizes = [16, 16, 32], strides = [1, 1, 1]} : vector<16x18x32xbf16> to vector<16x16x32xbf16>
    %38 = vector.shape_cast %37 : vector<16x16x32xbf16> to vector<256x32xbf16>
    %c0_33 = arith.constant 0 : index
    %c128 = arith.constant 128 : index
    %39 = vector.load %arg11[%c0_33, %c128] : memref<256x288xbf16, #tpu.memory_space<vmem>>, vector<256x32xbf16>
    tpu.vector_store %arg11[%c0_33, %c128], %38 {strides = array<i32>} : memref<256x288xbf16, #tpu.memory_space<vmem>>, vector<256x32xbf16>,
    %40 = vector.extract_strided_slice %33 {offsets = [0, 2, 0], sizes = [16, 16, 32], strides = [1, 1, 1]} : vector<16x18x32xbf16> to vector<16x16x32xbf16>
    %41 = vector.shape_cast %40 : vector<16x16x32xbf16> to vector<256x32xbf16>
    %c0_34 = arith.constant 0 : index
    %c160 = arith.constant 160 : index
    %42 = vector.load %arg11[%c0_34, %c160] : memref<256x288xbf16, #tpu.memory_space<vmem>>, vector<256x32xbf16>
    tpu.vector_store %arg11[%c0_34, %c160], %41 {strides = array<i32>} : memref<256x288xbf16, #tpu.memory_space<vmem>>, vector<256x32xbf16>,
    %c2 = arith.constant 2 : index
    %c0_35 = arith.constant 0 : index
    %c0_36 = arith.constant 0 : index
    %43 = vector.load %arg10[%c2, %c0_35, %c0_36] : memref<18x18x32xbf16, #tpu.memory_space<vmem>>, vector<16x18x32xbf16>
    %44 = vector.extract_strided_slice %43 {offsets = [0, 0, 0], sizes = [16, 16, 32], strides = [1, 1, 1]} : vector<16x18x32xbf16> to vector<16x16x32xbf16>
    %45 = vector.shape_cast %44 : vector<16x16x32xbf16> to vector<256x32xbf16>
    %c0_37 = arith.constant 0 : index
    %c192 = arith.constant 192 : index
    %46 = vector.load %arg11[%c0_37, %c192] : memref<256x288xbf16, #tpu.memory_space<vmem>>, vector<256x32xbf16>
    tpu.vector_store %arg11[%c0_37, %c192], %45 {strides = array<i32>} : memref<256x288xbf16, #tpu.memory_space<vmem>>, vector<256x32xbf16>,
    %47 = vector.extract_strided_slice %43 {offsets = [0, 1, 0], sizes = [16, 16, 32], strides = [1, 1, 1]} : vector<16x18x32xbf16> to vector<16x16x32xbf16>
    %48 = vector.shape_cast %47 : vector<16x16x32xbf16> to vector<256x32xbf16>
    %c0_38 = arith.constant 0 : index
    %c224 = arith.constant 224 : index
    %49 = vector.load %arg11[%c0_38, %c224] : memref<256x288xbf16, #tpu.memory_space<vmem>>, vector<256x32xbf16>
    tpu.vector_store %arg11[%c0_38, %c224], %48 {strides = array<i32>} : memref<256x288xbf16, #tpu.memory_space<vmem>>, vector<256x32xbf16>,
    %50 = vector.extract_strided_slice %43 {offsets = [0, 2, 0], sizes = [16, 16, 32], strides = [1, 1, 1]} : vector<16x18x32xbf16> to vector<16x16x32xbf16>
    %51 = vector.shape_cast %50 : vector<16x16x32xbf16> to vector<256x32xbf16>
    %c0_39 = arith.constant 0 : index
    %c256 = arith.constant 256 : index
    %52 = vector.load %arg11[%c0_39, %c256] : memref<256x288xbf16, #tpu.memory_space<vmem>>, vector<256x32xbf16>
    tpu.vector_store %arg11[%c0_39, %c256], %51 {strides = array<i32>} : memref<256x288xbf16, #tpu.memory_space<vmem>>, vector<256x32xbf16>,
    %c0_40 = arith.constant 0 : index
    %c0_41 = arith.constant 0 : index
    %53 = vector.load %arg11[%c0_40, %c0_41] : memref<256x288xbf16, #tpu.memory_space<vmem>>, vector<256x288xbf16>
    %c0_42 = arith.constant 0 : index
    %c0_43 = arith.constant 0 : index
    %54 = vector.load %arg4[%c0_42, %c0_43] : memref<288x32xbf16, #tpu.memory_space<vmem>>, vector<288x32xbf16>
    %cst_44 = arith.constant dense<0.000000e+00> : vector<256x32xf32>
    %55 = tpu.matmul %53, %54, %cst_44 {dimension_numbers = #tpu.dot_dimension_numbers<[1], [0], [0], [1], [0, 0, 1, 1], [], []>} : vector<256x288xbf16>, vector<288x32xbf16>, vector<256x32xf32> -> vector<256x32xf32>
    %c0_45 = arith.constant 0 : index
    %c0_46 = arith.constant 0 : index
    %56 = vector.load %arg7[%c0_45, %c0_46] : memref<1x32xf32, #tpu.memory_space<vmem>>, vector<1x32xf32>
    %57 = vector.broadcast %56 : vector<1x32xf32> to vector<256x32xf32>
    %58 = arith.addf %55, %57 : vector<256x32xf32>
    %cst_47 = arith.constant 0.000000e+00 : f32
    %59 = vector.broadcast %cst_47 : f32 to vector<256x32xf32>
    %60 = arith.maximumf %58, %59 : vector<256x32xf32>
    %61 = arith.truncf %60 : vector<256x32xf32> to vector<256x32xbf16>
    %c0_48 = arith.constant 0 : index
    %c0_49 = arith.constant 0 : index
    %62 = vector.load %arg5[%c0_48, %c0_49] : memref<32x128xbf16, #tpu.memory_space<vmem>>, vector<32x128xbf16>
    %cst_50 = arith.constant dense<0.000000e+00> : vector<256x128xf32>
    %63 = tpu.matmul %61, %62, %cst_50 {dimension_numbers = #tpu.dot_dimension_numbers<[1], [0], [0], [1], [0, 0, 1, 1], [], []>} : vector<256x32xbf16>, vector<32x128xbf16>, vector<256x128xf32> -> vector<256x128xf32>
    %c0_51 = arith.constant 0 : index
    %c0_52 = arith.constant 0 : index
    %64 = vector.load %arg8[%c0_51, %c0_52] : memref<1x128xf32, #tpu.memory_space<vmem>>, vector<1x128xf32>
    %65 = vector.broadcast %64 : vector<1x128xf32> to vector<256x128xf32>
    %66 = arith.addf %63, %65 : vector<256x128xf32>
    %c0_53 = arith.constant 0 : index
    %67 = arith.index_cast %2 : i32 to index
    %c0_54 = arith.constant 0 : index
    %68 = vector.load %arg2[%c0_53, %67, %c0_54] : memref<1x256x128xf32, #tpu.memory_space<vmem>>, vector<1x256x128xf32>
    %69 = vector.shape_cast %68 : vector<1x256x128xf32> to vector<256x128xf32>
    %70 = arith.addf %66, %69 : vector<256x128xf32>
    %cst_55 = arith.constant 0.000000e+00 : f32
    %71 = vector.broadcast %cst_55 : f32 to vector<256x128xf32>
    %72 = arith.maximumf %70, %71 : vector<256x128xf32>
    %c0_56 = arith.constant 0 : index
    %c0_57 = arith.constant 0 : index
    %c0_58 = arith.constant 0 : index
    %73 = vector.load %arg9[%c0_56, %c0_57, %c0_58] : memref<1x256x128xf32, #tpu.memory_space<vmem>>, vector<1x256x128xf32>
    %74 = vector.shape_cast %73 : vector<1x256x128xf32> to vector<256x128xf32>
    %75 = vector.shape_cast %72 : vector<256x128xf32> to vector<1x256x128xf32>
    tpu.vector_store %arg9[%c0_56, %c0_57, %c0_58], %75 {strides = array<i32>} : memref<1x256x128xf32, #tpu.memory_space<vmem>>, vector<1x256x128xf32>,
    return
  }
  func.func @transform_0(%arg0: i32, %arg1: i32) -> (i32, i32, i32) {
    %c0_i32 = arith.constant 0 : i32
    %c0_i32_0 = arith.constant 0 : i32
    %c0_i32_1 = arith.constant 0 : i32
    return %arg0, %c0_i32, %c0_i32_0 : i32, i32, i32
  }
  func.func @transform_1(%arg0: i32, %arg1: i32) -> (i32, i32) {
    %c0_i32 = arith.constant 0 : i32
    %c0_i32_0 = arith.constant 0 : i32
    %c0_i32_1 = arith.constant 0 : i32
    return %c0_i32, %c0_i32_0 : i32, i32
  }
  func.func @transform_2(%arg0: i32, %arg1: i32) -> (i32, i32) {
    %c0_i32 = arith.constant 0 : i32
    %c0_i32_0 = arith.constant 0 : i32
    %c0_i32_1 = arith.constant 0 : i32
    return %c0_i32, %c0_i32_0 : i32, i32
  }
  func.func @transform_3(%arg0: i32, %arg1: i32) -> (i32, i32) {
    %c0_i32 = arith.constant 0 : i32
    %c0_i32_0 = arith.constant 0 : i32
    %c0_i32_1 = arith.constant 0 : i32
    return %c0_i32, %c0_i32_0 : i32, i32
  }
  func.func @transform_4(%arg0: i32, %arg1: i32) -> (i32, i32) {
    %c0_i32 = arith.constant 0 : i32
    %c0_i32_0 = arith.constant 0 : i32
    %c0_i32_1 = arith.constant 0 : i32
    return %c0_i32, %c0_i32_0 : i32, i32
  }
  func.func @transform_5(%arg0: i32, %arg1: i32) -> (i32, i32) {
    %c0_i32 = arith.constant 0 : i32
    %c0_i32_0 = arith.constant 0 : i32
    %c0_i32_1 = arith.constant 0 : i32
    return %c0_i32, %c0_i32_0 : i32, i32
  }
  func.func @transform_6(%arg0: i32, %arg1: i32) -> (i32, i32) {
    %c0_i32 = arith.constant 0 : i32
    %c0_i32_0 = arith.constant 0 : i32
    %c0_i32_1 = arith.constant 0 : i32
    return %c0_i32, %c0_i32_0 : i32, i32
  }
  func.func @transform_7(%arg0: i32, %arg1: i32) -> (i32, i32, i32) {
    %c0_i32 = arith.constant 0 : i32
    %c0_i32_0 = arith.constant 0 : i32
    return %arg0, %arg1, %c0_i32 : i32, i32, i32
  }
}

</mosaic_0001>

<llo_original>
// kernel: basic_block_forward.1
$region0: #{basic_block_forward.1}
  #allocation0 [shape = 'u32[]', space=smem, size = 0x4, offset = 0x4, fixed_abs, tag = 'smem constant byte address 0x4 - core index']
  #allocation1 [shape = 'u32[72,128]{1,0:T(1,128)}', space=vmem, size = 0x9000, scoped, tag = 'internal scratch']
  #allocation2 [shape = 'bf16[18,18,32]{2,1,0:T(8,128)(2,1)}', space=vmem, size = 0x1b000, scoped, tag = 'scratch operand']
  #allocation3 [shape = 'bf16[256,288]{1,0:T(8,128)(2,1)}', space=vmem, size = 0x30000, scoped, tag = 'scratch operand']
  %s0 = inlined_call_operand.hbm [shape: f32[2,256,128], index: 0, kind: input, shape index: {}]
  %s1 = inlined_call_operand.vmem [shape: bf16[128,32], index: 1, kind: input, shape index: {}]
  %s2 = inlined_call_operand.hbm [shape: bf16[288,32], index: 2, kind: input, shape index: {}]
  %s3 = inlined_call_operand.vmem [shape: bf16[32,128], index: 3, kind: input, shape index: {}]
  %s4 = inlined_call_operand.vmem [shape: f32[1,32], index: 4, kind: input, shape index: {}]
  %s5 = inlined_call_operand.vmem [shape: f32[1,32], index: 5, kind: input, shape index: {}]
  %s6 = inlined_call_operand.vmem [shape: f32[1,128], index: 6, kind: input, shape index: {}]
  %s7 = inlined_call_operand.hbm [shape: f32[2,256,128], index: 7, kind: output, shape index: {}]
  %s8 = sld [smem:[#allocation0]]
  $region69: #{basic_block_forward.1} parent=0
    _
  %s10 = ssub.s32 1, %s8
  %s11 = scalar_select 0, %s10, %s8
  $region1: #{basic_block_forward.1} parent=0
    #allocation4 [shape = 'u8[262144]{0}', space=vmem, size = 0x40000, scoped, tag = 'input window, operand 0']
    #allocation5 [shape = 's32[2]{0}', space=sflag, size = 0x8, scoped, tag = 'scoped memory for basic_block_forward.1']
    #allocation6 [shape = 's32[2]{0}', space=sflag, size = 0x8, scoped, tag = 'scoped memory for basic_block_forward.1']
    #allocation7 [shape = 'u8[73728]{0}', space=vmem, size = 0x12000, scoped, tag = 'input window, operand 2, single buffered']
    #allocation8 [shape = 's32[1]{0}', space=sflag, size = 0x4, scoped, tag = 'scoped memory for basic_block_forward.1']
    #allocation9 [shape = 'u8[262144]{0}', space=vmem, size = 0x40000, scoped, tag = 'output window, operand 0']
    %12 = vsyncpa [#allocation5], 0
    %s13 = scalar_lea.sflag [#allocation5], 1
    %14 = vsyncpa %s13, 0
    %15 = vsyncpa [#allocation8], 0
    %16 = vsyncpa [#allocation6], 0
    %s17 = scalar_lea.sflag [#allocation6], 1
    %18 = vsyncpa %s17, 0
    loop: start=0, step=1, limit=4
    $region2: #{basic_block_forward.1} parent=1 // loop_pre_header
      _
    $region3: #{basic_block_forward.1} parent=1 // loop_header
      %s20 = sphi 0, %s24
      %p21 = scmp.ge.s32.totalorder %s20, 4
      %s27 = sphi 0, %s39
      %s28 = sphi 0, %s35
      %s29 = sphi 0, %s27
      %s30 = sphi 0, %s28
      %s31 = sphi 0, %s29
      %s32 = sphi 0, %s30
      %s42 = sphi 0, %s44
      %s45 = sphi 0, %s42
      %s46 = sphi 0, %s45
      %s62 = sphi 0, %s46
      %s66 = sphi 0, %s66
      %s68 = sphi 0, %s66
      %s69 = sphi 0, %s68
      %s83 = sphi 0, %s69
      %s87 = sphi 0, %s87
      %s89 = sphi 0, %s87
      %s90 = sphi 0, %s89
      %s104 = sphi 0, %s90
      %s108 = sphi 0, %s108
      %s110 = sphi 0, %s108
      %s111 = sphi 0, %s110
      %s125 = sphi 0, %s111
      %s129 = sphi 0, %s129
      %s131 = sphi 0, %s129
      %s132 = sphi 0, %s131
      %s146 = sphi 0, %s132
      %s150 = sphi 0, %s150
      %s152 = sphi 0, %s150
      %s153 = sphi 0, %s152
      %s167 = sphi 0, %s153
      %s171 = sphi 0, %s171
      %s173 = sphi 0, %s171
      %s174 = sphi 0, %s173
      %s188 = sphi 0, %s174
      %s196 = sphi 0, %s198
      %s199 = sphi 0, %s196
      %s200 = sphi 0, %s199
      %s216 = sphi 0, %s200
    $region4: #{basic_block_forward.1} parent=1 // loop_header_branch
      %23 = sbr.rel (%p21) target = $region8
    $region5: #{basic_block_forward.1} parent=1 // loop_body
      %s25 = ssub.s32 %s20, 1
      %s26 = ssub.s32 %s20, 2
      %s33 = sadd.s32 1, %s28
      %p34 = scmp.ge.s32.totalorder %s33, 1
      %s35 = scalar_select %p34, 0, %s33
      %s36 = sadd.s32 1, %s27
      %s37 = scalar_select %p34, %s36, %s27
      %p38 = scmp.ge.s32.totalorder %s37, 2
      %s39 = scalar_select %p38, 0, %s37
      %s40 = ssub.s32 %s27, %s39
      %p41 = scmp.eq.s32.totalorder %s40, 0
      %s43 = sadd.s32 %s42, 1
      %s44 = scalar_select %p41, %s42, %s43
      %p47 = pneg %p41
      %p48 = scmp.eq.s32.totalorder %s20, 1
      %p49 = por %p47, %p48
      %p50 = scmp.ne.s32.totalorder %s42, %s45
      %p51 = scmp.eq.s32.totalorder %s20, 0
      %p52 = por %p50, %p51
      %p53 = scmp.ne.s32.totalorder %s42, %s45
      %p54 = scmp.eq.s32.totalorder %s25, 1
      %p55 = por %p53, %p54
      %p56 = scmp.ne.s32.totalorder %s45, %s46
      %p57 = scmp.eq.s32.totalorder %s25, 0
      %p58 = por %p56, %p57
      %p59 = scmp.ne.s32.totalorder %s45, %s46
      %p60 = scmp.eq.s32.totalorder %s26, 1
      %p61 = por %p59, %p60
      %p63 = scmp.ne.s32.totalorder %s46, %s62
      %p64 = scmp.eq.s32.totalorder %s26, 0
      %p65 = por %p63, %p64
      %s67 = sadd.s32 %s66, 1
      %p70 = scmp.eq.s32.totalorder %s20, 1
      %p71 = scmp.ne.s32.totalorder %s66, %s68
      %p72 = scmp.eq.s32.totalorder %s20, 0
      %p73 = por %p71, %p72
      %p74 = scmp.ne.s32.totalorder %s66, %s68
      %p75 = scmp.eq.s32.totalorder %s25, 1
      %p76 = por %p74, %p75
      %p77 = scmp.ne.s32.totalorder %s68, %s69
      %p78 = scmp.eq.s32.totalorder %s25, 0
      %p79 = por %p77, %p78
      %p80 = scmp.ne.s32.totalorder %s68, %s69
      %p81 = scmp.eq.s32.totalorder %s26, 1
      %p82 = por %p80, %p81
      %p84 = scmp.ne.s32.totalorder %s69, %s83
      %p85 = scmp.eq.s32.totalorder %s26, 0
      %p86 = por %p84, %p85
      %s88 = sadd.s32 %s87, 1
      %p91 = scmp.eq.s32.totalorder %s20, 1
      %p92 = scmp.ne.s32.totalorder %s87, %s89
      %p93 = scmp.eq.s32.totalorder %s20, 0
      %p94 = por %p92, %p93
      %p95 = scmp.ne.s32.totalorder %s87, %s89
      %p96 = scmp.eq.s32.totalorder %s25, 1
      %p97 = por %p95, %p96
      %p98 = scmp.ne.s32.totalorder %s89, %s90
      %p99 = scmp.eq.s32.totalorder %s25, 0
      %p100 = por %p98, %p99
      %p101 = scmp.ne.s32.totalorder %s89, %s90
      %p102 = scmp.eq.s32.totalorder %s26, 1
      %p103 = por %p101, %p102
      %p105 = scmp.ne.s32.totalorder %s90, %s104
      %p106 = scmp.eq.s32.totalorder %s26, 0
      %p107 = por %p105, %p106
      %s109 = sadd.s32 %s108, 1
      %p112 = scmp.eq.s32.totalorder %s20, 1
      %p113 = scmp.ne.s32.totalorder %s108, %s110
      %p114 = scmp.eq.s32.totalorder %s20, 0
      %p115 = por %p113, %p114
      %p116 = scmp.ne.s32.totalorder %s108, %s110
      %p117 = scmp.eq.s32.totalorder %s25, 1
      %p118 = por %p116, %p117
      %p119 = scmp.ne.s32.totalorder %s110, %s111
      %p120 = scmp.eq.s32.totalorder %s25, 0
      %p121 = por %p119, %p120
      %p122 = scmp.ne.s32.totalorder %s110, %s111
      %p123 = scmp.eq.s32.totalorder %s26, 1
      %p124 = por %p122, %p123
      %p126 = scmp.ne.s32.totalorder %s111, %s125
      %p127 = scmp.eq.s32.totalorder %s26, 0
      %p128 = por %p126, %p127
      %s130 = sadd.s32 %s129, 1
      %p133 = scmp.eq.s32.totalorder %s20, 1
      %p134 = scmp.ne.s32.totalorder %s129, %s131
      %p135 = scmp.eq.s32.totalorder %s20, 0
      %p136 = por %p134, %p135
      %p137 = scmp.ne.s32.totalorder %s129, %s131
      %p138 = scmp.eq.s32.totalorder %s25, 1
      %p139 = por %p137, %p138
      %p140 = scmp.ne.s32.totalorder %s131, %s132
      %p141 = scmp.eq.s32.totalorder %s25, 0
      %p142 = por %p140, %p141
      %p143 = scmp.ne.s32.totalorder %s131, %s132
      %p144 = scmp.eq.s32.totalorder %s26, 1
      %p145 = por %p143, %p144
      %p147 = scmp.ne.s32.totalorder %s132, %s146
      %p148 = scmp.eq.s32.totalorder %s26, 0
      %p149 = por %p147, %p148
      %s151 = sadd.s32 %s150, 1
      %p154 = scmp.eq.s32.totalorder %s20, 1
      %p155 = scmp.ne.s32.totalorder %s150, %s152
      %p156 = scmp.eq.s32.totalorder %s20, 0
      %p157 = por %p155, %p156
      %p158 = scmp.ne.s32.totalorder %s150, %s152
      %p159 = scmp.eq.s32.totalorder %s25, 1
      %p160 = por %p158, %p159
      %p161 = scmp.ne.s32.totalorder %s152, %s153
      %p162 = scmp.eq.s32.totalorder %s25, 0
      %p163 = por %p161, %p162
      %p164 = scmp.ne.s32.totalorder %s152, %s153
      %p165 = scmp.eq.s32.totalorder %s26, 1
      %p166 = por %p164, %p165
      %p168 = scmp.ne.s32.totalorder %s153, %s167
      %p169 = scmp.eq.s32.totalorder %s26, 0
      %p170 = por %p168, %p169
      %s172 = sadd.s32 %s171, 1
      %p175 = scmp.eq.s32.totalorder %s20, 1
      %p176 = scmp.ne.s32.totalorder %s171, %s173
      %p177 = scmp.eq.s32.totalorder %s20, 0
      %p178 = por %p176, %p177
      %p179 = scmp.ne.s32.totalorder %s171, %s173
      %p180 = scmp.eq.s32.totalorder %s25, 1
      %p181 = por %p179, %p180
      %p182 = scmp.ne.s32.totalorder %s173, %s174
      %p183 = scmp.eq.s32.totalorder %s25, 0
      %p184 = por %p182, %p183
      %p185 = scmp.ne.s32.totalorder %s173, %s174
      %p186 = scmp.eq.s32.totalorder %s26, 1
      %p187 = por %p185, %p186
      %p189 = scmp.ne.s32.totalorder %s174, %s188
      %p190 = scmp.eq.s32.totalorder %s26, 0
      %p191 = por %p189, %p190
      %s192 = ssub.s32 %s27, %s39
      %s193 = ssub.s32 %s28, %s35
      %s194 = sor.u32 %s192, %s193
      %p195 = scmp.eq.s32.totalorder %s194, 0
      %s197 = sadd.s32 %s196, 1
      %s198 = scalar_select %p195, %s196, %s197
      %p201 = pneg %p195
      %p202 = scmp.eq.s32.totalorder %s20, 1
      %p203 = por %p201, %p202
      %p204 = scmp.ne.s32.totalorder %s196, %s199
      %p205 = scmp.eq.s32.totalorder %s20, 0
      %p206 = por %p204, %p205
      %p207 = scmp.ne.s32.totalorder %s196, %s199
      %p208 = scmp.eq.s32.totalorder %s25, 1
      %p209 = por %p207, %p208
      %p210 = scmp.ne.s32.totalorder %s199, %s200
      %p211 = scmp.eq.s32.totalorder %s25, 0
      %p212 = por %p210, %p211
      %p213 = scmp.ne.s32.totalorder %s199, %s200
      %p214 = scmp.eq.s32.totalorder %s26, 1
      %p215 = por %p213, %p214
      %p217 = scmp.ne.s32.totalorder %s200, %s216
      %p218 = scmp.eq.s32.totalorder %s26, 0
      %p219 = por %p217, %p218
      %p220 = scmp.le.s32.totalorder 1, %s20
      %p221 = scmp.lt.s32.totalorder %s20, 3
      %p222 = pnand %p220, %p221
      %p223 = pneg %p222
      // Predicated region
      $region9: #{basic_block_forward.1} parent=5 // pred_check
        _
      $region10: #{basic_block_forward.1} parent=5 // pred_check_branch
        %225 = sbr.rel (%p222) target = $region12
      $region11: #{basic_block_forward.1} parent=5 // pred_region
        %s226 = ssub.s32 %s20, 1
        // Predicated region
        $region13: #{basic_block_forward.1} parent=11 // pred_check
          %p227 = pneg %p79
        $region14: #{basic_block_forward.1} parent=11 // pred_check_branch
          %229 = sbr.rel (%p227) target = $region16
        $region15: #{basic_block_forward.1} parent=11 // pred_region
          _
        $region16: #{basic_block_forward.1} parent=11 // pred_fallthru
          _
        // Predicated region
        $region17: #{basic_block_forward.1} parent=11 // pred_check
          %p230 = pneg %p100
        $region18: #{basic_block_forward.1} parent=11 // pred_check_branch
          %232 = sbr.rel (%p230) target = $region20
        $region19: #{basic_block_forward.1} parent=11 // pred_region
          %234 = vsyncadd [#allocation8], 0
          %s235 = sshll.u32 %s2, 4
          %s236 = int_to_ptr.hbm [resolvable:$true] %s235
          %s237 = sshll.u32 [#allocation7], 4
          %s238 = int_to_ptr.vmem [resolvable:$true] %s237
          %243 = dma.hbm_to_vmem [thread:$0]  %s236, 2304, %s238, [#allocation8], 64, 64, 4
        $region20: #{basic_block_forward.1} parent=11 // pred_fallthru
          _
        // Predicated region
        $region21: #{basic_block_forward.1} parent=11 // pred_check
          %p244 = pneg %p121
        $region22: #{basic_block_forward.1} parent=11 // pred_check_branch
          %246 = sbr.rel (%p244) target = $region24
        $region23: #{basic_block_forward.1} parent=11 // pred_region
          _
        $region24: #{basic_block_forward.1} parent=11 // pred_fallthru
          _
        // Predicated region
        $region25: #{basic_block_forward.1} parent=11 // pred_check
          %p247 = pneg %p142
        $region26: #{basic_block_forward.1} parent=11 // pred_check_branch
          %249 = sbr.rel (%p247) target = $region28
        $region27: #{basic_block_forward.1} parent=11 // pred_region
          _
        $region28: #{basic_block_forward.1} parent=11 // pred_fallthru
          _
        // Predicated region
        $region29: #{basic_block_forward.1} parent=11 // pred_check
          %p250 = pneg %p163
        $region30: #{basic_block_forward.1} parent=11 // pred_check_branch
          %252 = sbr.rel (%p250) target = $region32
        $region31: #{basic_block_forward.1} parent=11 // pred_region
          _
        $region32: #{basic_block_forward.1} parent=11 // pred_fallthru
          _
        // Predicated region
        $region33: #{basic_block_forward.1} parent=11 // pred_check
          %p253 = pneg %p184
        $region34: #{basic_block_forward.1} parent=11 // pred_check_branch
          %255 = sbr.rel (%p253) target = $region36
        $region35: #{basic_block_forward.1} parent=11 // pred_region
          _
        $region36: #{basic_block_forward.1} parent=11 // pred_fallthru
          _
      $region12: #{basic_block_forward.1} parent=5 // pred_fallthru
        _
      %p256 = scmp.lt.s32.totalorder %s20, 2
      // Predicated region
      $region37: #{basic_block_forward.1} parent=5 // pred_check
        %p257 = pneg %p256
      $region38: #{basic_block_forward.1} parent=5 // pred_check_branch
        %259 = sbr.rel (%p257) target = $region40
      $region39: #{basic_block_forward.1} parent=5 // pred_region
        // Predicated region
        $region41: #{basic_block_forward.1} parent=39 // pred_check
          %p260 = pneg %p52
        $region42: #{basic_block_forward.1} parent=39 // pred_check_branch
          %262 = sbr.rel (%p260) target = $region44
        $region43: #{basic_block_forward.1} parent=39 // pred_region
          %s263 = sand.u32 %s42, 1
          %s264 = scalar_lea.sflag [#allocation5], %s263
          %s265 = sand.u32 %s42, 1
          %s266 = smul.addr %s265, 256
          %s267 = scalar_lea.vmem [#allocation4], %s266
          %269 = vsyncadd %s264, 0
          %s270 = smul.addr %s27, 32
          %s271 = smul.addr %s270, 8
          %s272 = scalar_lea.hbm %s0, %s271
          %s273 = sshll.u32 %s272, 4
          %s274 = int_to_ptr.hbm [resolvable:$true] %s273
          %s275 = sshll.u32 %s267, 4
          %s276 = int_to_ptr.vmem [resolvable:$true] %s275
          %281 = dma.hbm_to_vmem [thread:$0]  %s274, 4096, %s276, %s264, 128, 128, 8
        $region44: #{basic_block_forward.1} parent=39 // pred_fallthru
          _
      $region40: #{basic_block_forward.1} parent=5 // pred_fallthru
        _
      %p282 = scmp.le.s32.totalorder 1, %s20
      %p283 = scmp.lt.s32.totalorder %s20, 3
      %p284 = pnand %p282, %p283
      %p285 = pneg %p284
      // Predicated region
      $region45: #{basic_block_forward.1} parent=5 // pred_check
        _
      $region46: #{basic_block_forward.1} parent=5 // pred_check_branch
        %287 = sbr.rel (%p284) target = $region48
      $region47: #{basic_block_forward.1} parent=5 // pred_region
        %s288 = ssub.s32 %s20, 1
        %s289 = sand.u32 %s45, 1
        %s290 = scalar_lea.sflag [#allocation5], %s289
        %s291 = sand.u32 %s45, 1
        %s292 = smul.addr %s291, 256
        %s293 = scalar_lea.vmem [#allocation4], %s292
        // Predicated region
        $region49: #{basic_block_forward.1} parent=47 // pred_check
          %p294 = pneg %p58
        $region50: #{basic_block_forward.1} parent=47 // pred_check_branch
          %296 = sbr.rel (%p294) target = $region52
        $region51: #{basic_block_forward.1} parent=47 // pred_region
          %298 = dma.done %s290, 4096
        $region52: #{basic_block_forward.1} parent=47 // pred_fallthru
          _
        // Predicated region
        $region53: #{basic_block_forward.1} parent=47 // pred_check
          %p299 = pneg %p100
        $region54: #{basic_block_forward.1} parent=47 // pred_check_branch
          %301 = sbr.rel (%p299) target = $region56
        $region55: #{basic_block_forward.1} parent=47 // pred_region
          %303 = dma.done [#allocation8], 2304
        $region56: #{basic_block_forward.1} parent=47 // pred_fallthru
          _
        %s304 = sand.u32 %s45, 1
        %s305 = scalar_lea.sflag [#allocation5], %s304
        %s306 = sand.u32 %s45, 1
        %s307 = smul.addr %s306, 256
        %s308 = scalar_lea.vmem [#allocation4], %s307
        %p309 = pneg %p58
        %p310 = pneg %p55
        %p311 = pneg %p79
        %p312 = pneg %p76
        %p313 = pneg %p100
        %p314 = pneg %p97
        %p315 = pneg %p121
        %p316 = pneg %p118
        %p317 = pneg %p142
        %p318 = pneg %p139
        %p319 = pneg %p163
        %p320 = pneg %p160
        %p321 = pneg %p184
        %p322 = pneg %p181
        %p323 = pneg %p212
        %p324 = pneg %p209
        %s325 = sand.u32 %s199, 1
        %s326 = scalar_lea.sflag [#allocation6], %s325
        %s327 = sand.u32 %s199, 1
        %s328 = smul.addr %s327, 256
        %s329 = scalar_lea.vmem [#allocation9], %s328
        %s330 = smul.u32 32, %s30
        %s332 = smul.u32 %s30, 256
        %vm333 = vcmask 253952
        %vm334 = vsmask.f32 256
        %vm335 = vmand %vm333, %vm334
        %v336 = vld [vmem:[#allocation2] sm:$0x1]
        %v337 = vsel %vm335, 0, %v336
        %338 = vst [vmem:[#allocation2] sm:$0x1] %v337
        %v339 = vld [vmem:[#allocation2 + $0xc] sm:$0x1]
        %v340 = vsel %vm335, 0, %v339
        %341 = vst [vmem:[#allocation2 + $0xc] sm:$0x1] %v340
        %v342 = vld [vmem:[#allocation2 + $0x18] sm:$0x1]
        %v343 = vsel %vm335, 0, %v342
        %344 = vst [vmem:[#allocation2 + $0x18] sm:$0x1] %v343
        %v345 = vld [vmem:[#allocation2 + $0x24] sm:$0x1]
        %v346 = vsel %vm335, 0, %v345
        %347 = vst [vmem:[#allocation2 + $0x24] sm:$0x1] %v346
        %v348 = vld [vmem:[#allocation2 + $0x30] sm:$0x1]
        %v349 = vsel %vm335, 0, %v348
        %350 = vst [vmem:[#allocation2 + $0x30] sm:$0x1] %v349
        %v351 = vld [vmem:[#allocation2 + $0x3c] sm:$0x1]
        %v352 = vsel %vm335, 0, %v351
        %353 = vst [vmem:[#allocation2 + $0x3c] sm:$0x1] %v352
        %v354 = vld [vmem:[#allocation2 + $0x48] sm:$0x1]
        %v355 = vsel %vm335, 0, %v354
        %356 = vst [vmem:[#allocation2 + $0x48] sm:$0x1] %v355
        %v357 = vld [vmem:[#allocation2 + $0x54] sm:$0x1]
        %v358 = vsel %vm335, 0, %v357
        %359 = vst [vmem:[#allocation2 + $0x54] sm:$0x1] %v358
        %v360 = vld [vmem:[#allocation2 + $0x60] sm:$0x1]
        %v361 = vsel %vm335, 0, %v360
        %362 = vst [vmem:[#allocation2 + $0x60] sm:$0x1] %v361
        %v363 = vld [vmem:[#allocation2 + $0x6c] sm:$0x1]
        %v364 = vsel %vm335, 0, %v363
        %365 = vst [vmem:[#allocation2 + $0x6c] sm:$0x1] %v364
        %v366 = vld [vmem:[#allocation2 + $0x78] sm:$0x1]
        %v367 = vsel %vm335, 0, %v366
        %368 = vst [vmem:[#allocation2 + $0x78] sm:$0x1] %v367
        %v369 = vld [vmem:[#allocation2 + $0x84] sm:$0x1]
        %v370 = vsel %vm335, 0, %v369
        %371 = vst [vmem:[#allocation2 + $0x84] sm:$0x1] %v370
        %v372 = vld [vmem:[#allocation2 + $0x90] sm:$0x1]
        %v373 = vsel %vm335, 0, %v372
        %374 = vst [vmem:[#allocation2 + $0x90] sm:$0x1] %v373
        %v375 = vld [vmem:[#allocation2 + $0x9c] sm:$0x1]
        %v376 = vsel %vm335, 0, %v375
        %377 = vst [vmem:[#allocation2 + $0x9c] sm:$0x1] %v376
        %v378 = vld [vmem:[#allocation2 + $0xa8] sm:$0x1]
        %v379 = vsel %vm335, 0, %v378
        %380 = vst [vmem:[#allocation2 + $0xa8] sm:$0x1] %v379
        %v381 = vld [vmem:[#allocation2 + $0xb4] sm:$0x1]
        %v382 = vsel %vm335, 0, %v381
        %383 = vst [vmem:[#allocation2 + $0xb4] sm:$0x1] %v382
        %v384 = vld [vmem:[#allocation2 + $0xc0] sm:$0x1]
        %v385 = vsel %vm335, 0, %v384
        %386 = vst [vmem:[#allocation2 + $0xc0] sm:$0x1] %v385
        %v387 = vld [vmem:[#allocation2 + $0xcc] sm:$0x1]
        %v388 = vsel %vm335, 0, %v387
        %389 = vst [vmem:[#allocation2 + $0xcc] sm:$0x1] %v388
        %vm390 = vsmask.f32 7938
        %vm391 = vmand %vm333, %vm390
        %v392 = vld [vmem:[#allocation2 + $0x8] sm:$0x1]
        %v393 = vsel %vm391, 0, %v392
        %394 = vst [vmem:[#allocation2 + $0x8] sm:$0x1] %v393
        %v395 = vld [vmem:[#allocation2 + $0x14] sm:$0x1]
        %v396 = vsel %vm391, 0, %v395
        %397 = vst [vmem:[#allocation2 + $0x14] sm:$0x1] %v396
        %v398 = vld [vmem:[#allocation2 + $0x20] sm:$0x1]
        %v399 = vsel %vm391, 0, %v398
        %400 = vst [vmem:[#allocation2 + $0x20] sm:$0x1] %v399
        %v401 = vld [vmem:[#allocation2 + $0x2c] sm:$0x1]
        %v402 = vsel %vm391, 0, %v401
        %403 = vst [vmem:[#allocation2 + $0x2c] sm:$0x1] %v402
        %v404 = vld [vmem:[#allocation2 + $0x38] sm:$0x1]
        %v405 = vsel %vm391, 0, %v404
        %406 = vst [vmem:[#allocation2 + $0x38] sm:$0x1] %v405
        %v407 = vld [vmem:[#allocation2 + $0x44] sm:$0x1]
        %v408 = vsel %vm391, 0, %v407
        %409 = vst [vmem:[#allocation2 + $0x44] sm:$0x1] %v408
        %v410 = vld [vmem:[#allocation2 + $0x50] sm:$0x1]
        %v411 = vsel %vm391, 0, %v410
        %412 = vst [vmem:[#allocation2 + $0x50] sm:$0x1] %v411
        %v413 = vld [vmem:[#allocation2 + $0x5c] sm:$0x1]
        %v414 = vsel %vm391, 0, %v413
        %415 = vst [vmem:[#allocation2 + $0x5c] sm:$0x1] %v414
        %v416 = vld [vmem:[#allocation2 + $0x68] sm:$0x1]
        %v417 = vsel %vm391, 0, %v416
        %418 = vst [vmem:[#allocation2 + $0x68] sm:$0x1] %v417
        %v419 = vld [vmem:[#allocation2 + $0x74] sm:$0x1]
        %v420 = vsel %vm391, 0, %v419
        %421 = vst [vmem:[#allocation2 + $0x74] sm:$0x1] %v420
        %v422 = vld [vmem:[#allocation2 + $0x80] sm:$0x1]
        %v423 = vsel %vm391, 0, %v422
        %424 = vst [vmem:[#allocation2 + $0x80] sm:$0x1] %v423
        %v425 = vld [vmem:[#allocation2 + $0x8c] sm:$0x1]
        %v426 = vsel %vm391, 0, %v425
        %427 = vst [vmem:[#allocation2 + $0x8c] sm:$0x1] %v426
        %v428 = vld [vmem:[#allocation2 + $0x98] sm:$0x1]
        %v429 = vsel %vm391, 0, %v428
        %430 = vst [vmem:[#allocation2 + $0x98] sm:$0x1] %v429
        %v431 = vld [vmem:[#allocation2 + $0xa4] sm:$0x1]
        %v432 = vsel %vm391, 0, %v431
        %433 = vst [vmem:[#allocation2 + $0xa4] sm:$0x1] %v432
        %v434 = vld [vmem:[#allocation2 + $0xb0] sm:$0x1]
        %v435 = vsel %vm391, 0, %v434
        %436 = vst [vmem:[#allocation2 + $0xb0] sm:$0x1] %v435
        %v437 = vld [vmem:[#allocation2 + $0xbc] sm:$0x1]
        %v438 = vsel %vm391, 0, %v437
        %439 = vst [vmem:[#allocation2 + $0xbc] sm:$0x1] %v438
        %v440 = vld [vmem:[#allocation2 + $0xc8] sm:$0x1]
        %v441 = vsel %vm391, 0, %v440
        %442 = vst [vmem:[#allocation2 + $0xc8] sm:$0x1] %v441
        %v443 = vld [vmem:[#allocation2 + $0xd4] sm:$0x1]
        %v444 = vsel %vm391, 0, %v443
        %445 = vst [vmem:[#allocation2 + $0xd4] sm:$0x1] %v444
        %s446 = scalar_lea.vmem %s293, %s332 [#allocation4]
        %v447 = vld [vmem:[%s446] sm:$0xff]
        %v448 = vld [vmem:[%s446 + $0x8] sm:$0xff]
        %v449 = vld [vmem:[%s446 + $0x10] sm:$0xff]
        %v450 = vld [vmem:[%s446 + $0x18] sm:$0xff]
        %v451 = vld [vmem:[%s446 + $0x20] sm:$0xff]
        %v452 = vld [vmem:[%s446 + $0x28] sm:$0xff]
        %v453 = vld [vmem:[%s446 + $0x30] sm:$0xff]
        %v454 = vld [vmem:[%s446 + $0x38] sm:$0xff]
        %v455 = vld [vmem:[%s446 + $0x40] sm:$0xff]
        %v456 = vld [vmem:[%s446 + $0x48] sm:$0xff]
        %v457 = vld [vmem:[%s446 + $0x50] sm:$0xff]
        %v458 = vld [vmem:[%s446 + $0x58] sm:$0xff]
        %v459 = vld [vmem:[%s446 + $0x60] sm:$0xff]
        %v460 = vld [vmem:[%s446 + $0x68] sm:$0xff]
        %v461 = vld [vmem:[%s446 + $0x70] sm:$0xff]
        %v462 = vld [vmem:[%s446 + $0x78] sm:$0xff]
        %v463 = vld [vmem:[%s446 + $0x80] sm:$0xff]
        %v464 = vld [vmem:[%s446 + $0x88] sm:$0xff]
        %v465 = vld [vmem:[%s446 + $0x90] sm:$0xff]
        %v466 = vld [vmem:[%s446 + $0x98] sm:$0xff]
        %v467 = vld [vmem:[%s446 + $0xa0] sm:$0xff]
        %v468 = vld [vmem:[%s446 + $0xa8] sm:$0xff]
        %v469 = vld [vmem:[%s446 + $0xb0] sm:$0xff]
        %v470 = vld [vmem:[%s446 + $0xb8] sm:$0xff]
        %v471 = vld [vmem:[%s446 + $0xc0] sm:$0xff]
        %v472 = vld [vmem:[%s446 + $0xc8] sm:$0xff]
        %v473 = vld [vmem:[%s446 + $0xd0] sm:$0xff]
        %v474 = vld [vmem:[%s446 + $0xd8] sm:$0xff]
        %v475 = vld [vmem:[%s446 + $0xe0] sm:$0xff]
        %v476 = vld [vmem:[%s446 + $0xe8] sm:$0xff]
        %v477 = vld [vmem:[%s446 + $0xf0] sm:$0xff]
        %v478 = vld [vmem:[%s446 + $0xf8] sm:$0xff]
        %v479 = vpack.c.bf16 %v448, %v447
        %v480 = vpack.c.bf16 %v450, %v449
        %v481 = vpack.c.bf16 %v452, %v451
        %v482 = vpack.c.bf16 %v454, %v453
        %v483 = vpack.c.bf16 %v456, %v455
        %v484 = vpack.c.bf16 %v458, %v457
        %v485 = vpack.c.bf16 %v460, %v459
        %v486 = vpack.c.bf16 %v462, %v461
        %v487 = vpack.c.bf16 %v464, %v463
        %v488 = vpack.c.bf16 %v466, %v465
        %v489 = vpack.c.bf16 %v468, %v467
        %v490 = vpack.c.bf16 %v470, %v469
        %v491 = vpack.c.bf16 %v472, %v471
        %v492 = vpack.c.bf16 %v474, %v473
        %v493 = vpack.c.bf16 %v476, %v475
        %v494 = vpack.c.bf16 %v478, %v477
        %v495 = vld [vmem:[%s1] sm:$0xf]
        %v496 = vld [vmem:[%s1 + $0x4] sm:$0xf]
        %v497 = vld [vmem:[%s1 + $0x8] sm:$0xf]
        %v498 = vld [vmem:[%s1 + $0xc] sm:$0xf]
        %v499 = vld [vmem:[%s1 + $0x10] sm:$0xf]
        %v500 = vld [vmem:[%s1 + $0x14] sm:$0xf]
        %v501 = vld [vmem:[%s1 + $0x18] sm:$0xf]
        %v502 = vld [vmem:[%s1 + $0x1c] sm:$0xf]
        %v503 = vld [vmem:[%s1 + $0x20] sm:$0xf]
        %v504 = vld [vmem:[%s1 + $0x24] sm:$0xf]
        %v505 = vld [vmem:[%s1 + $0x28] sm:$0xf]
        %v506 = vld [vmem:[%s1 + $0x2c] sm:$0xf]
        %v507 = vld [vmem:[%s1 + $0x30] sm:$0xf]
        %v508 = vld [vmem:[%s1 + $0x34] sm:$0xf]
        %v509 = vld [vmem:[%s1 + $0x38] sm:$0xf]
        %v510 = vld [vmem:[%s1 + $0x3c] sm:$0xf]
        %v511 = vld [vmem:[%s4] sm:$0x1]
        %v513 = vperm.slane %v511, 0
        %v531 = vunpack.c.l.b16 %v495
        %v532 = vunpack.c.l.b16 %v496
        %v533 = vunpack.c.l.b16 %v497
        %v534 = vunpack.c.l.b16 %v498
        %v535 = vunpack.c.l.b16 %v499
        %v536 = vunpack.c.l.b16 %v500
        %v537 = vunpack.c.l.b16 %v501
        %v538 = vunpack.c.l.b16 %v502
        %v539 = vunpack.c.l.b16 %v503
        %v540 = vunpack.c.l.b16 %v504
        %v541 = vunpack.c.l.b16 %v505
        %v542 = vunpack.c.l.b16 %v506
        %v543 = vunpack.c.l.b16 %v507
        %v544 = vunpack.c.l.b16 %v508
        %v545 = vunpack.c.l.b16 %v509
        %v546 = vunpack.c.l.b16 %v510
        %v547 = vpack.c.b16 %v532, %v531
        %v548 = vpack.c.b16 %v534, %v533
        %v549 = vpack.c.b16 %v536, %v535
        %v550 = vpack.c.b16 %v538, %v537
        %v551 = vpack.c.b16 %v540, %v539
        %v552 = vpack.c.b16 %v542, %v541
        %v553 = vpack.c.b16 %v544, %v543
        %v554 = vpack.c.b16 %v546, %v545
        %563 = vmatpush.bf16.msra.mxu0 %v554
        %564 = vmatpush.bf16.msra.mxu0 %v553
        %565 = vmatpush.bf16.msra.mxu0 %v552
        %566 = vmatpush.bf16.msra.mxu0 %v551
        %567 = vmatpush.bf16.msra.mxu0 %v550
        %568 = vmatpush.bf16.msra.mxu0 %v549
        %569 = vmatpush.bf16.msra.mxu0 %v548
        %570 = vmatpush.bf16.msra.mxu0 %v547
        %571 = vmatmul.bf16.gmra.mxu0 %v479
        %v572 = vpop.f32.mrf.mxu0
        %v573 = vadd.f32 %v513, %v572
        %v574 = vpop.f32.mrf.mxu0
        %v575 = vadd.f32 %v513, %v574
        %576 = vmatmul.bf16.gmra.mxu0 %v480
        %v577 = vpop.f32.mrf.mxu0
        %v578 = vadd.f32 %v513, %v577
        %v579 = vpop.f32.mrf.mxu0
        %v580 = vadd.f32 %v513, %v579
        %581 = vmatmul.bf16.gmra.mxu0 %v481
        %v582 = vpop.f32.mrf.mxu0
        %v583 = vadd.f32 %v513, %v582
        %v584 = vpop.f32.mrf.mxu0
        %v585 = vadd.f32 %v513, %v584
        %586 = vmatmul.bf16.gmra.mxu0 %v482
        %v587 = vpop.f32.mrf.mxu0
        %v588 = vadd.f32 %v513, %v587
        %v589 = vpop.f32.mrf.mxu0
        %v590 = vadd.f32 %v513, %v589
        %591 = vmatmul.bf16.gmra.mxu0 %v483
        %v592 = vpop.f32.mrf.mxu0
        %v593 = vadd.f32 %v513, %v592
        %v594 = vpop.f32.mrf.mxu0
        %v595 = vadd.f32 %v513, %v594
        %596 = vmatmul.bf16.gmra.mxu0 %v484
        %v597 = vpop.f32.mrf.mxu0
        %v598 = vadd.f32 %v513, %v597
        %v599 = vpop.f32.mrf.mxu0
        %v600 = vadd.f32 %v513, %v599
        %601 = vmatmul.bf16.gmra.mxu0 %v485
        %v602 = vpop.f32.mrf.mxu0
        %v603 = vadd.f32 %v513, %v602
        %v604 = vpop.f32.mrf.mxu0
        %v605 = vadd.f32 %v513, %v604
        %606 = vmatmul.bf16.gmra.mxu0 %v486
        %v607 = vpop.f32.mrf.mxu0
        %v608 = vadd.f32 %v513, %v607
        %v609 = vpop.f32.mrf.mxu0
        %v610 = vadd.f32 %v513, %v609
        %611 = vmatmul.bf16.gmra.mxu0 %v487
        %v612 = vpop.f32.mrf.mxu0
        %v613 = vadd.f32 %v513, %v612
        %v614 = vpop.f32.mrf.mxu0
        %v615 = vadd.f32 %v513, %v614
        %616 = vmatmul.bf16.gmra.mxu0 %v488
        %v617 = vpop.f32.mrf.mxu0
        %v618 = vadd.f32 %v513, %v617
        %v619 = vpop.f32.mrf.mxu0
        %v620 = vadd.f32 %v513, %v619
        %621 = vmatmul.bf16.gmra.mxu0 %v489
        %v622 = vpop.f32.mrf.mxu0
        %v623 = vadd.f32 %v513, %v622
        %v624 = vpop.f32.mrf.mxu0
        %v625 = vadd.f32 %v513, %v624
        %626 = vmatmul.bf16.gmra.mxu0 %v490
        %v627 = vpop.f32.mrf.mxu0
        %v628 = vadd.f32 %v513, %v627
        %v629 = vpop.f32.mrf.mxu0
        %v630 = vadd.f32 %v513, %v629
        %631 = vmatmul.bf16.gmra.mxu0 %v491
        %v632 = vpop.f32.mrf.mxu0
        %v633 = vadd.f32 %v513, %v632
        %v634 = vpop.f32.mrf.mxu0
        %v635 = vadd.f32 %v513, %v634
        %636 = vmatmul.bf16.gmra.mxu0 %v492
        %v637 = vpop.f32.mrf.mxu0
        %v638 = vadd.f32 %v513, %v637
        %v639 = vpop.f32.mrf.mxu0
        %v640 = vadd.f32 %v513, %v639
        %641 = vmatmul.bf16.gmra.mxu0 %v493
        %v642 = vpop.f32.mrf.mxu0
        %v643 = vadd.f32 %v513, %v642
        %v644 = vpop.f32.mrf.mxu0
        %v645 = vadd.f32 %v513, %v644
        %646 = vmatmul.bf16.gmra.mxu0 %v494
        %v647 = vpop.f32.mrf.mxu0
        %v648 = vadd.f32 %v513, %v647
        %v649 = vpop.f32.mrf.mxu0
        %v650 = vadd.f32 %v513, %v649
        %651 = vdwg.mxu0
        %v652 = vmax.f32 %v573, 0.0
        %v653 = vmax.f32 %v575, 0.0
        %v654 = vmax.f32 %v578, 0.0
        %v655 = vmax.f32 %v580, 0.0
        %v656 = vmax.f32 %v583, 0.0
        %v657 = vmax.f32 %v585, 0.0
        %v658 = vmax.f32 %v588, 0.0
        %v659 = vmax.f32 %v590, 0.0
        %v660 = vmax.f32 %v593, 0.0
        %v661 = vmax.f32 %v595, 0.0
        %v662 = vmax.f32 %v598, 0.0
        %v663 = vmax.f32 %v600, 0.0
        %v664 = vmax.f32 %v603, 0.0
        %v665 = vmax.f32 %v605, 0.0
        %v666 = vmax.f32 %v608, 0.0
        %v667 = vmax.f32 %v610, 0.0
        %v668 = vmax.f32 %v613, 0.0
        %v669 = vmax.f32 %v615, 0.0
        %v670 = vmax.f32 %v618, 0.0
        %v671 = vmax.f32 %v620, 0.0
        %v672 = vmax.f32 %v623, 0.0
        %v673 = vmax.f32 %v625, 0.0
        %v674 = vmax.f32 %v628, 0.0
        %v675 = vmax.f32 %v630, 0.0
        %v676 = vmax.f32 %v633, 0.0
        %v677 = vmax.f32 %v635, 0.0
        %v678 = vmax.f32 %v638, 0.0
        %v679 = vmax.f32 %v640, 0.0
        %v680 = vmax.f32 %v643, 0.0
        %v681 = vmax.f32 %v645, 0.0
        %v682 = vmax.f32 %v648, 0.0
        %v683 = vmax.f32 %v650, 0.0
        %v684 = vpack.c.bf16 %v652, %v652
        %v685 = vpack.c.bf16 %v653, %v653
        %v686 = vpack.c.bf16 %v654, %v654
        %v687 = vpack.c.bf16 %v655, %v655
        %v688 = vpack.c.bf16 %v656, %v656
        %v689 = vpack.c.bf16 %v657, %v657
        %v690 = vpack.c.bf16 %v658, %v658
        %v691 = vpack.c.bf16 %v659, %v659
        %v692 = vpack.c.bf16 %v660, %v660
        %v693 = vpack.c.bf16 %v661, %v661
        %v694 = vpack.c.bf16 %v662, %v662
        %v695 = vpack.c.bf16 %v663, %v663
        %v696 = vpack.c.bf16 %v664, %v664
        %v697 = vpack.c.bf16 %v665, %v665
        %v698 = vpack.c.bf16 %v666, %v666
        %v699 = vpack.c.bf16 %v667, %v667
        %v700 = vpack.c.bf16 %v668, %v668
        %v701 = vpack.c.bf16 %v669, %v669
        %v702 = vpack.c.bf16 %v670, %v670
        %v703 = vpack.c.bf16 %v671, %v671
        %v704 = vpack.c.bf16 %v672, %v672
        %v705 = vpack.c.bf16 %v673, %v673
        %v706 = vpack.c.bf16 %v674, %v674
        %v707 = vpack.c.bf16 %v675, %v675
        %v708 = vpack.c.bf16 %v676, %v676
        %v709 = vpack.c.bf16 %v677, %v677
        %v710 = vpack.c.bf16 %v678, %v678
        %v711 = vpack.c.bf16 %v679, %v679
        %v712 = vpack.c.bf16 %v680, %v680
        %v713 = vpack.c.bf16 %v681, %v681
        %v714 = vpack.c.bf16 %v682, %v682
        %v715 = vpack.c.bf16 %v683, %v683
        %vm716 = vsmask.f32 4368
        %vm717 = vmor %vm334, %vm716
        %v719 = vshrl.u32 %v684, 16
        %v721 = vrot.slane %v719, 7
        %v722 = vshll.u32 %v684, 16
        %v724 = vor.u32 %v721, %v722
        %v725 = vrot.slane %v721, 4
        %v727 = vshrl.u32 %v685, 16
        %v729 = vrot.slane %v727, 7
        %v730 = vshll.u32 %v685, 16
        %v732 = vor.u32 %v729, %v730
        %v733 = vsel %vm717, %v725, %v732
        %v734 = vrot.slane %v729, 4
        %v736 = vshrl.u32 %v686, 16
        %v738 = vrot.slane %v736, 7
        %v739 = vshll.u32 %v686, 16
        %v741 = vor.u32 %v738, %v739
        %v742 = vrot.slane %v738, 4
        %v744 = vshrl.u32 %v687, 16
        %v746 = vrot.slane %v744, 7
        %v747 = vshll.u32 %v687, 16
        %v749 = vor.u32 %v746, %v747
        %v750 = vsel %vm717, %v742, %v749
        %v751 = vrot.slane %v746, 4
        %v753 = vshrl.u32 %v688, 16
        %v755 = vrot.slane %v753, 7
        %v756 = vshll.u32 %v688, 16
        %v758 = vor.u32 %v755, %v756
        %v759 = vrot.slane %v755, 4
        %v761 = vshrl.u32 %v689, 16
        %v763 = vrot.slane %v761, 7
        %v764 = vshll.u32 %v689, 16
        %v766 = vor.u32 %v763, %v764
        %v767 = vsel %vm717, %v759, %v766
        %v768 = vrot.slane %v763, 4
        %v770 = vshrl.u32 %v690, 16
        %v772 = vrot.slane %v770, 7
        %v773 = vshll.u32 %v690, 16
        %v775 = vor.u32 %v772, %v773
        %v776 = vrot.slane %v772, 4
        %v778 = vshrl.u32 %v691, 16
        %v780 = vrot.slane %v778, 7
        %v781 = vshll.u32 %v691, 16
        %v783 = vor.u32 %v780, %v781
        %v784 = vsel %vm717, %v776, %v783
        %v785 = vrot.slane %v780, 4
        %v787 = vshrl.u32 %v692, 16
        %v789 = vrot.slane %v787, 7
        %v790 = vshll.u32 %v692, 16
        %v792 = vor.u32 %v789, %v790
        %v793 = vrot.slane %v789, 4
        %v795 = vshrl.u32 %v693, 16
        %v797 = vrot.slane %v795, 7
        %v798 = vshll.u32 %v693, 16
        %v800 = vor.u32 %v797, %v798
        %v801 = vsel %vm717, %v793, %v800
        %v802 = vrot.slane %v797, 4
        %v804 = vshrl.u32 %v694, 16
        %v806 = vrot.slane %v804, 7
        %v807 = vshll.u32 %v694, 16
        %v809 = vor.u32 %v806, %v807
        %v810 = vrot.slane %v806, 4
        %v812 = vshrl.u32 %v695, 16
        %v814 = vrot.slane %v812, 7
        %v815 = vshll.u32 %v695, 16
        %v817 = vor.u32 %v814, %v815
        %v818 = vsel %vm717, %v810, %v817
        %v819 = vrot.slane %v814, 4
        %v821 = vshrl.u32 %v696, 16
        %v823 = vrot.slane %v821, 7
        %v824 = vshll.u32 %v696, 16
        %v826 = vor.u32 %v823, %v824
        %v827 = vrot.slane %v823, 4
        %v829 = vshrl.u32 %v697, 16
        %v831 = vrot.slane %v829, 7
        %v832 = vshll.u32 %v697, 16
        %v834 = vor.u32 %v831, %v832
        %v835 = vsel %vm717, %v827, %v834
        %v836 = vrot.slane %v831, 4
        %v838 = vshrl.u32 %v698, 16
        %v840 = vrot.slane %v838, 7
        %v841 = vshll.u32 %v698, 16
        %v843 = vor.u32 %v840, %v841
        %v844 = vrot.slane %v840, 4
        %v846 = vshrl.u32 %v699, 16
        %v848 = vrot.slane %v846, 7
        %v849 = vshll.u32 %v699, 16
        %v851 = vor.u32 %v848, %v849
        %v852 = vsel %vm717, %v844, %v851
        %v853 = vrot.slane %v848, 4
        %v855 = vshrl.u32 %v700, 16
        %v857 = vrot.slane %v855, 7
        %v858 = vshll.u32 %v700, 16
        %v860 = vor.u32 %v857, %v858
        %v861 = vrot.slane %v857, 4
        %v863 = vshrl.u32 %v701, 16
        %v865 = vrot.slane %v863, 7
        %v866 = vshll.u32 %v701, 16
        %v868 = vor.u32 %v865, %v866
        %v869 = vsel %vm717, %v861, %v868
        %v870 = vrot.slane %v865, 4
        %v872 = vshrl.u32 %v702, 16
        %v874 = vrot.slane %v872, 7
        %v875 = vshll.u32 %v702, 16
        %v877 = vor.u32 %v874, %v875
        %v878 = vrot.slane %v874, 4
        %v880 = vshrl.u32 %v703, 16
        %v882 = vrot.slane %v880, 7
        %v883 = vshll.u32 %v703, 16
        %v885 = vor.u32 %v882, %v883
        %v886 = vsel %vm717, %v878, %v885
        %v887 = vrot.slane %v882, 4
        %v889 = vshrl.u32 %v704, 16
        %v891 = vrot.slane %v889, 7
        %v892 = vshll.u32 %v704, 16
        %v894 = vor.u32 %v891, %v892
        %v895 = vrot.slane %v891, 4
        %v897 = vshrl.u32 %v705, 16
        %v899 = vrot.slane %v897, 7
        %v900 = vshll.u32 %v705, 16
        %v902 = vor.u32 %v899, %v900
        %v903 = vsel %vm717, %v895, %v902
        %v904 = vrot.slane %v899, 4
        %v906 = vshrl.u32 %v706, 16
        %v908 = vrot.slane %v906, 7
        %v909 = vshll.u32 %v706, 16
        %v911 = vor.u32 %v908, %v909
        %v912 = vrot.slane %v908, 4
        %v914 = vshrl.u32 %v707, 16
        %v916 = vrot.slane %v914, 7
        %v917 = vshll.u32 %v707, 16
        %v919 = vor.u32 %v916, %v917
        %v920 = vsel %vm717, %v912, %v919
        %v921 = vrot.slane %v916, 4
        %v923 = vshrl.u32 %v708, 16
        %v925 = vrot.slane %v923, 7
        %v926 = vshll.u32 %v708, 16
        %v928 = vor.u32 %v925, %v926
        %v929 = vrot.slane %v925, 4
        %v931 = vshrl.u32 %v709, 16
        %v933 = vrot.slane %v931, 7
        %v934 = vshll.u32 %v709, 16
        %v936 = vor.u32 %v933, %v934
        %v937 = vsel %vm717, %v929, %v936
        %v938 = vrot.slane %v933, 4
        %v940 = vshrl.u32 %v710, 16
        %v942 = vrot.slane %v940, 7
        %v943 = vshll.u32 %v710, 16
        %v945 = vor.u32 %v942, %v943
        %v946 = vrot.slane %v942, 4
        %v948 = vshrl.u32 %v711, 16
        %v950 = vrot.slane %v948, 7
        %v951 = vshll.u32 %v711, 16
        %v953 = vor.u32 %v950, %v951
        %v954 = vsel %vm717, %v946, %v953
        %v955 = vrot.slane %v950, 4
        %v957 = vshrl.u32 %v712, 16
        %v959 = vrot.slane %v957, 7
        %v960 = vshll.u32 %v712, 16
        %v962 = vor.u32 %v959, %v960
        %v963 = vrot.slane %v959, 4
        %v965 = vshrl.u32 %v713, 16
        %v967 = vrot.slane %v965, 7
        %v968 = vshll.u32 %v713, 16
        %v970 = vor.u32 %v967, %v968
        %v971 = vsel %vm717, %v963, %v970
        %v972 = vrot.slane %v967, 4
        %v974 = vshrl.u32 %v714, 16
        %v976 = vrot.slane %v974, 7
        %v977 = vshll.u32 %v714, 16
        %v979 = vor.u32 %v976, %v977
        %v980 = vrot.slane %v976, 4
        %v982 = vshrl.u32 %v715, 16
        %v984 = vrot.slane %v982, 7
        %v985 = vshll.u32 %v715, 16
        %v987 = vor.u32 %v984, %v985
        %v988 = vsel %vm717, %v980, %v987
        %v989 = vrot.slane %v984, 4
        %s1038 = scalar_lea.vmem [#allocation2], 12
        %vm1039 = vcmask 257024
        %vm1040 = vmand %vm1039, %vm390
        %v1041 = vld [vmem:[%s1038] sm:$0xf]
        %v1042 = vsel %vm1040, %v724, %v1041
        %1043 = vst [vmem:[%s1038] sm:$0xf] %v1042
        %vm1044 = vcmask 257024
        %1045 = vst.msk [vmem:[%s1038 + $0x4] sm:$0xf] %vm1044, %v733
        %v1046 = vld [vmem:[%s1038 + $0x8] sm:$0x1]
        %v1047 = vsel %vm335, %v734, %v1046
        %1048 = vst [vmem:[%s1038 + $0x8] sm:$0x1] %v1047
        %v1049 = vld [vmem:[%s1038 + $0xc] sm:$0xf]
        %v1050 = vsel %vm1040, %v741, %v1049
        %1051 = vst [vmem:[%s1038 + $0xc] sm:$0xf] %v1050
        %1052 = vst.msk [vmem:[%s1038 + $0x10] sm:$0xf] %vm1044, %v750
        %v1053 = vld [vmem:[%s1038 + $0x14] sm:$0x1]
        %v1054 = vsel %vm335, %v751, %v1053
        %1055 = vst [vmem:[%s1038 + $0x14] sm:$0x1] %v1054
        %v1056 = vld [vmem:[%s1038 + $0x18] sm:$0xf]
        %v1057 = vsel %vm1040, %v758, %v1056
        %1058 = vst [vmem:[%s1038 + $0x18] sm:$0xf] %v1057
        %1059 = vst.msk [vmem:[%s1038 + $0x1c] sm:$0xf] %vm1044, %v767
        %v1060 = vld [vmem:[%s1038 + $0x20] sm:$0x1]
        %v1061 = vsel %vm335, %v768, %v1060
        %1062 = vst [vmem:[%s1038 + $0x20] sm:$0x1] %v1061
        %v1063 = vld [vmem:[%s1038 + $0x24] sm:$0xf]
        %v1064 = vsel %vm1040, %v775, %v1063
        %1065 = vst [vmem:[%s1038 + $0x24] sm:$0xf] %v1064
        %1066 = vst.msk [vmem:[%s1038 + $0x28] sm:$0xf] %vm1044, %v784
        %v1067 = vld [vmem:[%s1038 + $0x2c] sm:$0x1]
        %v1068 = vsel %vm335, %v785, %v1067
        %1069 = vst [vmem:[%s1038 + $0x2c] sm:$0x1] %v1068
        %v1070 = vld [vmem:[%s1038 + $0x30] sm:$0xf]
        %v1071 = vsel %vm1040, %v792, %v1070
        %1072 = vst [vmem:[%s1038 + $0x30] sm:$0xf] %v1071
        %1073 = vst.msk [vmem:[%s1038 + $0x34] sm:$0xf] %vm1044, %v801
        %v1074 = vld [vmem:[%s1038 + $0x38] sm:$0x1]
        %v1075 = vsel %vm335, %v802, %v1074
        %1076 = vst [vmem:[%s1038 + $0x38] sm:$0x1] %v1075
        %v1077 = vld [vmem:[%s1038 + $0x3c] sm:$0xf]
        %v1078 = vsel %vm1040, %v809, %v1077
        %1079 = vst [vmem:[%s1038 + $0x3c] sm:$0xf] %v1078
        %1080 = vst.msk [vmem:[%s1038 + $0x40] sm:$0xf] %vm1044, %v818
        %v1081 = vld [vmem:[%s1038 + $0x44] sm:$0x1]
        %v1082 = vsel %vm335, %v819, %v1081
        %1083 = vst [vmem:[%s1038 + $0x44] sm:$0x1] %v1082
        %v1084 = vld [vmem:[%s1038 + $0x48] sm:$0xf]
        %v1085 = vsel %vm1040, %v826, %v1084
        %1086 = vst [vmem:[%s1038 + $0x48] sm:$0xf] %v1085
        %1087 = vst.msk [vmem:[%s1038 + $0x4c] sm:$0xf] %vm1044, %v835
        %v1088 = vld [vmem:[%s1038 + $0x50] sm:$0x1]
        %v1089 = vsel %vm335, %v836, %v1088
        %1090 = vst [vmem:[%s1038 + $0x50] sm:$0x1] %v1089
        %v1091 = vld [vmem:[%s1038 + $0x54] sm:$0xf]
        %v1092 = vsel %vm1040, %v843, %v1091
        %1093 = vst [vmem:[%s1038 + $0x54] sm:$0xf] %v1092
        %1094 = vst.msk [vmem:[%s1038 + $0x58] sm:$0xf] %vm1044, %v852
        %v1095 = vld [vmem:[%s1038 + $0x5c] sm:$0x1]
        %v1096 = vsel %vm335, %v853, %v1095
        %1097 = vst [vmem:[%s1038 + $0x5c] sm:$0x1] %v1096
        %v1098 = vld [vmem:[%s1038 + $0x60] sm:$0xf]
        %v1099 = vsel %vm1040, %v860, %v1098
        %1100 = vst [vmem:[%s1038 + $0x60] sm:$0xf] %v1099
        %1101 = vst.msk [vmem:[%s1038 + $0x64] sm:$0xf] %vm1044, %v869
        %v1102 = vld [vmem:[%s1038 + $0x68] sm:$0x1]
        %v1103 = vsel %vm335, %v870, %v1102
        %1104 = vst [vmem:[%s1038 + $0x68] sm:$0x1] %v1103
        %v1105 = vld [vmem:[%s1038 + $0x6c] sm:$0xf]
        %v1106 = vsel %vm1040, %v877, %v1105
        %1107 = vst [vmem:[%s1038 + $0x6c] sm:$0xf] %v1106
        %1108 = vst.msk [vmem:[%s1038 + $0x70] sm:$0xf] %vm1044, %v886
        %v1109 = vld [vmem:[%s1038 + $0x74] sm:$0x1]
        %v1110 = vsel %vm335, %v887, %v1109
        %1111 = vst [vmem:[%s1038 + $0x74] sm:$0x1] %v1110
        %v1112 = vld [vmem:[%s1038 + $0x78] sm:$0xf]
        %v1113 = vsel %vm1040, %v894, %v1112
        %1114 = vst [vmem:[%s1038 + $0x78] sm:$0xf] %v1113
        %1115 = vst.msk [vmem:[%s1038 + $0x7c] sm:$0xf] %vm1044, %v903
        %v1116 = vld [vmem:[%s1038 + $0x80] sm:$0x1]
        %v1117 = vsel %vm335, %v904, %v1116
        %1118 = vst [vmem:[%s1038 + $0x80] sm:$0x1] %v1117
        %v1119 = vld [vmem:[%s1038 + $0x84] sm:$0xf]
        %v1120 = vsel %vm1040, %v911, %v1119
        %1121 = vst [vmem:[%s1038 + $0x84] sm:$0xf] %v1120
        %1122 = vst.msk [vmem:[%s1038 + $0x88] sm:$0xf] %vm1044, %v920
        %v1123 = vld [vmem:[%s1038 + $0x8c] sm:$0x1]
        %v1124 = vsel %vm335, %v921, %v1123
        %1125 = vst [vmem:[%s1038 + $0x8c] sm:$0x1] %v1124
        %v1126 = vld [vmem:[%s1038 + $0x90] sm:$0xf]
        %v1127 = vsel %vm1040, %v928, %v1126
        %1128 = vst [vmem:[%s1038 + $0x90] sm:$0xf] %v1127
        %1129 = vst.msk [vmem:[%s1038 + $0x94] sm:$0xf] %vm1044, %v937
        %v1130 = vld [vmem:[%s1038 + $0x98] sm:$0x1]
        %v1131 = vsel %vm335, %v938, %v1130
        %1132 = vst [vmem:[%s1038 + $0x98] sm:$0x1] %v1131
        %v1133 = vld [vmem:[%s1038 + $0x9c] sm:$0xf]
        %v1134 = vsel %vm1040, %v945, %v1133
        %1135 = vst [vmem:[%s1038 + $0x9c] sm:$0xf] %v1134
        %1136 = vst.msk [vmem:[%s1038 + $0xa0] sm:$0xf] %vm1044, %v954
        %v1137 = vld [vmem:[%s1038 + $0xa4] sm:$0x1]
        %v1138 = vsel %vm335, %v955, %v1137
        %1139 = vst [vmem:[%s1038 + $0xa4] sm:$0x1] %v1138
        %v1140 = vld [vmem:[%s1038 + $0xa8] sm:$0xf]
        %v1141 = vsel %vm1040, %v962, %v1140
        %1142 = vst [vmem:[%s1038 + $0xa8] sm:$0xf] %v1141
        %1143 = vst.msk [vmem:[%s1038 + $0xac] sm:$0xf] %vm1044, %v971
        %v1144 = vld [vmem:[%s1038 + $0xb0] sm:$0x1]
        %v1145 = vsel %vm335, %v972, %v1144
        %1146 = vst [vmem:[%s1038 + $0xb0] sm:$0x1] %v1145
        %v1147 = vld [vmem:[%s1038 + $0xb4] sm:$0xf]
        %v1148 = vsel %vm1040, %v979, %v1147
        %1149 = vst [vmem:[%s1038 + $0xb4] sm:$0xf] %v1148
        %1150 = vst.msk [vmem:[%s1038 + $0xb8] sm:$0xf] %vm1044, %v988
        %v1151 = vld [vmem:[%s1038 + $0xbc] sm:$0x1]
        %v1152 = vsel %vm335, %v989, %v1151
        %1153 = vst [vmem:[%s1038 + $0xbc] sm:$0x1] %v1152
        %v1154 = vld [vmem:[#allocation2] sm:$0xf]
        %v1155 = vsel %vm1040, 0, %v1154
        %1156 = vst [vmem:[#allocation2] sm:$0xf] %v1155
        %1157 = vst.msk [vmem:[#allocation2 + $0x4] sm:$0xf] %vm1044, 0
        %v1158 = vld [vmem:[#allocation2 + $0x8] sm:$0x1]
        %v1159 = vsel %vm335, 0, %v1158
        %1160 = vst [vmem:[#allocation2 + $0x8] sm:$0x1] %v1159
        %s1161 = scalar_lea.vmem [#allocation2], 204
        %v1162 = vld [vmem:[%s1161] sm:$0xf]
        %v1163 = vsel %vm1040, 0, %v1162
        %1164 = vst [vmem:[%s1161] sm:$0xf] %v1163
        %1165 = vst.msk [vmem:[%s1161 + $0x4] sm:$0xf] %vm1044, 0
        %v1166 = vld [vmem:[%s1161 + $0x8] sm:$0x1]
        %v1167 = vsel %vm335, 0, %v1166
        %1168 = vst [vmem:[%s1161 + $0x8] sm:$0x1] %v1167
        %v1169 = vld [vmem:[#allocation2] sm:$0xf]
        %v1170 = vld [vmem:[#allocation2 + $0x4] sm:$0xf]
        %v1171 = vld [vmem:[#allocation2 + $0x8] sm:$0x1]
        %v1172 = vld [vmem:[#allocation2 + $0xc] sm:$0xf]
        %v1173 = vld [vmem:[#allocation2 + $0x10] sm:$0xf]
        %v1174 = vld [vmem:[#allocation2 + $0x14] sm:$0x1]
        %v1175 = vld [vmem:[#allocation2 + $0x18] sm:$0xf]
        %v1176 = vld [vmem:[#allocation2 + $0x1c] sm:$0xf]
        %v1177 = vld [vmem:[#allocation2 + $0x20] sm:$0x1]
        %v1178 = vld [vmem:[#allocation2 + $0x24] sm:$0xf]
        %v1179 = vld [vmem:[#allocation2 + $0x28] sm:$0xf]
        %v1180 = vld [vmem:[#allocation2 + $0x2c] sm:$0x1]
        %v1181 = vld [vmem:[#allocation2 + $0x30] sm:$0xf]
        %v1182 = vld [vmem:[#allocation2 + $0x34] sm:$0xf]
        %v1183 = vld [vmem:[#allocation2 + $0x38] sm:$0x1]
        %v1184 = vld [vmem:[#allocation2 + $0x3c] sm:$0xf]
        %v1185 = vld [vmem:[#allocation2 + $0x40] sm:$0xf]
        %v1186 = vld [vmem:[#allocation2 + $0x44] sm:$0x1]
        %v1187 = vld [vmem:[#allocation2 + $0x48] sm:$0xf]
        %v1188 = vld [vmem:[#allocation2 + $0x4c] sm:$0xf]
        %v1189 = vld [vmem:[#allocation2 + $0x50] sm:$0x1]
        %v1190 = vld [vmem:[#allocation2 + $0x54] sm:$0xf]
        %v1191 = vld [vmem:[#allocation2 + $0x58] sm:$0xf]
        %v1192 = vld [vmem:[#allocation2 + $0x5c] sm:$0x1]
        %v1193 = vld [vmem:[#allocation2 + $0x60] sm:$0xf]
        %v1194 = vld [vmem:[#allocation2 + $0x64] sm:$0xf]
        %v1195 = vld [vmem:[#allocation2 + $0x68] sm:$0x1]
        %v1196 = vld [vmem:[#allocation2 + $0x6c] sm:$0xf]
        %v1197 = vld [vmem:[#allocation2 + $0x70] sm:$0xf]
        %v1198 = vld [vmem:[#allocation2 + $0x74] sm:$0x1]
        %v1199 = vld [vmem:[#allocation2 + $0x78] sm:$0xf]
        %v1200 = vld [vmem:[#allocation2 + $0x7c] sm:$0xf]
        %v1201 = vld [vmem:[#allocation2 + $0x80] sm:$0x1]
        %v1202 = vld [vmem:[#allocation2 + $0x84] sm:$0xf]
        %v1203 = vld [vmem:[#allocation2 + $0x88] sm:$0xf]
        %v1204 = vld [vmem:[#allocation2 + $0x8c] sm:$0x1]
        %v1205 = vld [vmem:[#allocation2 + $0x90] sm:$0xf]
        %v1206 = vld [vmem:[#allocation2 + $0x94] sm:$0xf]
        %v1207 = vld [vmem:[#allocation2 + $0x98] sm:$0x1]
        %v1208 = vld [vmem:[#allocation2 + $0x9c] sm:$0xf]
        %v1209 = vld [vmem:[#allocation2 + $0xa0] sm:$0xf]
        %v1210 = vld [vmem:[#allocation2 + $0xa4] sm:$0x1]
        %v1211 = vld [vmem:[#allocation2 + $0xa8] sm:$0xf]
        %v1212 = vld [vmem:[#allocation2 + $0xac] sm:$0xf]
        %v1213 = vld [vmem:[#allocation2 + $0xb0] sm:$0x1]
        %v1214 = vld [vmem:[#allocation2 + $0xb4] sm:$0xf]
        %v1215 = vld [vmem:[#allocation2 + $0xb8] sm:$0xf]
        %v1216 = vld [vmem:[#allocation2 + $0xbc] sm:$0x1]
        %1217 = vst.msk [vmem:[#allocation3] sm:$0xf] %vm1044, %v1169
        %1218 = vst.msk [vmem:[#allocation3 + $0xc] sm:$0xf] %vm1044, %v1170
        %1219 = vst.msk [vmem:[#allocation3 + $0x18] sm:$0xf] %vm1044, %v1172
        %1220 = vst.msk [vmem:[#allocation3 + $0x24] sm:$0xf] %vm1044, %v1173
        %1221 = vst.msk [vmem:[#allocation3 + $0x30] sm:$0xf] %vm1044, %v1175
        %1222 = vst.msk [vmem:[#allocation3 + $0x3c] sm:$0xf] %vm1044, %v1176
        %1223 = vst.msk [vmem:[#allocation3 + $0x48] sm:$0xf] %vm1044, %v1178
        %1224 = vst.msk [vmem:[#allocation3 + $0x54] sm:$0xf] %vm1044, %v1179
        %1225 = vst.msk [vmem:[#allocation3 + $0x60] sm:$0xf] %vm1044, %v1181
        %1226 = vst.msk [vmem:[#allocation3 + $0x6c] sm:$0xf] %vm1044, %v1182
        %1227 = vst.msk [vmem:[#allocation3 + $0x78] sm:$0xf] %vm1044, %v1184
        %1228 = vst.msk [vmem:[#allocation3 + $0x84] sm:$0xf] %vm1044, %v1185
        %1229 = vst.msk [vmem:[#allocation3 + $0x90] sm:$0xf] %vm1044, %v1187
        %1230 = vst.msk [vmem:[#allocation3 + $0x9c] sm:$0xf] %vm1044, %v1188
        %1231 = vst.msk [vmem:[#allocation3 + $0xa8] sm:$0xf] %vm1044, %v1190
        %1232 = vst.msk [vmem:[#allocation3 + $0xb4] sm:$0xf] %vm1044, %v1191
        %1233 = vst.msk [vmem:[#allocation3 + $0xc0] sm:$0xf] %vm1044, %v1193
        %1234 = vst.msk [vmem:[#allocation3 + $0xcc] sm:$0xf] %vm1044, %v1194
        %1235 = vst.msk [vmem:[#allocation3 + $0xd8] sm:$0xf] %vm1044, %v1196
        %1236 = vst.msk [vmem:[#allocation3 + $0xe4] sm:$0xf] %vm1044, %v1197
        %1237 = vst.msk [vmem:[#allocation3 + $0xf0] sm:$0xf] %vm1044, %v1199
        %1238 = vst.msk [vmem:[#allocation3 + $0xfc] sm:$0xf] %vm1044, %v1200
        %1239 = vst.msk [vmem:[#allocation3 + $0x108] sm:$0xf] %vm1044, %v1202
        %1240 = vst.msk [vmem:[#allocation3 + $0x114] sm:$0xf] %vm1044, %v1203
        %1241 = vst.msk [vmem:[#allocation3 + $0x120] sm:$0xf] %vm1044, %v1205
        %1242 = vst.msk [vmem:[#allocation3 + $0x12c] sm:$0xf] %vm1044, %v1206
        %1243 = vst.msk [vmem:[#allocation3 + $0x138] sm:$0xf] %vm1044, %v1208
        %1244 = vst.msk [vmem:[#allocation3 + $0x144] sm:$0xf] %vm1044, %v1209
        %1245 = vst.msk [vmem:[#allocation3 + $0x150] sm:$0xf] %vm1044, %v1211
        %1246 = vst.msk [vmem:[#allocation3 + $0x15c] sm:$0xf] %vm1044, %v1212
        %1247 = vst.msk [vmem:[#allocation3 + $0x168] sm:$0xf] %vm1044, %v1214
        %1248 = vst.msk [vmem:[#allocation3 + $0x174] sm:$0xf] %vm1044, %v1215
        %vm1249 = vsmask.f32 3328
        %vm1250 = vsmask.f32 7440
        %vm1251 = vmor %vm1249, %vm1250
        %v1253 = vshrl.u32 %v1169, 16
        %v1255 = vrot.slane %v1253, 4
        %v1256 = vshll.u32 %v1169, 16
        %v1258 = vrot.slane %v1256, 5
        %v1259 = vor.u32 %v1255, %v1258
        %v1260 = vrot.slane %v1259, 4
        %v1262 = vshll.u32 %v1170, 16
        %v1264 = vrot.slane %v1262, 5
        %v1265 = vsel %vm1251, %v1260, %v1264
        %v1266 = vshrl.u32 %v1170, 16
        %v1268 = vrot.slane %v1266, 4
        %v1269 = vor.u32 %v1268, %v1264
        %v1270 = vrot.slane %v1269, 4
        %v1272 = vshll.u32 %v1171, 16
        %v1274 = vrot.slane %v1272, 5
        %v1275 = vsel %vm1251, %v1270, %v1274
        %v1277 = vshrl.u32 %v1172, 16
        %v1279 = vrot.slane %v1277, 4
        %v1280 = vshll.u32 %v1172, 16
        %v1282 = vrot.slane %v1280, 5
        %v1283 = vor.u32 %v1279, %v1282
        %v1284 = vrot.slane %v1283, 4
        %v1286 = vshll.u32 %v1173, 16
        %v1288 = vrot.slane %v1286, 5
        %v1289 = vsel %vm1251, %v1284, %v1288
        %v1290 = vshrl.u32 %v1173, 16
        %v1292 = vrot.slane %v1290, 4
        %v1293 = vor.u32 %v1292, %v1288
        %v1294 = vrot.slane %v1293, 4
        %v1296 = vshll.u32 %v1174, 16
        %v1298 = vrot.slane %v1296, 5
        %v1299 = vsel %vm1251, %v1294, %v1298
        %v1301 = vshrl.u32 %v1175, 16
        %v1303 = vrot.slane %v1301, 4
        %v1304 = vshll.u32 %v1175, 16
        %v1306 = vrot.slane %v1304, 5
        %v1307 = vor.u32 %v1303, %v1306
        %v1308 = vrot.slane %v1307, 4
        %v1310 = vshll.u32 %v1176, 16
        %v1312 = vrot.slane %v1310, 5
        %v1313 = vsel %vm1251, %v1308, %v1312
        %v1314 = vshrl.u32 %v1176, 16
        %v1316 = vrot.slane %v1314, 4
        %v1317 = vor.u32 %v1316, %v1312
        %v1318 = vrot.slane %v1317, 4
        %v1320 = vshll.u32 %v1177, 16
        %v1322 = vrot.slane %v1320, 5
        %v1323 = vsel %vm1251, %v1318, %v1322
        %v1325 = vshrl.u32 %v1178, 16
        %v1327 = vrot.slane %v1325, 4
        %v1328 = vshll.u32 %v1178, 16
        %v1330 = vrot.slane %v1328, 5
        %v1331 = vor.u32 %v1327, %v1330
        %v1332 = vrot.slane %v1331, 4
        %v1334 = vshll.u32 %v1179, 16
        %v1336 = vrot.slane %v1334, 5
        %v1337 = vsel %vm1251, %v1332, %v1336
        %v1338 = vshrl.u32 %v1179, 16
        %v1340 = vrot.slane %v1338, 4
        %v1341 = vor.u32 %v1340, %v1336
        %v1342 = vrot.slane %v1341, 4
        %v1344 = vshll.u32 %v1180, 16
        %v1346 = vrot.slane %v1344, 5
        %v1347 = vsel %vm1251, %v1342, %v1346
        %v1349 = vshrl.u32 %v1181, 16
        %v1351 = vrot.slane %v1349, 4
        %v1352 = vshll.u32 %v1181, 16
        %v1354 = vrot.slane %v1352, 5
        %v1355 = vor.u32 %v1351, %v1354
        %v1356 = vrot.slane %v1355, 4
        %v1358 = vshll.u32 %v1182, 16
        %v1360 = vrot.slane %v1358, 5
        %v1361 = vsel %vm1251, %v1356, %v1360
        %v1362 = vshrl.u32 %v1182, 16
        %v1364 = vrot.slane %v1362, 4
        %v1365 = vor.u32 %v1364, %v1360
        %v1366 = vrot.slane %v1365, 4
        %v1368 = vshll.u32 %v1183, 16
        %v1370 = vrot.slane %v1368, 5
        %v1371 = vsel %vm1251, %v1366, %v1370
        %v1373 = vshrl.u32 %v1184, 16
        %v1375 = vrot.slane %v1373, 4
        %v1376 = vshll.u32 %v1184, 16
        %v1378 = vrot.slane %v1376, 5
        %v1379 = vor.u32 %v1375, %v1378
        %v1380 = vrot.slane %v1379, 4
        %v1382 = vshll.u32 %v1185, 16
        %v1384 = vrot.slane %v1382, 5
        %v1385 = vsel %vm1251, %v1380, %v1384
        %v1386 = vshrl.u32 %v1185, 16
        %v1388 = vrot.slane %v1386, 4
        %v1389 = vor.u32 %v1388, %v1384
        %v1390 = vrot.slane %v1389, 4
        %v1392 = vshll.u32 %v1186, 16
        %v1394 = vrot.slane %v1392, 5
        %v1395 = vsel %vm1251, %v1390, %v1394
        %v1397 = vshrl.u32 %v1187, 16
        %v1399 = vrot.slane %v1397, 4
        %v1400 = vshll.u32 %v1187, 16
        %v1402 = vrot.slane %v1400, 5
        %v1403 = vor.u32 %v1399, %v1402
        %v1404 = vrot.slane %v1403, 4
        %v1406 = vshll.u32 %v1188, 16
        %v1408 = vrot.slane %v1406, 5
        %v1409 = vsel %vm1251, %v1404, %v1408
        %v1410 = vshrl.u32 %v1188, 16
        %v1412 = vrot.slane %v1410, 4
        %v1413 = vor.u32 %v1412, %v1408
        %v1414 = vrot.slane %v1413, 4
        %v1416 = vshll.u32 %v1189, 16
        %v1418 = vrot.slane %v1416, 5
        %v1419 = vsel %vm1251, %v1414, %v1418
        %v1421 = vshrl.u32 %v1190, 16
        %v1423 = vrot.slane %v1421, 4
        %v1424 = vshll.u32 %v1190, 16
        %v1426 = vrot.slane %v1424, 5
        %v1427 = vor.u32 %v1423, %v1426
        %v1428 = vrot.slane %v1427, 4
        %v1430 = vshll.u32 %v1191, 16
        %v1432 = vrot.slane %v1430, 5
        %v1433 = vsel %vm1251, %v1428, %v1432
        %v1434 = vshrl.u32 %v1191, 16
        %v1436 = vrot.slane %v1434, 4
        %v1437 = vor.u32 %v1436, %v1432
        %v1438 = vrot.slane %v1437, 4
        %v1440 = vshll.u32 %v1192, 16
        %v1442 = vrot.slane %v1440, 5
        %v1443 = vsel %vm1251, %v1438, %v1442
        %v1445 = vshrl.u32 %v1193, 16
        %v1447 = vrot.slane %v1445, 4
        %v1448 = vshll.u32 %v1193, 16
        %v1450 = vrot.slane %v1448, 5
        %v1451 = vor.u32 %v1447, %v1450
        %v1452 = vrot.slane %v1451, 4
        %v1454 = vshll.u32 %v1194, 16
        %v1456 = vrot.slane %v1454, 5
        %v1457 = vsel %vm1251, %v1452, %v1456
        %v1458 = vshrl.u32 %v1194, 16
        %v1460 = vrot.slane %v1458, 4
        %v1461 = vor.u32 %v1460, %v1456
        %v1462 = vrot.slane %v1461, 4
        %v1464 = vshll.u32 %v1195, 16
        %v1466 = vrot.slane %v1464, 5
        %v1467 = vsel %vm1251, %v1462, %v1466
        %v1469 = vshrl.u32 %v1196, 16
        %v1471 = vrot.slane %v1469, 4
        %v1472 = vshll.u32 %v1196, 16
        %v1474 = vrot.slane %v1472, 5
        %v1475 = vor.u32 %v1471, %v1474
        %v1476 = vrot.slane %v1475, 4
        %v1478 = vshll.u32 %v1197, 16
        %v1480 = vrot.slane %v1478, 5
        %v1481 = vsel %vm1251, %v1476, %v1480
        %v1482 = vshrl.u32 %v1197, 16
        %v1484 = vrot.slane %v1482, 4
        %v1485 = vor.u32 %v1484, %v1480
        %v1486 = vrot.slane %v1485, 4
        %v1488 = vshll.u32 %v1198, 16
        %v1490 = vrot.slane %v1488, 5
        %v1491 = vsel %vm1251, %v1486, %v1490
        %v1493 = vshrl.u32 %v1199, 16
        %v1495 = vrot.slane %v1493, 4
        %v1496 = vshll.u32 %v1199, 16
        %v1498 = vrot.slane %v1496, 5
        %v1499 = vor.u32 %v1495, %v1498
        %v1500 = vrot.slane %v1499, 4
        %v1502 = vshll.u32 %v1200, 16
        %v1504 = vrot.slane %v1502, 5
        %v1505 = vsel %vm1251, %v1500, %v1504
        %v1506 = vshrl.u32 %v1200, 16
        %v1508 = vrot.slane %v1506, 4
        %v1509 = vor.u32 %v1508, %v1504
        %v1510 = vrot.slane %v1509, 4
        %v1512 = vshll.u32 %v1201, 16
        %v1514 = vrot.slane %v1512, 5
        %v1515 = vsel %vm1251, %v1510, %v1514
        %v1517 = vshrl.u32 %v1202, 16
        %v1519 = vrot.slane %v1517, 4
        %v1520 = vshll.u32 %v1202, 16
        %v1522 = vrot.slane %v1520, 5
        %v1523 = vor.u32 %v1519, %v1522
        %v1524 = vrot.slane %v1523, 4
        %v1526 = vshll.u32 %v1203, 16
        %v1528 = vrot.slane %v1526, 5
        %v1529 = vsel %vm1251, %v1524, %v1528
        %v1530 = vshrl.u32 %v1203, 16
        %v1532 = vrot.slane %v1530, 4
        %v1533 = vor.u32 %v1532, %v1528
        %v1534 = vrot.slane %v1533, 4
        %v1536 = vshll.u32 %v1204, 16
        %v1538 = vrot.slane %v1536, 5
        %v1539 = vsel %vm1251, %v1534, %v1538
        %v1541 = vshrl.u32 %v1205, 16
        %v1543 = vrot.slane %v1541, 4
        %v1544 = vshll.u32 %v1205, 16
        %v1546 = vrot.slane %v1544, 5
        %v1547 = vor.u32 %v1543, %v1546
        %v1548 = vrot.slane %v1547, 4
        %v1550 = vshll.u32 %v1206, 16
        %v1552 = vrot.slane %v1550, 5
        %v1553 = vsel %vm1251, %v1548, %v1552
        %v1554 = vshrl.u32 %v1206, 16
        %v1556 = vrot.slane %v1554, 4
        %v1557 = vor.u32 %v1556, %v1552
        %v1558 = vrot.slane %v1557, 4
        %v1560 = vshll.u32 %v1207, 16
        %v1562 = vrot.slane %v1560, 5
        %v1563 = vsel %vm1251, %v1558, %v1562
        %v1565 = vshrl.u32 %v1208, 16
        %v1567 = vrot.slane %v1565, 4
        %v1568 = vshll.u32 %v1208, 16
        %v1570 = vrot.slane %v1568, 5
        %v1571 = vor.u32 %v1567, %v1570
        %v1572 = vrot.slane %v1571, 4
        %v1574 = vshll.u32 %v1209, 16
        %v1576 = vrot.slane %v1574, 5
        %v1577 = vsel %vm1251, %v1572, %v1576
        %v1578 = vshrl.u32 %v1209, 16
        %v1580 = vrot.slane %v1578, 4
        %v1581 = vor.u32 %v1580, %v1576
        %v1582 = vrot.slane %v1581, 4
        %v1584 = vshll.u32 %v1210, 16
        %v1586 = vrot.slane %v1584, 5
        %v1587 = vsel %vm1251, %v1582, %v1586
        %v1589 = vshrl.u32 %v1211, 16
        %v1591 = vrot.slane %v1589, 4
        %v1592 = vshll.u32 %v1211, 16
        %v1594 = vrot.slane %v1592, 5
        %v1595 = vor.u32 %v1591, %v1594
        %v1596 = vrot.slane %v1595, 4
        %v1598 = vshll.u32 %v1212, 16
        %v1600 = vrot.slane %v1598, 5
        %v1601 = vsel %vm1251, %v1596, %v1600
        %v1602 = vshrl.u32 %v1212, 16
        %v1604 = vrot.slane %v1602, 4
        %v1605 = vor.u32 %v1604, %v1600
        %v1606 = vrot.slane %v1605, 4
        %v1608 = vshll.u32 %v1213, 16
        %v1610 = vrot.slane %v1608, 5
        %v1611 = vsel %vm1251, %v1606, %v1610
        %v1613 = vshrl.u32 %v1214, 16
        %v1615 = vrot.slane %v1613, 4
        %v1616 = vshll.u32 %v1214, 16
        %v1618 = vrot.slane %v1616, 5
        %v1619 = vor.u32 %v1615, %v1618
        %v1620 = vrot.slane %v1619, 4
        %v1622 = vshll.u32 %v1215, 16
        %v1624 = vrot.slane %v1622, 5
        %v1625 = vsel %vm1251, %v1620, %v1624
        %v1626 = vshrl.u32 %v1215, 16
        %v1628 = vrot.slane %v1626, 4
        %v1629 = vor.u32 %v1628, %v1624
        %v1630 = vrot.slane %v1629, 4
        %v1632 = vshll.u32 %v1216, 16
        %v1634 = vrot.slane %v1632, 5
        %v1635 = vsel %vm1251, %v1630, %v1634
        %1636 = vrot.lane.b32.xlu0 %v1265, 32
        %v1637 = vpop.permute.xlu0 %1636
        %1638 = vrot.lane.b32.xlu0 %v1275, 32
        %v1639 = vpop.permute.xlu0 %1638
        %1640 = vrot.lane.b32.xlu0 %v1289, 32
        %v1641 = vpop.permute.xlu0 %1640
        %1642 = vrot.lane.b32.xlu0 %v1299, 32
        %v1643 = vpop.permute.xlu0 %1642
        %1644 = vrot.lane.b32.xlu0 %v1313, 32
        %v1645 = vpop.permute.xlu0 %1644
        %1646 = vrot.lane.b32.xlu0 %v1323, 32
        %v1647 = vpop.permute.xlu0 %1646
        %1648 = vrot.lane.b32.xlu0 %v1337, 32
        %v1649 = vpop.permute.xlu0 %1648
        %1650 = vrot.lane.b32.xlu0 %v1347, 32
        %v1651 = vpop.permute.xlu0 %1650
        %1652 = vrot.lane.b32.xlu0 %v1361, 32
        %v1653 = vpop.permute.xlu0 %1652
        %1654 = vrot.lane.b32.xlu0 %v1371, 32
        %v1655 = vpop.permute.xlu0 %1654
        %1656 = vrot.lane.b32.xlu0 %v1385, 32
        %v1657 = vpop.permute.xlu0 %1656
        %1658 = vrot.lane.b32.xlu0 %v1395, 32
        %v1659 = vpop.permute.xlu0 %1658
        %1660 = vrot.lane.b32.xlu0 %v1409, 32
        %v1661 = vpop.permute.xlu0 %1660
        %1662 = vrot.lane.b32.xlu0 %v1419, 32
        %v1663 = vpop.permute.xlu0 %1662
        %1664 = vrot.lane.b32.xlu0 %v1433, 32
        %v1665 = vpop.permute.xlu0 %1664
        %1666 = vrot.lane.b32.xlu0 %v1443, 32
        %v1667 = vpop.permute.xlu0 %1666
        %1668 = vrot.lane.b32.xlu0 %v1457, 32
        %v1669 = vpop.permute.xlu0 %1668
        %1670 = vrot.lane.b32.xlu0 %v1467, 32
        %v1671 = vpop.permute.xlu0 %1670
        %1672 = vrot.lane.b32.xlu0 %v1481, 32
        %v1673 = vpop.permute.xlu0 %1672
        %1674 = vrot.lane.b32.xlu0 %v1491, 32
        %v1675 = vpop.permute.xlu0 %1674
        %1676 = vrot.lane.b32.xlu0 %v1505, 32
        %v1677 = vpop.permute.xlu0 %1676
        %1678 = vrot.lane.b32.xlu0 %v1515, 32
        %v1679 = vpop.permute.xlu0 %1678
        %1680 = vrot.lane.b32.xlu0 %v1529, 32
        %v1681 = vpop.permute.xlu0 %1680
        %1682 = vrot.lane.b32.xlu0 %v1539, 32
        %v1683 = vpop.permute.xlu0 %1682
        %1684 = vrot.lane.b32.xlu0 %v1553, 32
        %v1685 = vpop.permute.xlu0 %1684
        %1686 = vrot.lane.b32.xlu0 %v1563, 32
        %v1687 = vpop.permute.xlu0 %1686
        %1688 = vrot.lane.b32.xlu0 %v1577, 32
        %v1689 = vpop.permute.xlu0 %1688
        %1690 = vrot.lane.b32.xlu0 %v1587, 32
        %v1691 = vpop.permute.xlu0 %1690
        %1692 = vrot.lane.b32.xlu0 %v1601, 32
        %v1693 = vpop.permute.xlu0 %1692
        %1694 = vrot.lane.b32.xlu0 %v1611, 32
        %v1695 = vpop.permute.xlu0 %1694
        %1696 = vrot.lane.b32.xlu0 %v1625, 32
        %v1697 = vpop.permute.xlu0 %1696
        %1698 = vrot.lane.b32.xlu0 %v1635, 32
        %v1699 = vpop.permute.xlu0 %1698
        %vm1732 = vcmask 519424
        %1733 = vst.msk [vmem:[#allocation3] sm:$0xf] %vm1732, %v1637
        %1734 = vst.msk [vmem:[#allocation3 + $0xc] sm:$0xf] %vm1732, %v1639
        %1735 = vst.msk [vmem:[#allocation3 + $0x18] sm:$0xf] %vm1732, %v1641
        %1736 = vst.msk [vmem:[#allocation3 + $0x24] sm:$0xf] %vm1732, %v1643
        %1737 = vst.msk [vmem:[#allocation3 + $0x30] sm:$0xf] %vm1732, %v1645
        %1738 = vst.msk [vmem:[#allocation3 + $0x3c] sm:$0xf] %vm1732, %v1647
        %1739 = vst.msk [vmem:[#allocation3 + $0x48] sm:$0xf] %vm1732, %v1649
        %1740 = vst.msk [vmem:[#allocation3 + $0x54] sm:$0xf] %vm1732, %v1651
        %1741 = vst.msk [vmem:[#allocation3 + $0x60] sm:$0xf] %vm1732, %v1653
        %1742 = vst.msk [vmem:[#allocation3 + $0x6c] sm:$0xf] %vm1732, %v1655
        %1743 = vst.msk [vmem:[#allocation3 + $0x78] sm:$0xf] %vm1732, %v1657
        %1744 = vst.msk [vmem:[#allocation3 + $0x84] sm:$0xf] %vm1732, %v1659
        %1745 = vst.msk [vmem:[#allocation3 + $0x90] sm:$0xf] %vm1732, %v1661
        %1746 = vst.msk [vmem:[#allocation3 + $0x9c] sm:$0xf] %vm1732, %v1663
        %1747 = vst.msk [vmem:[#allocation3 + $0xa8] sm:$0xf] %vm1732, %v1665
        %1748 = vst.msk [vmem:[#allocation3 + $0xb4] sm:$0xf] %vm1732, %v1667
        %1749 = vst.msk [vmem:[#allocation3 + $0xc0] sm:$0xf] %vm1732, %v1669
        %1750 = vst.msk [vmem:[#allocation3 + $0xcc] sm:$0xf] %vm1732, %v1671
        %1751 = vst.msk [vmem:[#allocation3 + $0xd8] sm:$0xf] %vm1732, %v1673
        %1752 = vst.msk [vmem:[#allocation3 + $0xe4] sm:$0xf] %vm1732, %v1675
        %1753 = vst.msk [vmem:[#allocation3 + $0xf0] sm:$0xf] %vm1732, %v1677
        %1754 = vst.msk [vmem:[#allocation3 + $0xfc] sm:$0xf] %vm1732, %v1679
        %1755 = vst.msk [vmem:[#allocation3 + $0x108] sm:$0xf] %vm1732, %v1681
        %1756 = vst.msk [vmem:[#allocation3 + $0x114] sm:$0xf] %vm1732, %v1683
        %1757 = vst.msk [vmem:[#allocation3 + $0x120] sm:$0xf] %vm1732, %v1685
        %1758 = vst.msk [vmem:[#allocation3 + $0x12c] sm:$0xf] %vm1732, %v1687
        %1759 = vst.msk [vmem:[#allocation3 + $0x138] sm:$0xf] %vm1732, %v1689
        %1760 = vst.msk [vmem:[#allocation3 + $0x144] sm:$0xf] %vm1732, %v1691
        %1761 = vst.msk [vmem:[#allocation3 + $0x150] sm:$0xf] %vm1732, %v1693
        %1762 = vst.msk [vmem:[#allocation3 + $0x15c] sm:$0xf] %vm1732, %v1695
        %1763 = vst.msk [vmem:[#allocation3 + $0x168] sm:$0xf] %vm1732, %v1697
        %1764 = vst.msk [vmem:[#allocation3 + $0x174] sm:$0xf] %vm1732, %v1699
        %vm1813 = vcmask 1042432
        %vm1814 = vcmask 1046532
        %vm1815 = vmor %vm1813, %vm1814
        %v1816 = vrot.slane %v1169, 5
        %v1817 = vrot.slane %v1816, 4
        %v1818 = vrot.slane %v1170, 5
        %v1819 = vsel %vm1815, %v1817, %v1818
        %v1820 = vrot.slane %v1818, 4
        %v1821 = vrot.slane %v1171, 5
        %v1822 = vsel %vm1815, %v1820, %v1821
        %v1823 = vrot.slane %v1172, 5
        %v1824 = vrot.slane %v1823, 4
        %v1825 = vrot.slane %v1173, 5
        %v1826 = vsel %vm1815, %v1824, %v1825
        %v1827 = vrot.slane %v1825, 4
        %v1828 = vrot.slane %v1174, 5
        %v1829 = vsel %vm1815, %v1827, %v1828
        %v1830 = vrot.slane %v1175, 5
        %v1831 = vrot.slane %v1830, 4
        %v1832 = vrot.slane %v1176, 5
        %v1833 = vsel %vm1815, %v1831, %v1832
        %v1834 = vrot.slane %v1832, 4
        %v1835 = vrot.slane %v1177, 5
        %v1836 = vsel %vm1815, %v1834, %v1835
        %v1837 = vrot.slane %v1178, 5
        %v1838 = vrot.slane %v1837, 4
        %v1839 = vrot.slane %v1179, 5
        %v1840 = vsel %vm1815, %v1838, %v1839
        %v1841 = vrot.slane %v1839, 4
        %v1842 = vrot.slane %v1180, 5
        %v1843 = vsel %vm1815, %v1841, %v1842
        %v1844 = vrot.slane %v1181, 5
        %v1845 = vrot.slane %v1844, 4
        %v1846 = vrot.slane %v1182, 5
        %v1847 = vsel %vm1815, %v1845, %v1846
        %v1848 = vrot.slane %v1846, 4
        %v1849 = vrot.slane %v1183, 5
        %v1850 = vsel %vm1815, %v1848, %v1849
        %v1851 = vrot.slane %v1184, 5
        %v1852 = vrot.slane %v1851, 4
        %v1853 = vrot.slane %v1185, 5
        %v1854 = vsel %vm1815, %v1852, %v1853
        %v1855 = vrot.slane %v1853, 4
        %v1856 = vrot.slane %v1186, 5
        %v1857 = vsel %vm1815, %v1855, %v1856
        %v1858 = vrot.slane %v1187, 5
        %v1859 = vrot.slane %v1858, 4
        %v1860 = vrot.slane %v1188, 5
        %v1861 = vsel %vm1815, %v1859, %v1860
        %v1862 = vrot.slane %v1860, 4
        %v1863 = vrot.slane %v1189, 5
        %v1864 = vsel %vm1815, %v1862, %v1863
        %v1865 = vrot.slane %v1190, 5
        %v1866 = vrot.slane %v1865, 4
        %v1867 = vrot.slane %v1191, 5
        %v1868 = vsel %vm1815, %v1866, %v1867
        %v1869 = vrot.slane %v1867, 4
        %v1870 = vrot.slane %v1192, 5
        %v1871 = vsel %vm1815, %v1869, %v1870
        %v1872 = vrot.slane %v1193, 5
        %v1873 = vrot.slane %v1872, 4
        %v1874 = vrot.slane %v1194, 5
        %v1875 = vsel %vm1815, %v1873, %v1874
        %v1876 = vrot.slane %v1874, 4
        %v1877 = vrot.slane %v1195, 5
        %v1878 = vsel %vm1815, %v1876, %v1877
        %v1879 = vrot.slane %v1196, 5
        %v1880 = vrot.slane %v1879, 4
        %v1881 = vrot.slane %v1197, 5
        %v1882 = vsel %vm1815, %v1880, %v1881
        %v1883 = vrot.slane %v1881, 4
        %v1884 = vrot.slane %v1198, 5
        %v1885 = vsel %vm1815, %v1883, %v1884
        %v1886 = vrot.slane %v1199, 5
        %v1887 = vrot.slane %v1886, 4
        %v1888 = vrot.slane %v1200, 5
        %v1889 = vsel %vm1815, %v1887, %v1888
        %v1890 = vrot.slane %v1888, 4
        %v1891 = vrot.slane %v1201, 5
        %v1892 = vsel %vm1815, %v1890, %v1891
        %v1893 = vrot.slane %v1202, 5
        %v1894 = vrot.slane %v1893, 4
        %v1895 = vrot.slane %v1203, 5
        %v1896 = vsel %vm1815, %v1894, %v1895
        %v1897 = vrot.slane %v1895, 4
        %v1898 = vrot.slane %v1204, 5
        %v1899 = vsel %vm1815, %v1897, %v1898
        %v1900 = vrot.slane %v1205, 5
        %v1901 = vrot.slane %v1900, 4
        %v1902 = vrot.slane %v1206, 5
        %v1903 = vsel %vm1815, %v1901, %v1902
        %v1904 = vrot.slane %v1902, 4
        %v1905 = vrot.slane %v1207, 5
        %v1906 = vsel %vm1815, %v1904, %v1905
        %v1907 = vrot.slane %v1208, 5
        %v1908 = vrot.slane %v1907, 4
        %v1909 = vrot.slane %v1209, 5
        %v1910 = vsel %vm1815, %v1908, %v1909
        %v1911 = vrot.slane %v1909, 4
        %v1912 = vrot.slane %v1210, 5
        %v1913 = vsel %vm1815, %v1911, %v1912
        %v1914 = vrot.slane %v1211, 5
        %v1915 = vrot.slane %v1914, 4
        %v1916 = vrot.slane %v1212, 5
        %v1917 = vsel %vm1815, %v1915, %v1916
        %v1918 = vrot.slane %v1916, 4
        %v1919 = vrot.slane %v1213, 5
        %v1920 = vsel %vm1815, %v1918, %v1919
        %v1921 = vrot.slane %v1214, 5
        %v1922 = vrot.slane %v1921, 4
        %v1923 = vrot.slane %v1215, 5
        %v1924 = vsel %vm1815, %v1922, %v1923
        %v1925 = vrot.slane %v1923, 4
        %v1926 = vrot.slane %v1216, 5
        %v1927 = vsel %vm1815, %v1925, %v1926
        %1928 = vrot.lane.b32.xlu0 %v1819, 64
        %v1929 = vpop.permute.xlu0 %1928
        %1930 = vrot.lane.b32.xlu0 %v1822, 64
        %v1931 = vpop.permute.xlu0 %1930
        %1932 = vrot.lane.b32.xlu0 %v1826, 64
        %v1933 = vpop.permute.xlu0 %1932
        %1934 = vrot.lane.b32.xlu0 %v1829, 64
        %v1935 = vpop.permute.xlu0 %1934
        %1936 = vrot.lane.b32.xlu0 %v1833, 64
        %v1937 = vpop.permute.xlu0 %1936
        %1938 = vrot.lane.b32.xlu0 %v1836, 64
        %v1939 = vpop.permute.xlu0 %1938
        %1940 = vrot.lane.b32.xlu0 %v1840, 64
        %v1941 = vpop.permute.xlu0 %1940
        %1942 = vrot.lane.b32.xlu0 %v1843, 64
        %v1943 = vpop.permute.xlu0 %1942
        %1944 = vrot.lane.b32.xlu0 %v1847, 64
        %v1945 = vpop.permute.xlu0 %1944
        %1946 = vrot.lane.b32.xlu0 %v1850, 64
        %v1947 = vpop.permute.xlu0 %1946
        %1948 = vrot.lane.b32.xlu0 %v1854, 64
        %v1949 = vpop.permute.xlu0 %1948
        %1950 = vrot.lane.b32.xlu0 %v1857, 64
        %v1951 = vpop.permute.xlu0 %1950
        %1952 = vrot.lane.b32.xlu0 %v1861, 64
        %v1953 = vpop.permute.xlu0 %1952
        %1954 = vrot.lane.b32.xlu0 %v1864, 64
        %v1955 = vpop.permute.xlu0 %1954
        %1956 = vrot.lane.b32.xlu0 %v1868, 64
        %v1957 = vpop.permute.xlu0 %1956
        %1958 = vrot.lane.b32.xlu0 %v1871, 64
        %v1959 = vpop.permute.xlu0 %1958
        %1960 = vrot.lane.b32.xlu0 %v1875, 64
        %v1961 = vpop.permute.xlu0 %1960
        %1962 = vrot.lane.b32.xlu0 %v1878, 64
        %v1963 = vpop.permute.xlu0 %1962
        %1964 = vrot.lane.b32.xlu0 %v1882, 64
        %v1965 = vpop.permute.xlu0 %1964
        %1966 = vrot.lane.b32.xlu0 %v1885, 64
        %v1967 = vpop.permute.xlu0 %1966
        %1968 = vrot.lane.b32.xlu0 %v1889, 64
        %v1969 = vpop.permute.xlu0 %1968
        %1970 = vrot.lane.b32.xlu0 %v1892, 64
        %v1971 = vpop.permute.xlu0 %1970
        %1972 = vrot.lane.b32.xlu0 %v1896, 64
        %v1973 = vpop.permute.xlu0 %1972
        %1974 = vrot.lane.b32.xlu0 %v1899, 64
        %v1975 = vpop.permute.xlu0 %1974
        %1976 = vrot.lane.b32.xlu0 %v1903, 64
        %v1977 = vpop.permute.xlu0 %1976
        %1978 = vrot.lane.b32.xlu0 %v1906, 64
        %v1979 = vpop.permute.xlu0 %1978
        %1980 = vrot.lane.b32.xlu0 %v1910, 64
        %v1981 = vpop.permute.xlu0 %1980
        %1982 = vrot.lane.b32.xlu0 %v1913, 64
        %v1983 = vpop.permute.xlu0 %1982
        %1984 = vrot.lane.b32.xlu0 %v1917, 64
        %v1985 = vpop.permute.xlu0 %1984
        %1986 = vrot.lane.b32.xlu0 %v1920, 64
        %v1987 = vpop.permute.xlu0 %1986
        %1988 = vrot.lane.b32.xlu0 %v1924, 64
        %v1989 = vpop.permute.xlu0 %1988
        %1990 = vrot.lane.b32.xlu0 %v1927, 64
        %v1991 = vpop.permute.xlu0 %1990
        %vm2024 = vcmask 781824
        %2025 = vst.msk [vmem:[#allocation3] sm:$0xf] %vm2024, %v1929
        %2026 = vst.msk [vmem:[#allocation3 + $0xc] sm:$0xf] %vm2024, %v1931
        %2027 = vst.msk [vmem:[#allocation3 + $0x18] sm:$0xf] %vm2024, %v1933
        %2028 = vst.msk [vmem:[#allocation3 + $0x24] sm:$0xf] %vm2024, %v1935
        %2029 = vst.msk [vmem:[#allocation3 + $0x30] sm:$0xf] %vm2024, %v1937
        %2030 = vst.msk [vmem:[#allocation3 + $0x3c] sm:$0xf] %vm2024, %v1939
        %2031 = vst.msk [vmem:[#allocation3 + $0x48] sm:$0xf] %vm2024, %v1941
        %2032 = vst.msk [vmem:[#allocation3 + $0x54] sm:$0xf] %vm2024, %v1943
        %2033 = vst.msk [vmem:[#allocation3 + $0x60] sm:$0xf] %vm2024, %v1945
        %2034 = vst.msk [vmem:[#allocation3 + $0x6c] sm:$0xf] %vm2024, %v1947
        %2035 = vst.msk [vmem:[#allocation3 + $0x78] sm:$0xf] %vm2024, %v1949
        %2036 = vst.msk [vmem:[#allocation3 + $0x84] sm:$0xf] %vm2024, %v1951
        %2037 = vst.msk [vmem:[#allocation3 + $0x90] sm:$0xf] %vm2024, %v1953
        %2038 = vst.msk [vmem:[#allocation3 + $0x9c] sm:$0xf] %vm2024, %v1955
        %2039 = vst.msk [vmem:[#allocation3 + $0xa8] sm:$0xf] %vm2024, %v1957
        %2040 = vst.msk [vmem:[#allocation3 + $0xb4] sm:$0xf] %vm2024, %v1959
        %2041 = vst.msk [vmem:[#allocation3 + $0xc0] sm:$0xf] %vm2024, %v1961
        %2042 = vst.msk [vmem:[#allocation3 + $0xcc] sm:$0xf] %vm2024, %v1963
        %2043 = vst.msk [vmem:[#allocation3 + $0xd8] sm:$0xf] %vm2024, %v1965
        %2044 = vst.msk [vmem:[#allocation3 + $0xe4] sm:$0xf] %vm2024, %v1967
        %2045 = vst.msk [vmem:[#allocation3 + $0xf0] sm:$0xf] %vm2024, %v1969
        %2046 = vst.msk [vmem:[#allocation3 + $0xfc] sm:$0xf] %vm2024, %v1971
        %2047 = vst.msk [vmem:[#allocation3 + $0x108] sm:$0xf] %vm2024, %v1973
        %2048 = vst.msk [vmem:[#allocation3 + $0x114] sm:$0xf] %vm2024, %v1975
        %2049 = vst.msk [vmem:[#allocation3 + $0x120] sm:$0xf] %vm2024, %v1977
        %2050 = vst.msk [vmem:[#allocation3 + $0x12c] sm:$0xf] %vm2024, %v1979
        %2051 = vst.msk [vmem:[#allocation3 + $0x138] sm:$0xf] %vm2024, %v1981
        %2052 = vst.msk [vmem:[#allocation3 + $0x144] sm:$0xf] %vm2024, %v1983
        %2053 = vst.msk [vmem:[#allocation3 + $0x150] sm:$0xf] %vm2024, %v1985
        %2054 = vst.msk [vmem:[#allocation3 + $0x15c] sm:$0xf] %vm2024, %v1987
        %2055 = vst.msk [vmem:[#allocation3 + $0x168] sm:$0xf] %vm2024, %v1989
        %2056 = vst.msk [vmem:[#allocation3 + $0x174] sm:$0xf] %vm2024, %v1991
        %v2057 = vld [vmem:[%s1038] sm:$0xf]
        %v2058 = vld [vmem:[%s1038 + $0x4] sm:$0xf]
        %v2059 = vld [vmem:[%s1038 + $0x8] sm:$0x1]
        %v2060 = vld [vmem:[%s1038 + $0xc] sm:$0xf]
        %v2061 = vld [vmem:[%s1038 + $0x10] sm:$0xf]
        %v2062 = vld [vmem:[%s1038 + $0x14] sm:$0x1]
        %v2063 = vld [vmem:[%s1038 + $0x18] sm:$0xf]
        %v2064 = vld [vmem:[%s1038 + $0x1c] sm:$0xf]
        %v2065 = vld [vmem:[%s1038 + $0x20] sm:$0x1]
        %v2066 = vld [vmem:[%s1038 + $0x24] sm:$0xf]
        %v2067 = vld [vmem:[%s1038 + $0x28] sm:$0xf]
        %v2068 = vld [vmem:[%s1038 + $0x2c] sm:$0x1]
        %v2069 = vld [vmem:[%s1038 + $0x30] sm:$0xf]
        %v2070 = vld [vmem:[%s1038 + $0x34] sm:$0xf]
        %v2071 = vld [vmem:[%s1038 + $0x38] sm:$0x1]
        %v2072 = vld [vmem:[%s1038 + $0x3c] sm:$0xf]
        %v2073 = vld [vmem:[%s1038 + $0x40] sm:$0xf]
        %v2074 = vld [vmem:[%s1038 + $0x44] sm:$0x1]
        %v2075 = vld [vmem:[%s1038 + $0x48] sm:$0xf]
        %v2076 = vld [vmem:[%s1038 + $0x4c] sm:$0xf]
        %v2077 = vld [vmem:[%s1038 + $0x50] sm:$0x1]
        %v2078 = vld [vmem:[%s1038 + $0x54] sm:$0xf]
        %v2079 = vld [vmem:[%s1038 + $0x58] sm:$0xf]
        %v2080 = vld [vmem:[%s1038 + $0x5c] sm:$0x1]
        %v2081 = vld [vmem:[%s1038 + $0x60] sm:$0xf]
        %v2082 = vld [vmem:[%s1038 + $0x64] sm:$0xf]
        %v2083 = vld [vmem:[%s1038 + $0x68] sm:$0x1]
        %v2084 = vld [vmem:[%s1038 + $0x6c] sm:$0xf]
        %v2085 = vld [vmem:[%s1038 + $0x70] sm:$0xf]
        %v2086 = vld [vmem:[%s1038 + $0x74] sm:$0x1]
        %v2087 = vld [vmem:[%s1038 + $0x78] sm:$0xf]
        %v2088 = vld [vmem:[%s1038 + $0x7c] sm:$0xf]
        %v2089 = vld [vmem:[%s1038 + $0x80] sm:$0x1]
        %v2090 = vld [vmem:[%s1038 + $0x84] sm:$0xf]
        %v2091 = vld [vmem:[%s1038 + $0x88] sm:$0xf]
        %v2092 = vld [vmem:[%s1038 + $0x8c] sm:$0x1]
        %v2093 = vld [vmem:[%s1038 + $0x90] sm:$0xf]
        %v2094 = vld [vmem:[%s1038 + $0x94] sm:$0xf]
        %v2095 = vld [vmem:[%s1038 + $0x98] sm:$0x1]
        %v2096 = vld [vmem:[%s1038 + $0x9c] sm:$0xf]
        %v2097 = vld [vmem:[%s1038 + $0xa0] sm:$0xf]
        %v2098 = vld [vmem:[%s1038 + $0xa4] sm:$0x1]
        %v2099 = vld [vmem:[%s1038 + $0xa8] sm:$0xf]
        %v2100 = vld [vmem:[%s1038 + $0xac] sm:$0xf]
        %v2101 = vld [vmem:[%s1038 + $0xb0] sm:$0x1]
        %v2102 = vld [vmem:[%s1038 + $0xb4] sm:$0xf]
        %v2103 = vld [vmem:[%s1038 + $0xb8] sm:$0xf]
        %v2104 = vld [vmem:[%s1038 + $0xbc] sm:$0x1]
        %2137 = vrot.lane.b32.xlu0 %v2057, 96
        %v2138 = vpop.permute.xlu0 %2137
        %2139 = vrot.lane.b32.xlu0 %v2058, 96
        %v2140 = vpop.permute.xlu0 %2139
        %2141 = vrot.lane.b32.xlu0 %v2060, 96
        %v2142 = vpop.permute.xlu0 %2141
        %2143 = vrot.lane.b32.xlu0 %v2061, 96
        %v2144 = vpop.permute.xlu0 %2143
        %2145 = vrot.lane.b32.xlu0 %v2063, 96
        %v2146 = vpop.permute.xlu0 %2145
        %2147 = vrot.lane.b32.xlu0 %v2064, 96
        %v2148 = vpop.permute.xlu0 %2147
        %2149 = vrot.lane.b32.xlu0 %v2066, 96
        %v2150 = vpop.permute.xlu0 %2149
        %2151 = vrot.lane.b32.xlu0 %v2067, 96
        %v2152 = vpop.permute.xlu0 %2151
        %2153 = vrot.lane.b32.xlu0 %v2069, 96
        %v2154 = vpop.permute.xlu0 %2153
        %2155 = vrot.lane.b32.xlu0 %v2070, 96
        %v2156 = vpop.permute.xlu0 %2155
        %2157 = vrot.lane.b32.xlu0 %v2072, 96
        %v2158 = vpop.permute.xlu0 %2157
        %2159 = vrot.lane.b32.xlu0 %v2073, 96
        %v2160 = vpop.permute.xlu0 %2159
        %2161 = vrot.lane.b32.xlu0 %v2075, 96
        %v2162 = vpop.permute.xlu0 %2161
        %2163 = vrot.lane.b32.xlu0 %v2076, 96
        %v2164 = vpop.permute.xlu0 %2163
        %2165 = vrot.lane.b32.xlu0 %v2078, 96
        %v2166 = vpop.permute.xlu0 %2165
        %2167 = vrot.lane.b32.xlu0 %v2079, 96
        %v2168 = vpop.permute.xlu0 %2167
        %2169 = vrot.lane.b32.xlu0 %v2081, 96
        %v2170 = vpop.permute.xlu0 %2169
        %2171 = vrot.lane.b32.xlu0 %v2082, 96
        %v2172 = vpop.permute.xlu0 %2171
        %2173 = vrot.lane.b32.xlu0 %v2084, 96
        %v2174 = vpop.permute.xlu0 %2173
        %2175 = vrot.lane.b32.xlu0 %v2085, 96
        %v2176 = vpop.permute.xlu0 %2175
        %2177 = vrot.lane.b32.xlu0 %v2087, 96
        %v2178 = vpop.permute.xlu0 %2177
        %2179 = vrot.lane.b32.xlu0 %v2088, 96
        %v2180 = vpop.permute.xlu0 %2179
        %2181 = vrot.lane.b32.xlu0 %v2090, 96
        %v2182 = vpop.permute.xlu0 %2181
        %2183 = vrot.lane.b32.xlu0 %v2091, 96
        %v2184 = vpop.permute.xlu0 %2183
        %2185 = vrot.lane.b32.xlu0 %v2093, 96
        %v2186 = vpop.permute.xlu0 %2185
        %2187 = vrot.lane.b32.xlu0 %v2094, 96
        %v2188 = vpop.permute.xlu0 %2187
        %2189 = vrot.lane.b32.xlu0 %v2096, 96
        %v2190 = vpop.permute.xlu0 %2189
        %2191 = vrot.lane.b32.xlu0 %v2097, 96
        %v2192 = vpop.permute.xlu0 %2191
        %2193 = vrot.lane.b32.xlu0 %v2099, 96
        %v2194 = vpop.permute.xlu0 %2193
        %2195 = vrot.lane.b32.xlu0 %v2100, 96
        %v2196 = vpop.permute.xlu0 %2195
        %2197 = vrot.lane.b32.xlu0 %v2102, 96
        %v2198 = vpop.permute.xlu0 %2197
        %2199 = vrot.lane.b32.xlu0 %v2103, 96
        %v2200 = vpop.permute.xlu0 %2199
        %vm2233 = vcmask 1044224
        %2234 = vst.msk [vmem:[#allocation3] sm:$0xf] %vm2233, %v2138
        %2235 = vst.msk [vmem:[#allocation3 + $0xc] sm:$0xf] %vm2233, %v2140
        %2236 = vst.msk [vmem:[#allocation3 + $0x18] sm:$0xf] %vm2233, %v2142
        %2237 = vst.msk [vmem:[#allocation3 + $0x24] sm:$0xf] %vm2233, %v2144
        %2238 = vst.msk [vmem:[#allocation3 + $0x30] sm:$0xf] %vm2233, %v2146
        %2239 = vst.msk [vmem:[#allocation3 + $0x3c] sm:$0xf] %vm2233, %v2148
        %2240 = vst.msk [vmem:[#allocation3 + $0x48] sm:$0xf] %vm2233, %v2150
        %2241 = vst.msk [vmem:[#allocation3 + $0x54] sm:$0xf] %vm2233, %v2152
        %2242 = vst.msk [vmem:[#allocation3 + $0x60] sm:$0xf] %vm2233, %v2154
        %2243 = vst.msk [vmem:[#allocation3 + $0x6c] sm:$0xf] %vm2233, %v2156
        %2244 = vst.msk [vmem:[#allocation3 + $0x78] sm:$0xf] %vm2233, %v2158
        %2245 = vst.msk [vmem:[#allocation3 + $0x84] sm:$0xf] %vm2233, %v2160
        %2246 = vst.msk [vmem:[#allocation3 + $0x90] sm:$0xf] %vm2233, %v2162
        %2247 = vst.msk [vmem:[#allocation3 + $0x9c] sm:$0xf] %vm2233, %v2164
        %2248 = vst.msk [vmem:[#allocation3 + $0xa8] sm:$0xf] %vm2233, %v2166
        %2249 = vst.msk [vmem:[#allocation3 + $0xb4] sm:$0xf] %vm2233, %v2168
        %2250 = vst.msk [vmem:[#allocation3 + $0xc0] sm:$0xf] %vm2233, %v2170
        %2251 = vst.msk [vmem:[#allocation3 + $0xcc] sm:$0xf] %vm2233, %v2172
        %2252 = vst.msk [vmem:[#allocation3 + $0xd8] sm:$0xf] %vm2233, %v2174
        %2253 = vst.msk [vmem:[#allocation3 + $0xe4] sm:$0xf] %vm2233, %v2176
        %2254 = vst.msk [vmem:[#allocation3 + $0xf0] sm:$0xf] %vm2233, %v2178
        %2255 = vst.msk [vmem:[#allocation3 + $0xfc] sm:$0xf] %vm2233, %v2180
        %2256 = vst.msk [vmem:[#allocation3 + $0x108] sm:$0xf] %vm2233, %v2182
        %2257 = vst.msk [vmem:[#allocation3 + $0x114] sm:$0xf] %vm2233, %v2184
        %2258 = vst.msk [vmem:[#allocation3 + $0x120] sm:$0xf] %vm2233, %v2186
        %2259 = vst.msk [vmem:[#allocation3 + $0x12c] sm:$0xf] %vm2233, %v2188
        %2260 = vst.msk [vmem:[#allocation3 + $0x138] sm:$0xf] %vm2233, %v2190
        %2261 = vst.msk [vmem:[#allocation3 + $0x144] sm:$0xf] %vm2233, %v2192
        %2262 = vst.msk [vmem:[#allocation3 + $0x150] sm:$0xf] %vm2233, %v2194
        %2263 = vst.msk [vmem:[#allocation3 + $0x15c] sm:$0xf] %vm2233, %v2196
        %2264 = vst.msk [vmem:[#allocation3 + $0x168] sm:$0xf] %vm2233, %v2198
        %2265 = vst.msk [vmem:[#allocation3 + $0x174] sm:$0xf] %vm2233, %v2200
        %v2267 = vshrl.u32 %v2057, 16
        %v2269 = vrot.slane %v2267, 4
        %v2270 = vshll.u32 %v2057, 16
        %v2272 = vrot.slane %v2270, 5
        %v2273 = vor.u32 %v2269, %v2272
        %v2274 = vrot.slane %v2273, 4
        %v2276 = vshll.u32 %v2058, 16
        %v2278 = vrot.slane %v2276, 5
        %v2279 = vsel %vm1251, %v2274, %v2278
        %v2280 = vshrl.u32 %v2058, 16
        %v2282 = vrot.slane %v2280, 4
        %v2283 = vor.u32 %v2282, %v2278
        %v2284 = vrot.slane %v2283, 4
        %v2286 = vshll.u32 %v2059, 16
        %v2288 = vrot.slane %v2286, 5
        %v2289 = vsel %vm1251, %v2284, %v2288
        %v2291 = vshrl.u32 %v2060, 16
        %v2293 = vrot.slane %v2291, 4
        %v2294 = vshll.u32 %v2060, 16
        %v2296 = vrot.slane %v2294, 5
        %v2297 = vor.u32 %v2293, %v2296
        %v2298 = vrot.slane %v2297, 4
        %v2300 = vshll.u32 %v2061, 16
        %v2302 = vrot.slane %v2300, 5
        %v2303 = vsel %vm1251, %v2298, %v2302
        %v2304 = vshrl.u32 %v2061, 16
        %v2306 = vrot.slane %v2304, 4
        %v2307 = vor.u32 %v2306, %v2302
        %v2308 = vrot.slane %v2307, 4
        %v2310 = vshll.u32 %v2062, 16
        %v2312 = vrot.slane %v2310, 5
        %v2313 = vsel %vm1251, %v2308, %v2312
        %v2315 = vshrl.u32 %v2063, 16
        %v2317 = vrot.slane %v2315, 4
        %v2318 = vshll.u32 %v2063, 16
        %v2320 = vrot.slane %v2318, 5
        %v2321 = vor.u32 %v2317, %v2320
        %v2322 = vrot.slane %v2321, 4
        %v2324 = vshll.u32 %v2064, 16
        %v2326 = vrot.slane %v2324, 5
        %v2327 = vsel %vm1251, %v2322, %v2326
        %v2328 = vshrl.u32 %v2064, 16
        %v2330 = vrot.slane %v2328, 4
        %v2331 = vor.u32 %v2330, %v2326
        %v2332 = vrot.slane %v2331, 4
        %v2334 = vshll.u32 %v2065, 16
        %v2336 = vrot.slane %v2334, 5
        %v2337 = vsel %vm1251, %v2332, %v2336
        %v2339 = vshrl.u32 %v2066, 16
        %v2341 = vrot.slane %v2339, 4
        %v2342 = vshll.u32 %v2066, 16
        %v2344 = vrot.slane %v2342, 5
        %v2345 = vor.u32 %v2341, %v2344
        %v2346 = vrot.slane %v2345, 4
        %v2348 = vshll.u32 %v2067, 16
        %v2350 = vrot.slane %v2348, 5
        %v2351 = vsel %vm1251, %v2346, %v2350
        %v2352 = vshrl.u32 %v2067, 16
        %v2354 = vrot.slane %v2352, 4
        %v2355 = vor.u32 %v2354, %v2350
        %v2356 = vrot.slane %v2355, 4
        %v2358 = vshll.u32 %v2068, 16
        %v2360 = vrot.slane %v2358, 5
        %v2361 = vsel %vm1251, %v2356, %v2360
        %v2363 = vshrl.u32 %v2069, 16
        %v2365 = vrot.slane %v2363, 4
        %v2366 = vshll.u32 %v2069, 16
        %v2368 = vrot.slane %v2366, 5
        %v2369 = vor.u32 %v2365, %v2368
        %v2370 = vrot.slane %v2369, 4
        %v2372 = vshll.u32 %v2070, 16
        %v2374 = vrot.slane %v2372, 5
        %v2375 = vsel %vm1251, %v2370, %v2374
        %v2376 = vshrl.u32 %v2070, 16
        %v2378 = vrot.slane %v2376, 4
        %v2379 = vor.u32 %v2378, %v2374
        %v2380 = vrot.slane %v2379, 4
        %v2382 = vshll.u32 %v2071, 16
        %v2384 = vrot.slane %v2382, 5
        %v2385 = vsel %vm1251, %v2380, %v2384
        %v2387 = vshrl.u32 %v2072, 16
        %v2389 = vrot.slane %v2387, 4
        %v2390 = vshll.u32 %v2072, 16
        %v2392 = vrot.slane %v2390, 5
        %v2393 = vor.u32 %v2389, %v2392
        %v2394 = vrot.slane %v2393, 4
        %v2396 = vshll.u32 %v2073, 16
        %v2398 = vrot.slane %v2396, 5
        %v2399 = vsel %vm1251, %v2394, %v2398
        %v2400 = vshrl.u32 %v2073, 16
        %v2402 = vrot.slane %v2400, 4
        %v2403 = vor.u32 %v2402, %v2398
        %v2404 = vrot.slane %v2403, 4
        %v2406 = vshll.u32 %v2074, 16
        %v2408 = vrot.slane %v2406, 5
        %v2409 = vsel %vm1251, %v2404, %v2408
        %v2411 = vshrl.u32 %v2075, 16
        %v2413 = vrot.slane %v2411, 4
        %v2414 = vshll.u32 %v2075, 16
        %v2416 = vrot.slane %v2414, 5
        %v2417 = vor.u32 %v2413, %v2416
        %v2418 = vrot.slane %v2417, 4
        %v2420 = vshll.u32 %v2076, 16
        %v2422 = vrot.slane %v2420, 5
        %v2423 = vsel %vm1251, %v2418, %v2422
        %v2424 = vshrl.u32 %v2076, 16
        %v2426 = vrot.slane %v2424, 4
        %v2427 = vor.u32 %v2426, %v2422
        %v2428 = vrot.slane %v2427, 4
        %v2430 = vshll.u32 %v2077, 16
        %v2432 = vrot.slane %v2430, 5
        %v2433 = vsel %vm1251, %v2428, %v2432
        %v2435 = vshrl.u32 %v2078, 16
        %v2437 = vrot.slane %v2435, 4
        %v2438 = vshll.u32 %v2078, 16
        %v2440 = vrot.slane %v2438, 5
        %v2441 = vor.u32 %v2437, %v2440
        %v2442 = vrot.slane %v2441, 4
        %v2444 = vshll.u32 %v2079, 16
        %v2446 = vrot.slane %v2444, 5
        %v2447 = vsel %vm1251, %v2442, %v2446
        %v2448 = vshrl.u32 %v2079, 16
        %v2450 = vrot.slane %v2448, 4
        %v2451 = vor.u32 %v2450, %v2446
        %v2452 = vrot.slane %v2451, 4
        %v2454 = vshll.u32 %v2080, 16
        %v2456 = vrot.slane %v2454, 5
        %v2457 = vsel %vm1251, %v2452, %v2456
        %v2459 = vshrl.u32 %v2081, 16
        %v2461 = vrot.slane %v2459, 4
        %v2462 = vshll.u32 %v2081, 16
        %v2464 = vrot.slane %v2462, 5
        %v2465 = vor.u32 %v2461, %v2464
        %v2466 = vrot.slane %v2465, 4
        %v2468 = vshll.u32 %v2082, 16
        %v2470 = vrot.slane %v2468, 5
        %v2471 = vsel %vm1251, %v2466, %v2470
        %v2472 = vshrl.u32 %v2082, 16
        %v2474 = vrot.slane %v2472, 4
        %v2475 = vor.u32 %v2474, %v2470
        %v2476 = vrot.slane %v2475, 4
        %v2478 = vshll.u32 %v2083, 16
        %v2480 = vrot.slane %v2478, 5
        %v2481 = vsel %vm1251, %v2476, %v2480
        %v2483 = vshrl.u32 %v2084, 16
        %v2485 = vrot.slane %v2483, 4
        %v2486 = vshll.u32 %v2084, 16
        %v2488 = vrot.slane %v2486, 5
        %v2489 = vor.u32 %v2485, %v2488
        %v2490 = vrot.slane %v2489, 4
        %v2492 = vshll.u32 %v2085, 16
        %v2494 = vrot.slane %v2492, 5
        %v2495 = vsel %vm1251, %v2490, %v2494
        %v2496 = vshrl.u32 %v2085, 16
        %v2498 = vrot.slane %v2496, 4
        %v2499 = vor.u32 %v2498, %v2494
        %v2500 = vrot.slane %v2499, 4
        %v2502 = vshll.u32 %v2086, 16
        %v2504 = vrot.slane %v2502, 5
        %v2505 = vsel %vm1251, %v2500, %v2504
        %v2507 = vshrl.u32 %v2087, 16
        %v2509 = vrot.slane %v2507, 4
        %v2510 = vshll.u32 %v2087, 16
        %v2512 = vrot.slane %v2510, 5
        %v2513 = vor.u32 %v2509, %v2512
        %v2514 = vrot.slane %v2513, 4
        %v2516 = vshll.u32 %v2088, 16
        %v2518 = vrot.slane %v2516, 5
        %v2519 = vsel %vm1251, %v2514, %v2518
        %v2520 = vshrl.u32 %v2088, 16
        %v2522 = vrot.slane %v2520, 4
        %v2523 = vor.u32 %v2522, %v2518
        %v2524 = vrot.slane %v2523, 4
        %v2526 = vshll.u32 %v2089, 16
        %v2528 = vrot.slane %v2526, 5
        %v2529 = vsel %vm1251, %v2524, %v2528
        %v2531 = vshrl.u32 %v2090, 16
        %v2533 = vrot.slane %v2531, 4
        %v2534 = vshll.u32 %v2090, 16
        %v2536 = vrot.slane %v2534, 5
        %v2537 = vor.u32 %v2533, %v2536
        %v2538 = vrot.slane %v2537, 4
        %v2540 = vshll.u32 %v2091, 16
        %v2542 = vrot.slane %v2540, 5
        %v2543 = vsel %vm1251, %v2538, %v2542
        %v2544 = vshrl.u32 %v2091, 16
        %v2546 = vrot.slane %v2544, 4
        %v2547 = vor.u32 %v2546, %v2542
        %v2548 = vrot.slane %v2547, 4
        %v2550 = vshll.u32 %v2092, 16
        %v2552 = vrot.slane %v2550, 5
        %v2553 = vsel %vm1251, %v2548, %v2552
        %v2555 = vshrl.u32 %v2093, 16
        %v2557 = vrot.slane %v2555, 4
        %v2558 = vshll.u32 %v2093, 16
        %v2560 = vrot.slane %v2558, 5
        %v2561 = vor.u32 %v2557, %v2560
        %v2562 = vrot.slane %v2561, 4
        %v2564 = vshll.u32 %v2094, 16
        %v2566 = vrot.slane %v2564, 5
        %v2567 = vsel %vm1251, %v2562, %v2566
        %v2568 = vshrl.u32 %v2094, 16
        %v2570 = vrot.slane %v2568, 4
        %v2571 = vor.u32 %v2570, %v2566
        %v2572 = vrot.slane %v2571, 4
        %v2574 = vshll.u32 %v2095, 16
        %v2576 = vrot.slane %v2574, 5
        %v2577 = vsel %vm1251, %v2572, %v2576
        %v2579 = vshrl.u32 %v2096, 16
        %v2581 = vrot.slane %v2579, 4
        %v2582 = vshll.u32 %v2096, 16
        %v2584 = vrot.slane %v2582, 5
        %v2585 = vor.u32 %v2581, %v2584
        %v2586 = vrot.slane %v2585, 4
        %v2588 = vshll.u32 %v2097, 16
        %v2590 = vrot.slane %v2588, 5
        %v2591 = vsel %vm1251, %v2586, %v2590
        %v2592 = vshrl.u32 %v2097, 16
        %v2594 = vrot.slane %v2592, 4
        %v2595 = vor.u32 %v2594, %v2590
        %v2596 = vrot.slane %v2595, 4
        %v2598 = vshll.u32 %v2098, 16
        %v2600 = vrot.slane %v2598, 5
        %v2601 = vsel %vm1251, %v2596, %v2600
        %v2603 = vshrl.u32 %v2099, 16
        %v2605 = vrot.slane %v2603, 4
        %v2606 = vshll.u32 %v2099, 16
        %v2608 = vrot.slane %v2606, 5
        %v2609 = vor.u32 %v2605, %v2608
        %v2610 = vrot.slane %v2609, 4
        %v2612 = vshll.u32 %v2100, 16
        %v2614 = vrot.slane %v2612, 5
        %v2615 = vsel %vm1251, %v2610, %v2614
        %v2616 = vshrl.u32 %v2100, 16
        %v2618 = vrot.slane %v2616, 4
        %v2619 = vor.u32 %v2618, %v2614
        %v2620 = vrot.slane %v2619, 4
        %v2622 = vshll.u32 %v2101, 16
        %v2624 = vrot.slane %v2622, 5
        %v2625 = vsel %vm1251, %v2620, %v2624
        %v2627 = vshrl.u32 %v2102, 16
        %v2629 = vrot.slane %v2627, 4
        %v2630 = vshll.u32 %v2102, 16
        %v2632 = vrot.slane %v2630, 5
        %v2633 = vor.u32 %v2629, %v2632
        %v2634 = vrot.slane %v2633, 4
        %v2636 = vshll.u32 %v2103, 16
        %v2638 = vrot.slane %v2636, 5
        %v2639 = vsel %vm1251, %v2634, %v2638
        %v2640 = vshrl.u32 %v2103, 16
        %v2642 = vrot.slane %v2640, 4
        %v2643 = vor.u32 %v2642, %v2638
        %v2644 = vrot.slane %v2643, 4
        %v2646 = vshll.u32 %v2104, 16
        %v2648 = vrot.slane %v2646, 5
        %v2649 = vsel %vm1251, %v2644, %v2648
        %2682 = vst.msk [vmem:[#allocation3 + $0x4] sm:$0xf] %vm1044, %v2279
        %2683 = vst.msk [vmem:[#allocation3 + $0x10] sm:$0xf] %vm1044, %v2289
        %2684 = vst.msk [vmem:[#allocation3 + $0x1c] sm:$0xf] %vm1044, %v2303
        %2685 = vst.msk [vmem:[#allocation3 + $0x28] sm:$0xf] %vm1044, %v2313
        %2686 = vst.msk [vmem:[#allocation3 + $0x34] sm:$0xf] %vm1044, %v2327
        %2687 = vst.msk [vmem:[#allocation3 + $0x40] sm:$0xf] %vm1044, %v2337
        %2688 = vst.msk [vmem:[#allocation3 + $0x4c] sm:$0xf] %vm1044, %v2351
        %2689 = vst.msk [vmem:[#allocation3 + $0x58] sm:$0xf] %vm1044, %v2361
        %2690 = vst.msk [vmem:[#allocation3 + $0x64] sm:$0xf] %vm1044, %v2375
        %2691 = vst.msk [vmem:[#allocation3 + $0x70] sm:$0xf] %vm1044, %v2385
        %2692 = vst.msk [vmem:[#allocation3 + $0x7c] sm:$0xf] %vm1044, %v2399
        %2693 = vst.msk [vmem:[#allocation3 + $0x88] sm:$0xf] %vm1044, %v2409
        %2694 = vst.msk [vmem:[#allocation3 + $0x94] sm:$0xf] %vm1044, %v2423
        %2695 = vst.msk [vmem:[#allocation3 + $0xa0] sm:$0xf] %vm1044, %v2433
        %2696 = vst.msk [vmem:[#allocation3 + $0xac] sm:$0xf] %vm1044, %v2447
        %2697 = vst.msk [vmem:[#allocation3 + $0xb8] sm:$0xf] %vm1044, %v2457
        %2698 = vst.msk [vmem:[#allocation3 + $0xc4] sm:$0xf] %vm1044, %v2471
        %2699 = vst.msk [vmem:[#allocation3 + $0xd0] sm:$0xf] %vm1044, %v2481
        %2700 = vst.msk [vmem:[#allocation3 + $0xdc] sm:$0xf] %vm1044, %v2495
        %2701 = vst.msk [vmem:[#allocation3 + $0xe8] sm:$0xf] %vm1044, %v2505
        %2702 = vst.msk [vmem:[#allocation3 + $0xf4] sm:$0xf] %vm1044, %v2519
        %2703 = vst.msk [vmem:[#allocation3 + $0x100] sm:$0xf] %vm1044, %v2529
        %2704 = vst.msk [vmem:[#allocation3 + $0x10c] sm:$0xf] %vm1044, %v2543
        %2705 = vst.msk [vmem:[#allocation3 + $0x118] sm:$0xf] %vm1044, %v2553
        %2706 = vst.msk [vmem:[#allocation3 + $0x124] sm:$0xf] %vm1044, %v2567
        %2707 = vst.msk [vmem:[#allocation3 + $0x130] sm:$0xf] %vm1044, %v2577
        %2708 = vst.msk [vmem:[#allocation3 + $0x13c] sm:$0xf] %vm1044, %v2591
        %2709 = vst.msk [vmem:[#allocation3 + $0x148] sm:$0xf] %vm1044, %v2601
        %2710 = vst.msk [vmem:[#allocation3 + $0x154] sm:$0xf] %vm1044, %v2615
        %2711 = vst.msk [vmem:[#allocation3 + $0x160] sm:$0xf] %vm1044, %v2625
        %2712 = vst.msk [vmem:[#allocation3 + $0x16c] sm:$0xf] %vm1044, %v2639
        %2713 = vst.msk [vmem:[#allocation3 + $0x178] sm:$0xf] %vm1044, %v2649
        %v2730 = vrot.slane %v2057, 5
        %v2731 = vrot.slane %v2730, 4
        %v2732 = vrot.slane %v2058, 5
        %v2733 = vsel %vm1815, %v2731, %v2732
        %v2734 = vrot.slane %v2732, 4
        %v2735 = vrot.slane %v2059, 5
        %v2736 = vsel %vm1815, %v2734, %v2735
        %v2737 = vrot.slane %v2060, 5
        %v2738 = vrot.slane %v2737, 4
        %v2739 = vrot.slane %v2061, 5
        %v2740 = vsel %vm1815, %v2738, %v2739
        %v2741 = vrot.slane %v2739, 4
        %v2742 = vrot.slane %v2062, 5
        %v2743 = vsel %vm1815, %v2741, %v2742
        %v2744 = vrot.slane %v2063, 5
        %v2745 = vrot.slane %v2744, 4
        %v2746 = vrot.slane %v2064, 5
        %v2747 = vsel %vm1815, %v2745, %v2746
        %v2748 = vrot.slane %v2746, 4
        %v2749 = vrot.slane %v2065, 5
        %v2750 = vsel %vm1815, %v2748, %v2749
        %v2751 = vrot.slane %v2066, 5
        %v2752 = vrot.slane %v2751, 4
        %v2753 = vrot.slane %v2067, 5
        %v2754 = vsel %vm1815, %v2752, %v2753
        %v2755 = vrot.slane %v2753, 4
        %v2756 = vrot.slane %v2068, 5
        %v2757 = vsel %vm1815, %v2755, %v2756
        %v2758 = vrot.slane %v2069, 5
        %v2759 = vrot.slane %v2758, 4
        %v2760 = vrot.slane %v2070, 5
        %v2761 = vsel %vm1815, %v2759, %v2760
        %v2762 = vrot.slane %v2760, 4
        %v2763 = vrot.slane %v2071, 5
        %v2764 = vsel %vm1815, %v2762, %v2763
        %v2765 = vrot.slane %v2072, 5
        %v2766 = vrot.slane %v2765, 4
        %v2767 = vrot.slane %v2073, 5
        %v2768 = vsel %vm1815, %v2766, %v2767
        %v2769 = vrot.slane %v2767, 4
        %v2770 = vrot.slane %v2074, 5
        %v2771 = vsel %vm1815, %v2769, %v2770
        %v2772 = vrot.slane %v2075, 5
        %v2773 = vrot.slane %v2772, 4
        %v2774 = vrot.slane %v2076, 5
        %v2775 = vsel %vm1815, %v2773, %v2774
        %v2776 = vrot.slane %v2774, 4
        %v2777 = vrot.slane %v2077, 5
        %v2778 = vsel %vm1815, %v2776, %v2777
        %v2779 = vrot.slane %v2078, 5
        %v2780 = vrot.slane %v2779, 4
        %v2781 = vrot.slane %v2079, 5
        %v2782 = vsel %vm1815, %v2780, %v2781
        %v2783 = vrot.slane %v2781, 4
        %v2784 = vrot.slane %v2080, 5
        %v2785 = vsel %vm1815, %v2783, %v2784
        %v2786 = vrot.slane %v2081, 5
        %v2787 = vrot.slane %v2786, 4
        %v2788 = vrot.slane %v2082, 5
        %v2789 = vsel %vm1815, %v2787, %v2788
        %v2790 = vrot.slane %v2788, 4
        %v2791 = vrot.slane %v2083, 5
        %v2792 = vsel %vm1815, %v2790, %v2791
        %v2793 = vrot.slane %v2084, 5
        %v2794 = vrot.slane %v2793, 4
        %v2795 = vrot.slane %v2085, 5
        %v2796 = vsel %vm1815, %v2794, %v2795
        %v2797 = vrot.slane %v2795, 4
        %v2798 = vrot.slane %v2086, 5
        %v2799 = vsel %vm1815, %v2797, %v2798
        %v2800 = vrot.slane %v2087, 5
        %v2801 = vrot.slane %v2800, 4
        %v2802 = vrot.slane %v2088, 5
        %v2803 = vsel %vm1815, %v2801, %v2802
        %v2804 = vrot.slane %v2802, 4
        %v2805 = vrot.slane %v2089, 5
        %v2806 = vsel %vm1815, %v2804, %v2805
        %v2807 = vrot.slane %v2090, 5
        %v2808 = vrot.slane %v2807, 4
        %v2809 = vrot.slane %v2091, 5
        %v2810 = vsel %vm1815, %v2808, %v2809
        %v2811 = vrot.slane %v2809, 4
        %v2812 = vrot.slane %v2092, 5
        %v2813 = vsel %vm1815, %v2811, %v2812
        %v2814 = vrot.slane %v2093, 5
        %v2815 = vrot.slane %v2814, 4
        %v2816 = vrot.slane %v2094, 5
        %v2817 = vsel %vm1815, %v2815, %v2816
        %v2818 = vrot.slane %v2816, 4
        %v2819 = vrot.slane %v2095, 5
        %v2820 = vsel %vm1815, %v2818, %v2819
        %v2821 = vrot.slane %v2096, 5
        %v2822 = vrot.slane %v2821, 4
        %v2823 = vrot.slane %v2097, 5
        %v2824 = vsel %vm1815, %v2822, %v2823
        %v2825 = vrot.slane %v2823, 4
        %v2826 = vrot.slane %v2098, 5
        %v2827 = vsel %vm1815, %v2825, %v2826
        %v2828 = vrot.slane %v2099, 5
        %v2829 = vrot.slane %v2828, 4
        %v2830 = vrot.slane %v2100, 5
        %v2831 = vsel %vm1815, %v2829, %v2830
        %v2832 = vrot.slane %v2830, 4
        %v2833 = vrot.slane %v2101, 5
        %v2834 = vsel %vm1815, %v2832, %v2833
        %v2835 = vrot.slane %v2102, 5
        %v2836 = vrot.slane %v2835, 4
        %v2837 = vrot.slane %v2103, 5
        %v2838 = vsel %vm1815, %v2836, %v2837
        %v2839 = vrot.slane %v2837, 4
        %v2840 = vrot.slane %v2104, 5
        %v2841 = vsel %vm1815, %v2839, %v2840
        %2842 = vrot.lane.b32.xlu0 %v2733, 32
        %v2843 = vpop.permute.xlu0 %2842
        %2844 = vrot.lane.b32.xlu0 %v2736, 32
        %v2845 = vpop.permute.xlu0 %2844
        %2846 = vrot.lane.b32.xlu0 %v2740, 32
        %v2847 = vpop.permute.xlu0 %2846
        %2848 = vrot.lane.b32.xlu0 %v2743, 32
        %v2849 = vpop.permute.xlu0 %2848
        %2850 = vrot.lane.b32.xlu0 %v2747, 32
        %v2851 = vpop.permute.xlu0 %2850
        %2852 = vrot.lane.b32.xlu0 %v2750, 32
        %v2853 = vpop.permute.xlu0 %2852
        %2854 = vrot.lane.b32.xlu0 %v2754, 32
        %v2855 = vpop.permute.xlu0 %2854
        %2856 = vrot.lane.b32.xlu0 %v2757, 32
        %v2857 = vpop.permute.xlu0 %2856
        %2858 = vrot.lane.b32.xlu0 %v2761, 32
        %v2859 = vpop.permute.xlu0 %2858
        %2860 = vrot.lane.b32.xlu0 %v2764, 32
        %v2861 = vpop.permute.xlu0 %2860
        %2862 = vrot.lane.b32.xlu0 %v2768, 32
        %v2863 = vpop.permute.xlu0 %2862
        %2864 = vrot.lane.b32.xlu0 %v2771, 32
        %v2865 = vpop.permute.xlu0 %2864
        %2866 = vrot.lane.b32.xlu0 %v2775, 32
        %v2867 = vpop.permute.xlu0 %2866
        %2868 = vrot.lane.b32.xlu0 %v2778, 32
        %v2869 = vpop.permute.xlu0 %2868
        %2870 = vrot.lane.b32.xlu0 %v2782, 32
        %v2871 = vpop.permute.xlu0 %2870
        %2872 = vrot.lane.b32.xlu0 %v2785, 32
        %v2873 = vpop.permute.xlu0 %2872
        %2874 = vrot.lane.b32.xlu0 %v2789, 32
        %v2875 = vpop.permute.xlu0 %2874
        %2876 = vrot.lane.b32.xlu0 %v2792, 32
        %v2877 = vpop.permute.xlu0 %2876
        %2878 = vrot.lane.b32.xlu0 %v2796, 32
        %v2879 = vpop.permute.xlu0 %2878
        %2880 = vrot.lane.b32.xlu0 %v2799, 32
        %v2881 = vpop.permute.xlu0 %2880
        %2882 = vrot.lane.b32.xlu0 %v2803, 32
        %v2883 = vpop.permute.xlu0 %2882
        %2884 = vrot.lane.b32.xlu0 %v2806, 32
        %v2885 = vpop.permute.xlu0 %2884
        %2886 = vrot.lane.b32.xlu0 %v2810, 32
        %v2887 = vpop.permute.xlu0 %2886
        %2888 = vrot.lane.b32.xlu0 %v2813, 32
        %v2889 = vpop.permute.xlu0 %2888
        %2890 = vrot.lane.b32.xlu0 %v2817, 32
        %v2891 = vpop.permute.xlu0 %2890
        %2892 = vrot.lane.b32.xlu0 %v2820, 32
        %v2893 = vpop.permute.xlu0 %2892
        %2894 = vrot.lane.b32.xlu0 %v2824, 32
        %v2895 = vpop.permute.xlu0 %2894
        %2896 = vrot.lane.b32.xlu0 %v2827, 32
        %v2897 = vpop.permute.xlu0 %2896
        %2898 = vrot.lane.b32.xlu0 %v2831, 32
        %v2899 = vpop.permute.xlu0 %2898
        %2900 = vrot.lane.b32.xlu0 %v2834, 32
        %v2901 = vpop.permute.xlu0 %2900
        %2902 = vrot.lane.b32.xlu0 %v2838, 32
        %v2903 = vpop.permute.xlu0 %2902
        %2904 = vrot.lane.b32.xlu0 %v2841, 32
        %v2905 = vpop.permute.xlu0 %2904
        %2938 = vst.msk [vmem:[#allocation3 + $0x4] sm:$0xf] %vm1732, %v2843
        %2939 = vst.msk [vmem:[#allocation3 + $0x10] sm:$0xf] %vm1732, %v2845
        %2940 = vst.msk [vmem:[#allocation3 + $0x1c] sm:$0xf] %vm1732, %v2847
        %2941 = vst.msk [vmem:[#allocation3 + $0x28] sm:$0xf] %vm1732, %v2849
        %2942 = vst.msk [vmem:[#allocation3 + $0x34] sm:$0xf] %vm1732, %v2851
        %2943 = vst.msk [vmem:[#allocation3 + $0x40] sm:$0xf] %vm1732, %v2853
        %2944 = vst.msk [vmem:[#allocation3 + $0x4c] sm:$0xf] %vm1732, %v2855
        %2945 = vst.msk [vmem:[#allocation3 + $0x58] sm:$0xf] %vm1732, %v2857
        %2946 = vst.msk [vmem:[#allocation3 + $0x64] sm:$0xf] %vm1732, %v2859
        %2947 = vst.msk [vmem:[#allocation3 + $0x70] sm:$0xf] %vm1732, %v2861
        %2948 = vst.msk [vmem:[#allocation3 + $0x7c] sm:$0xf] %vm1732, %v2863
        %2949 = vst.msk [vmem:[#allocation3 + $0x88] sm:$0xf] %vm1732, %v2865
        %2950 = vst.msk [vmem:[#allocation3 + $0x94] sm:$0xf] %vm1732, %v2867
        %2951 = vst.msk [vmem:[#allocation3 + $0xa0] sm:$0xf] %vm1732, %v2869
        %2952 = vst.msk [vmem:[#allocation3 + $0xac] sm:$0xf] %vm1732, %v2871
        %2953 = vst.msk [vmem:[#allocation3 + $0xb8] sm:$0xf] %vm1732, %v2873
        %2954 = vst.msk [vmem:[#allocation3 + $0xc4] sm:$0xf] %vm1732, %v2875
        %2955 = vst.msk [vmem:[#allocation3 + $0xd0] sm:$0xf] %vm1732, %v2877
        %2956 = vst.msk [vmem:[#allocation3 + $0xdc] sm:$0xf] %vm1732, %v2879
        %2957 = vst.msk [vmem:[#allocation3 + $0xe8] sm:$0xf] %vm1732, %v2881
        %2958 = vst.msk [vmem:[#allocation3 + $0xf4] sm:$0xf] %vm1732, %v2883
        %2959 = vst.msk [vmem:[#allocation3 + $0x100] sm:$0xf] %vm1732, %v2885
        %2960 = vst.msk [vmem:[#allocation3 + $0x10c] sm:$0xf] %vm1732, %v2887
        %2961 = vst.msk [vmem:[#allocation3 + $0x118] sm:$0xf] %vm1732, %v2889
        %2962 = vst.msk [vmem:[#allocation3 + $0x124] sm:$0xf] %vm1732, %v2891
        %2963 = vst.msk [vmem:[#allocation3 + $0x130] sm:$0xf] %vm1732, %v2893
        %2964 = vst.msk [vmem:[#allocation3 + $0x13c] sm:$0xf] %vm1732, %v2895
        %2965 = vst.msk [vmem:[#allocation3 + $0x148] sm:$0xf] %vm1732, %v2897
        %2966 = vst.msk [vmem:[#allocation3 + $0x154] sm:$0xf] %vm1732, %v2899
        %2967 = vst.msk [vmem:[#allocation3 + $0x160] sm:$0xf] %vm1732, %v2901
        %2968 = vst.msk [vmem:[#allocation3 + $0x16c] sm:$0xf] %vm1732, %v2903
        %2969 = vst.msk [vmem:[#allocation3 + $0x178] sm:$0xf] %vm1732, %v2905
        %s2970 = scalar_lea.vmem [#allocation2], 24
        %v2971 = vld [vmem:[%s2970] sm:$0xf]
        %v2972 = vld [vmem:[%s2970 + $0x4] sm:$0xf]
        %v2973 = vld [vmem:[%s2970 + $0x8] sm:$0x1]
        %v2974 = vld [vmem:[%s2970 + $0xc] sm:$0xf]
        %v2975 = vld [vmem:[%s2970 + $0x10] sm:$0xf]
        %v2976 = vld [vmem:[%s2970 + $0x14] sm:$0x1]
        %v2977 = vld [vmem:[%s2970 + $0x18] sm:$0xf]
        %v2978 = vld [vmem:[%s2970 + $0x1c] sm:$0xf]
        %v2979 = vld [vmem:[%s2970 + $0x20] sm:$0x1]
        %v2980 = vld [vmem:[%s2970 + $0x24] sm:$0xf]
        %v2981 = vld [vmem:[%s2970 + $0x28] sm:$0xf]
        %v2982 = vld [vmem:[%s2970 + $0x2c] sm:$0x1]
        %v2983 = vld [vmem:[%s2970 + $0x30] sm:$0xf]
        %v2984 = vld [vmem:[%s2970 + $0x34] sm:$0xf]
        %v2985 = vld [vmem:[%s2970 + $0x38] sm:$0x1]
        %v2986 = vld [vmem:[%s2970 + $0x3c] sm:$0xf]
        %v2987 = vld [vmem:[%s2970 + $0x40] sm:$0xf]
        %v2988 = vld [vmem:[%s2970 + $0x44] sm:$0x1]
        %v2989 = vld [vmem:[%s2970 + $0x48] sm:$0xf]
        %v2990 = vld [vmem:[%s2970 + $0x4c] sm:$0xf]
        %v2991 = vld [vmem:[%s2970 + $0x50] sm:$0x1]
        %v2992 = vld [vmem:[%s2970 + $0x54] sm:$0xf]
        %v2993 = vld [vmem:[%s2970 + $0x58] sm:$0xf]
        %v2994 = vld [vmem:[%s2970 + $0x5c] sm:$0x1]
        %v2995 = vld [vmem:[%s2970 + $0x60] sm:$0xf]
        %v2996 = vld [vmem:[%s2970 + $0x64] sm:$0xf]
        %v2997 = vld [vmem:[%s2970 + $0x68] sm:$0x1]
        %v2998 = vld [vmem:[%s2970 + $0x6c] sm:$0xf]
        %v2999 = vld [vmem:[%s2970 + $0x70] sm:$0xf]
        %v3000 = vld [vmem:[%s2970 + $0x74] sm:$0x1]
        %v3001 = vld [vmem:[%s2970 + $0x78] sm:$0xf]
        %v3002 = vld [vmem:[%s2970 + $0x7c] sm:$0xf]
        %v3003 = vld [vmem:[%s2970 + $0x80] sm:$0x1]
        %v3004 = vld [vmem:[%s2970 + $0x84] sm:$0xf]
        %v3005 = vld [vmem:[%s2970 + $0x88] sm:$0xf]
        %v3006 = vld [vmem:[%s2970 + $0x8c] sm:$0x1]
        %v3007 = vld [vmem:[%s2970 + $0x90] sm:$0xf]
        %v3008 = vld [vmem:[%s2970 + $0x94] sm:$0xf]
        %v3009 = vld [vmem:[%s2970 + $0x98] sm:$0x1]
        %v3010 = vld [vmem:[%s2970 + $0x9c] sm:$0xf]
        %v3011 = vld [vmem:[%s2970 + $0xa0] sm:$0xf]
        %v3012 = vld [vmem:[%s2970 + $0xa4] sm:$0x1]
        %v3013 = vld [vmem:[%s2970 + $0xa8] sm:$0xf]
        %v3014 = vld [vmem:[%s2970 + $0xac] sm:$0xf]
        %v3015 = vld [vmem:[%s2970 + $0xb0] sm:$0x1]
        %v3016 = vld [vmem:[%s2970 + $0xb4] sm:$0xf]
        %v3017 = vld [vmem:[%s2970 + $0xb8] sm:$0xf]
        %v3018 = vld [vmem:[%s2970 + $0xbc] sm:$0x1]
        %3051 = vrot.lane.b32.xlu0 %v2971, 64
        %v3052 = vpop.permute.xlu0 %3051
        %3053 = vrot.lane.b32.xlu0 %v2972, 64
        %v3054 = vpop.permute.xlu0 %3053
        %3055 = vrot.lane.b32.xlu0 %v2974, 64
        %v3056 = vpop.permute.xlu0 %3055
        %3057 = vrot.lane.b32.xlu0 %v2975, 64
        %v3058 = vpop.permute.xlu0 %3057
        %3059 = vrot.lane.b32.xlu0 %v2977, 64
        %v3060 = vpop.permute.xlu0 %3059
        %3061 = vrot.lane.b32.xlu0 %v2978, 64
        %v3062 = vpop.permute.xlu0 %3061
        %3063 = vrot.lane.b32.xlu0 %v2980, 64
        %v3064 = vpop.permute.xlu0 %3063
        %3065 = vrot.lane.b32.xlu0 %v2981, 64
        %v3066 = vpop.permute.xlu0 %3065
        %3067 = vrot.lane.b32.xlu0 %v2983, 64
        %v3068 = vpop.permute.xlu0 %3067
        %3069 = vrot.lane.b32.xlu0 %v2984, 64
        %v3070 = vpop.permute.xlu0 %3069
        %3071 = vrot.lane.b32.xlu0 %v2986, 64
        %v3072 = vpop.permute.xlu0 %3071
        %3073 = vrot.lane.b32.xlu0 %v2987, 64
        %v3074 = vpop.permute.xlu0 %3073
        %3075 = vrot.lane.b32.xlu0 %v2989, 64
        %v3076 = vpop.permute.xlu0 %3075
        %3077 = vrot.lane.b32.xlu0 %v2990, 64
        %v3078 = vpop.permute.xlu0 %3077
        %3079 = vrot.lane.b32.xlu0 %v2992, 64
        %v3080 = vpop.permute.xlu0 %3079
        %3081 = vrot.lane.b32.xlu0 %v2993, 64
        %v3082 = vpop.permute.xlu0 %3081
        %3083 = vrot.lane.b32.xlu0 %v2995, 64
        %v3084 = vpop.permute.xlu0 %3083
        %3085 = vrot.lane.b32.xlu0 %v2996, 64
        %v3086 = vpop.permute.xlu0 %3085
        %3087 = vrot.lane.b32.xlu0 %v2998, 64
        %v3088 = vpop.permute.xlu0 %3087
        %3089 = vrot.lane.b32.xlu0 %v2999, 64
        %v3090 = vpop.permute.xlu0 %3089
        %3091 = vrot.lane.b32.xlu0 %v3001, 64
        %v3092 = vpop.permute.xlu0 %3091
        %3093 = vrot.lane.b32.xlu0 %v3002, 64
        %v3094 = vpop.permute.xlu0 %3093
        %3095 = vrot.lane.b32.xlu0 %v3004, 64
        %v3096 = vpop.permute.xlu0 %3095
        %3097 = vrot.lane.b32.xlu0 %v3005, 64
        %v3098 = vpop.permute.xlu0 %3097
        %3099 = vrot.lane.b32.xlu0 %v3007, 64
        %v3100 = vpop.permute.xlu0 %3099
        %3101 = vrot.lane.b32.xlu0 %v3008, 64
        %v3102 = vpop.permute.xlu0 %3101
        %3103 = vrot.lane.b32.xlu0 %v3010, 64
        %v3104 = vpop.permute.xlu0 %3103
        %3105 = vrot.lane.b32.xlu0 %v3011, 64
        %v3106 = vpop.permute.xlu0 %3105
        %3107 = vrot.lane.b32.xlu0 %v3013, 64
        %v3108 = vpop.permute.xlu0 %3107
        %3109 = vrot.lane.b32.xlu0 %v3014, 64
        %v3110 = vpop.permute.xlu0 %3109
        %3111 = vrot.lane.b32.xlu0 %v3016, 64
        %v3112 = vpop.permute.xlu0 %3111
        %3113 = vrot.lane.b32.xlu0 %v3017, 64
        %v3114 = vpop.permute.xlu0 %3113
        %3147 = vst.msk [vmem:[#allocation3 + $0x4] sm:$0xf] %vm2024, %v3052
        %3148 = vst.msk [vmem:[#allocation3 + $0x10] sm:$0xf] %vm2024, %v3054
        %3149 = vst.msk [vmem:[#allocation3 + $0x1c] sm:$0xf] %vm2024, %v3056
        %3150 = vst.msk [vmem:[#allocation3 + $0x28] sm:$0xf] %vm2024, %v3058
        %3151 = vst.msk [vmem:[#allocation3 + $0x34] sm:$0xf] %vm2024, %v3060
        %3152 = vst.msk [vmem:[#allocation3 + $0x40] sm:$0xf] %vm2024, %v3062
        %3153 = vst.msk [vmem:[#allocation3 + $0x4c] sm:$0xf] %vm2024, %v3064
        %3154 = vst.msk [vmem:[#allocation3 + $0x58] sm:$0xf] %vm2024, %v3066
        %3155 = vst.msk [vmem:[#allocation3 + $0x64] sm:$0xf] %vm2024, %v3068
        %3156 = vst.msk [vmem:[#allocation3 + $0x70] sm:$0xf] %vm2024, %v3070
        %3157 = vst.msk [vmem:[#allocation3 + $0x7c] sm:$0xf] %vm2024, %v3072
        %3158 = vst.msk [vmem:[#allocation3 + $0x88] sm:$0xf] %vm2024, %v3074
        %3159 = vst.msk [vmem:[#allocation3 + $0x94] sm:$0xf] %vm2024, %v3076
        %3160 = vst.msk [vmem:[#allocation3 + $0xa0] sm:$0xf] %vm2024, %v3078
        %3161 = vst.msk [vmem:[#allocation3 + $0xac] sm:$0xf] %vm2024, %v3080
        %3162 = vst.msk [vmem:[#allocation3 + $0xb8] sm:$0xf] %vm2024, %v3082
        %3163 = vst.msk [vmem:[#allocation3 + $0xc4] sm:$0xf] %vm2024, %v3084
        %3164 = vst.msk [vmem:[#allocation3 + $0xd0] sm:$0xf] %vm2024, %v3086
        %3165 = vst.msk [vmem:[#allocation3 + $0xdc] sm:$0xf] %vm2024, %v3088
        %3166 = vst.msk [vmem:[#allocation3 + $0xe8] sm:$0xf] %vm2024, %v3090
        %3167 = vst.msk [vmem:[#allocation3 + $0xf4] sm:$0xf] %vm2024, %v3092
        %3168 = vst.msk [vmem:[#allocation3 + $0x100] sm:$0xf] %vm2024, %v3094
        %3169 = vst.msk [vmem:[#allocation3 + $0x10c] sm:$0xf] %vm2024, %v3096
        %3170 = vst.msk [vmem:[#allocation3 + $0x118] sm:$0xf] %vm2024, %v3098
        %3171 = vst.msk [vmem:[#allocation3 + $0x124] sm:$0xf] %vm2024, %v3100
        %3172 = vst.msk [vmem:[#allocation3 + $0x130] sm:$0xf] %vm2024, %v3102
        %3173 = vst.msk [vmem:[#allocation3 + $0x13c] sm:$0xf] %vm2024, %v3104
        %3174 = vst.msk [vmem:[#allocation3 + $0x148] sm:$0xf] %vm2024, %v3106
        %3175 = vst.msk [vmem:[#allocation3 + $0x154] sm:$0xf] %vm2024, %v3108
        %3176 = vst.msk [vmem:[#allocation3 + $0x160] sm:$0xf] %vm2024, %v3110
        %3177 = vst.msk [vmem:[#allocation3 + $0x16c] sm:$0xf] %vm2024, %v3112
        %3178 = vst.msk [vmem:[#allocation3 + $0x178] sm:$0xf] %vm2024, %v3114
        %v3180 = vshrl.u32 %v2971, 16
        %v3182 = vrot.slane %v3180, 4
        %v3183 = vshll.u32 %v2971, 16
        %v3185 = vrot.slane %v3183, 5
        %v3186 = vor.u32 %v3182, %v3185
        %v3187 = vrot.slane %v3186, 4
        %v3189 = vshll.u32 %v2972, 16
        %v3191 = vrot.slane %v3189, 5
        %v3192 = vsel %vm1251, %v3187, %v3191
        %v3193 = vshrl.u32 %v2972, 16
        %v3195 = vrot.slane %v3193, 4
        %v3196 = vor.u32 %v3195, %v3191
        %v3197 = vrot.slane %v3196, 4
        %v3199 = vshll.u32 %v2973, 16
        %v3201 = vrot.slane %v3199, 5
        %v3202 = vsel %vm1251, %v3197, %v3201
        %v3204 = vshrl.u32 %v2974, 16
        %v3206 = vrot.slane %v3204, 4
        %v3207 = vshll.u32 %v2974, 16
        %v3209 = vrot.slane %v3207, 5
        %v3210 = vor.u32 %v3206, %v3209
        %v3211 = vrot.slane %v3210, 4
        %v3213 = vshll.u32 %v2975, 16
        %v3215 = vrot.slane %v3213, 5
        %v3216 = vsel %vm1251, %v3211, %v3215
        %v3217 = vshrl.u32 %v2975, 16
        %v3219 = vrot.slane %v3217, 4
        %v3220 = vor.u32 %v3219, %v3215
        %v3221 = vrot.slane %v3220, 4
        %v3223 = vshll.u32 %v2976, 16
        %v3225 = vrot.slane %v3223, 5
        %v3226 = vsel %vm1251, %v3221, %v3225
        %v3228 = vshrl.u32 %v2977, 16
        %v3230 = vrot.slane %v3228, 4
        %v3231 = vshll.u32 %v2977, 16
        %v3233 = vrot.slane %v3231, 5
        %v3234 = vor.u32 %v3230, %v3233
        %v3235 = vrot.slane %v3234, 4
        %v3237 = vshll.u32 %v2978, 16
        %v3239 = vrot.slane %v3237, 5
        %v3240 = vsel %vm1251, %v3235, %v3239
        %v3241 = vshrl.u32 %v2978, 16
        %v3243 = vrot.slane %v3241, 4
        %v3244 = vor.u32 %v3243, %v3239
        %v3245 = vrot.slane %v3244, 4
        %v3247 = vshll.u32 %v2979, 16
        %v3249 = vrot.slane %v3247, 5
        %v3250 = vsel %vm1251, %v3245, %v3249
        %v3252 = vshrl.u32 %v2980, 16
        %v3254 = vrot.slane %v3252, 4
        %v3255 = vshll.u32 %v2980, 16
        %v3257 = vrot.slane %v3255, 5
        %v3258 = vor.u32 %v3254, %v3257
        %v3259 = vrot.slane %v3258, 4
        %v3261 = vshll.u32 %v2981, 16
        %v3263 = vrot.slane %v3261, 5
        %v3264 = vsel %vm1251, %v3259, %v3263
        %v3265 = vshrl.u32 %v2981, 16
        %v3267 = vrot.slane %v3265, 4
        %v3268 = vor.u32 %v3267, %v3263
        %v3269 = vrot.slane %v3268, 4
        %v3271 = vshll.u32 %v2982, 16
        %v3273 = vrot.slane %v3271, 5
        %v3274 = vsel %vm1251, %v3269, %v3273
        %v3276 = vshrl.u32 %v2983, 16
        %v3278 = vrot.slane %v3276, 4
        %v3279 = vshll.u32 %v2983, 16
        %v3281 = vrot.slane %v3279, 5
        %v3282 = vor.u32 %v3278, %v3281
        %v3283 = vrot.slane %v3282, 4
        %v3285 = vshll.u32 %v2984, 16
        %v3287 = vrot.slane %v3285, 5
        %v3288 = vsel %vm1251, %v3283, %v3287
        %v3289 = vshrl.u32 %v2984, 16
        %v3291 = vrot.slane %v3289, 4
        %v3292 = vor.u32 %v3291, %v3287
        %v3293 = vrot.slane %v3292, 4
        %v3295 = vshll.u32 %v2985, 16
        %v3297 = vrot.slane %v3295, 5
        %v3298 = vsel %vm1251, %v3293, %v3297
        %v3300 = vshrl.u32 %v2986, 16
        %v3302 = vrot.slane %v3300, 4
        %v3303 = vshll.u32 %v2986, 16
        %v3305 = vrot.slane %v3303, 5
        %v3306 = vor.u32 %v3302, %v3305
        %v3307 = vrot.slane %v3306, 4
        %v3309 = vshll.u32 %v2987, 16
        %v3311 = vrot.slane %v3309, 5
        %v3312 = vsel %vm1251, %v3307, %v3311
        %v3313 = vshrl.u32 %v2987, 16
        %v3315 = vrot.slane %v3313, 4
        %v3316 = vor.u32 %v3315, %v3311
        %v3317 = vrot.slane %v3316, 4
        %v3319 = vshll.u32 %v2988, 16
        %v3321 = vrot.slane %v3319, 5
        %v3322 = vsel %vm1251, %v3317, %v3321
        %v3324 = vshrl.u32 %v2989, 16
        %v3326 = vrot.slane %v3324, 4
        %v3327 = vshll.u32 %v2989, 16
        %v3329 = vrot.slane %v3327, 5
        %v3330 = vor.u32 %v3326, %v3329
        %v3331 = vrot.slane %v3330, 4
        %v3333 = vshll.u32 %v2990, 16
        %v3335 = vrot.slane %v3333, 5
        %v3336 = vsel %vm1251, %v3331, %v3335
        %v3337 = vshrl.u32 %v2990, 16
        %v3339 = vrot.slane %v3337, 4
        %v3340 = vor.u32 %v3339, %v3335
        %v3341 = vrot.slane %v3340, 4
        %v3343 = vshll.u32 %v2991, 16
        %v3345 = vrot.slane %v3343, 5
        %v3346 = vsel %vm1251, %v3341, %v3345
        %v3348 = vshrl.u32 %v2992, 16
        %v3350 = vrot.slane %v3348, 4
        %v3351 = vshll.u32 %v2992, 16
        %v3353 = vrot.slane %v3351, 5
        %v3354 = vor.u32 %v3350, %v3353
        %v3355 = vrot.slane %v3354, 4
        %v3357 = vshll.u32 %v2993, 16
        %v3359 = vrot.slane %v3357, 5
        %v3360 = vsel %vm1251, %v3355, %v3359
        %v3361 = vshrl.u32 %v2993, 16
        %v3363 = vrot.slane %v3361, 4
        %v3364 = vor.u32 %v3363, %v3359
        %v3365 = vrot.slane %v3364, 4
        %v3367 = vshll.u32 %v2994, 16
        %v3369 = vrot.slane %v3367, 5
        %v3370 = vsel %vm1251, %v3365, %v3369
        %v3372 = vshrl.u32 %v2995, 16
        %v3374 = vrot.slane %v3372, 4
        %v3375 = vshll.u32 %v2995, 16
        %v3377 = vrot.slane %v3375, 5
        %v3378 = vor.u32 %v3374, %v3377
        %v3379 = vrot.slane %v3378, 4
        %v3381 = vshll.u32 %v2996, 16
        %v3383 = vrot.slane %v3381, 5
        %v3384 = vsel %vm1251, %v3379, %v3383
        %v3385 = vshrl.u32 %v2996, 16
        %v3387 = vrot.slane %v3385, 4
        %v3388 = vor.u32 %v3387, %v3383
        %v3389 = vrot.slane %v3388, 4
        %v3391 = vshll.u32 %v2997, 16
        %v3393 = vrot.slane %v3391, 5
        %v3394 = vsel %vm1251, %v3389, %v3393
        %v3396 = vshrl.u32 %v2998, 16
        %v3398 = vrot.slane %v3396, 4
        %v3399 = vshll.u32 %v2998, 16
        %v3401 = vrot.slane %v3399, 5
        %v3402 = vor.u32 %v3398, %v3401
        %v3403 = vrot.slane %v3402, 4
        %v3405 = vshll.u32 %v2999, 16
        %v3407 = vrot.slane %v3405, 5
        %v3408 = vsel %vm1251, %v3403, %v3407
        %v3409 = vshrl.u32 %v2999, 16
        %v3411 = vrot.slane %v3409, 4
        %v3412 = vor.u32 %v3411, %v3407
        %v3413 = vrot.slane %v3412, 4
        %v3415 = vshll.u32 %v3000, 16
        %v3417 = vrot.slane %v3415, 5
        %v3418 = vsel %vm1251, %v3413, %v3417
        %v3420 = vshrl.u32 %v3001, 16
        %v3422 = vrot.slane %v3420, 4
        %v3423 = vshll.u32 %v3001, 16
        %v3425 = vrot.slane %v3423, 5
        %v3426 = vor.u32 %v3422, %v3425
        %v3427 = vrot.slane %v3426, 4
        %v3429 = vshll.u32 %v3002, 16
        %v3431 = vrot.slane %v3429, 5
        %v3432 = vsel %vm1251, %v3427, %v3431
        %v3433 = vshrl.u32 %v3002, 16
        %v3435 = vrot.slane %v3433, 4
        %v3436 = vor.u32 %v3435, %v3431
        %v3437 = vrot.slane %v3436, 4
        %v3439 = vshll.u32 %v3003, 16
        %v3441 = vrot.slane %v3439, 5
        %v3442 = vsel %vm1251, %v3437, %v3441
        %v3444 = vshrl.u32 %v3004, 16
        %v3446 = vrot.slane %v3444, 4
        %v3447 = vshll.u32 %v3004, 16
        %v3449 = vrot.slane %v3447, 5
        %v3450 = vor.u32 %v3446, %v3449
        %v3451 = vrot.slane %v3450, 4
        %v3453 = vshll.u32 %v3005, 16
        %v3455 = vrot.slane %v3453, 5
        %v3456 = vsel %vm1251, %v3451, %v3455
        %v3457 = vshrl.u32 %v3005, 16
        %v3459 = vrot.slane %v3457, 4
        %v3460 = vor.u32 %v3459, %v3455
        %v3461 = vrot.slane %v3460, 4
        %v3463 = vshll.u32 %v3006, 16
        %v3465 = vrot.slane %v3463, 5
        %v3466 = vsel %vm1251, %v3461, %v3465
        %v3468 = vshrl.u32 %v3007, 16
        %v3470 = vrot.slane %v3468, 4
        %v3471 = vshll.u32 %v3007, 16
        %v3473 = vrot.slane %v3471, 5
        %v3474 = vor.u32 %v3470, %v3473
        %v3475 = vrot.slane %v3474, 4
        %v3477 = vshll.u32 %v3008, 16
        %v3479 = vrot.slane %v3477, 5
        %v3480 = vsel %vm1251, %v3475, %v3479
        %v3481 = vshrl.u32 %v3008, 16
        %v3483 = vrot.slane %v3481, 4
        %v3484 = vor.u32 %v3483, %v3479
        %v3485 = vrot.slane %v3484, 4
        %v3487 = vshll.u32 %v3009, 16
        %v3489 = vrot.slane %v3487, 5
        %v3490 = vsel %vm1251, %v3485, %v3489
        %v3492 = vshrl.u32 %v3010, 16
        %v3494 = vrot.slane %v3492, 4
        %v3495 = vshll.u32 %v3010, 16
        %v3497 = vrot.slane %v3495, 5
        %v3498 = vor.u32 %v3494, %v3497
        %v3499 = vrot.slane %v3498, 4
        %v3501 = vshll.u32 %v3011, 16
        %v3503 = vrot.slane %v3501, 5
        %v3504 = vsel %vm1251, %v3499, %v3503
        %v3505 = vshrl.u32 %v3011, 16
        %v3507 = vrot.slane %v3505, 4
        %v3508 = vor.u32 %v3507, %v3503
        %v3509 = vrot.slane %v3508, 4
        %v3511 = vshll.u32 %v3012, 16
        %v3513 = vrot.slane %v3511, 5
        %v3514 = vsel %vm1251, %v3509, %v3513
        %v3516 = vshrl.u32 %v3013, 16
        %v3518 = vrot.slane %v3516, 4
        %v3519 = vshll.u32 %v3013, 16
        %v3521 = vrot.slane %v3519, 5
        %v3522 = vor.u32 %v3518, %v3521
        %v3523 = vrot.slane %v3522, 4
        %v3525 = vshll.u32 %v3014, 16
        %v3527 = vrot.slane %v3525, 5
        %v3528 = vsel %vm1251, %v3523, %v3527
        %v3529 = vshrl.u32 %v3014, 16
        %v3531 = vrot.slane %v3529, 4
        %v3532 = vor.u32 %v3531, %v3527
        %v3533 = vrot.slane %v3532, 4
        %v3535 = vshll.u32 %v3015, 16
        %v3537 = vrot.slane %v3535, 5
        %v3538 = vsel %vm1251, %v3533, %v3537
        %v3540 = vshrl.u32 %v3016, 16
        %v3542 = vrot.slane %v3540, 4
        %v3543 = vshll.u32 %v3016, 16
        %v3545 = vrot.slane %v3543, 5
        %v3546 = vor.u32 %v3542, %v3545
        %v3547 = vrot.slane %v3546, 4
        %v3549 = vshll.u32 %v3017, 16
        %v3551 = vrot.slane %v3549, 5
        %v3552 = vsel %vm1251, %v3547, %v3551
        %v3553 = vshrl.u32 %v3017, 16
        %v3555 = vrot.slane %v3553, 4
        %v3556 = vor.u32 %v3555, %v3551
        %v3557 = vrot.slane %v3556, 4
        %v3559 = vshll.u32 %v3018, 16
        %v3561 = vrot.slane %v3559, 5
        %v3562 = vsel %vm1251, %v3557, %v3561
        %3563 = vrot.lane.b32.xlu0 %v3192, 96
        %v3564 = vpop.permute.xlu0 %3563
        %3565 = vrot.lane.b32.xlu0 %v3202, 96
        %v3566 = vpop.permute.xlu0 %3565
        %3567 = vrot.lane.b32.xlu0 %v3216, 96
        %v3568 = vpop.permute.xlu0 %3567
        %3569 = vrot.lane.b32.xlu0 %v3226, 96
        %v3570 = vpop.permute.xlu0 %3569
        %3571 = vrot.lane.b32.xlu0 %v3240, 96
        %v3572 = vpop.permute.xlu0 %3571
        %3573 = vrot.lane.b32.xlu0 %v3250, 96
        %v3574 = vpop.permute.xlu0 %3573
        %3575 = vrot.lane.b32.xlu0 %v3264, 96
        %v3576 = vpop.permute.xlu0 %3575
        %3577 = vrot.lane.b32.xlu0 %v3274, 96
        %v3578 = vpop.permute.xlu0 %3577
        %3579 = vrot.lane.b32.xlu0 %v3288, 96
        %v3580 = vpop.permute.xlu0 %3579
        %3581 = vrot.lane.b32.xlu0 %v3298, 96
        %v3582 = vpop.permute.xlu0 %3581
        %3583 = vrot.lane.b32.xlu0 %v3312, 96
        %v3584 = vpop.permute.xlu0 %3583
        %3585 = vrot.lane.b32.xlu0 %v3322, 96
        %v3586 = vpop.permute.xlu0 %3585
        %3587 = vrot.lane.b32.xlu0 %v3336, 96
        %v3588 = vpop.permute.xlu0 %3587
        %3589 = vrot.lane.b32.xlu0 %v3346, 96
        %v3590 = vpop.permute.xlu0 %3589
        %3591 = vrot.lane.b32.xlu0 %v3360, 96
        %v3592 = vpop.permute.xlu0 %3591
        %3593 = vrot.lane.b32.xlu0 %v3370, 96
        %v3594 = vpop.permute.xlu0 %3593
        %3595 = vrot.lane.b32.xlu0 %v3384, 96
        %v3596 = vpop.permute.xlu0 %3595
        %3597 = vrot.lane.b32.xlu0 %v3394, 96
        %v3598 = vpop.permute.xlu0 %3597
        %3599 = vrot.lane.b32.xlu0 %v3408, 96
        %v3600 = vpop.permute.xlu0 %3599
        %3601 = vrot.lane.b32.xlu0 %v3418, 96
        %v3602 = vpop.permute.xlu0 %3601
        %3603 = vrot.lane.b32.xlu0 %v3432, 96
        %v3604 = vpop.permute.xlu0 %3603
        %3605 = vrot.lane.b32.xlu0 %v3442, 96
        %v3606 = vpop.permute.xlu0 %3605
        %3607 = vrot.lane.b32.xlu0 %v3456, 96
        %v3608 = vpop.permute.xlu0 %3607
        %3609 = vrot.lane.b32.xlu0 %v3466, 96
        %v3610 = vpop.permute.xlu0 %3609
        %3611 = vrot.lane.b32.xlu0 %v3480, 96
        %v3612 = vpop.permute.xlu0 %3611
        %3613 = vrot.lane.b32.xlu0 %v3490, 96
        %v3614 = vpop.permute.xlu0 %3613
        %3615 = vrot.lane.b32.xlu0 %v3504, 96
        %v3616 = vpop.permute.xlu0 %3615
        %3617 = vrot.lane.b32.xlu0 %v3514, 96
        %v3618 = vpop.permute.xlu0 %3617
        %3619 = vrot.lane.b32.xlu0 %v3528, 96
        %v3620 = vpop.permute.xlu0 %3619
        %3621 = vrot.lane.b32.xlu0 %v3538, 96
        %v3622 = vpop.permute.xlu0 %3621
        %3623 = vrot.lane.b32.xlu0 %v3552, 96
        %v3624 = vpop.permute.xlu0 %3623
        %3625 = vrot.lane.b32.xlu0 %v3562, 96
        %v3626 = vpop.permute.xlu0 %3625
        %3659 = vst.msk [vmem:[#allocation3 + $0x4] sm:$0xf] %vm2233, %v3564
        %3660 = vst.msk [vmem:[#allocation3 + $0x10] sm:$0xf] %vm2233, %v3566
        %3661 = vst.msk [vmem:[#allocation3 + $0x1c] sm:$0xf] %vm2233, %v3568
        %3662 = vst.msk [vmem:[#allocation3 + $0x28] sm:$0xf] %vm2233, %v3570
        %3663 = vst.msk [vmem:[#allocation3 + $0x34] sm:$0xf] %vm2233, %v3572
        %3664 = vst.msk [vmem:[#allocation3 + $0x40] sm:$0xf] %vm2233, %v3574
        %3665 = vst.msk [vmem:[#allocation3 + $0x4c] sm:$0xf] %vm2233, %v3576
        %3666 = vst.msk [vmem:[#allocation3 + $0x58] sm:$0xf] %vm2233, %v3578
        %3667 = vst.msk [vmem:[#allocation3 + $0x64] sm:$0xf] %vm2233, %v3580
        %3668 = vst.msk [vmem:[#allocation3 + $0x70] sm:$0xf] %vm2233, %v3582
        %3669 = vst.msk [vmem:[#allocation3 + $0x7c] sm:$0xf] %vm2233, %v3584
        %3670 = vst.msk [vmem:[#allocation3 + $0x88] sm:$0xf] %vm2233, %v3586
        %3671 = vst.msk [vmem:[#allocation3 + $0x94] sm:$0xf] %vm2233, %v3588
        %3672 = vst.msk [vmem:[#allocation3 + $0xa0] sm:$0xf] %vm2233, %v3590
        %3673 = vst.msk [vmem:[#allocation3 + $0xac] sm:$0xf] %vm2233, %v3592
        %3674 = vst.msk [vmem:[#allocation3 + $0xb8] sm:$0xf] %vm2233, %v3594
        %3675 = vst.msk [vmem:[#allocation3 + $0xc4] sm:$0xf] %vm2233, %v3596
        %3676 = vst.msk [vmem:[#allocation3 + $0xd0] sm:$0xf] %vm2233, %v3598
        %3677 = vst.msk [vmem:[#allocation3 + $0xdc] sm:$0xf] %vm2233, %v3600
        %3678 = vst.msk [vmem:[#allocation3 + $0xe8] sm:$0xf] %vm2233, %v3602
        %3679 = vst.msk [vmem:[#allocation3 + $0xf4] sm:$0xf] %vm2233, %v3604
        %3680 = vst.msk [vmem:[#allocation3 + $0x100] sm:$0xf] %vm2233, %v3606
        %3681 = vst.msk [vmem:[#allocation3 + $0x10c] sm:$0xf] %vm2233, %v3608
        %3682 = vst.msk [vmem:[#allocation3 + $0x118] sm:$0xf] %vm2233, %v3610
        %3683 = vst.msk [vmem:[#allocation3 + $0x124] sm:$0xf] %vm2233, %v3612
        %3684 = vst.msk [vmem:[#allocation3 + $0x130] sm:$0xf] %vm2233, %v3614
        %3685 = vst.msk [vmem:[#allocation3 + $0x13c] sm:$0xf] %vm2233, %v3616
        %3686 = vst.msk [vmem:[#allocation3 + $0x148] sm:$0xf] %vm2233, %v3618
        %3687 = vst.msk [vmem:[#allocation3 + $0x154] sm:$0xf] %vm2233, %v3620
        %3688 = vst.msk [vmem:[#allocation3 + $0x160] sm:$0xf] %vm2233, %v3622
        %3689 = vst.msk [vmem:[#allocation3 + $0x16c] sm:$0xf] %vm2233, %v3624
        %3690 = vst.msk [vmem:[#allocation3 + $0x178] sm:$0xf] %vm2233, %v3626
        %v3707 = vrot.slane %v2971, 5
        %v3708 = vrot.slane %v3707, 4
        %v3709 = vrot.slane %v2972, 5
        %v3710 = vsel %vm1815, %v3708, %v3709
        %v3711 = vrot.slane %v3709, 4
        %v3712 = vrot.slane %v2973, 5
        %v3713 = vsel %vm1815, %v3711, %v3712
        %v3714 = vrot.slane %v2974, 5
        %v3715 = vrot.slane %v3714, 4
        %v3716 = vrot.slane %v2975, 5
        %v3717 = vsel %vm1815, %v3715, %v3716
        %v3718 = vrot.slane %v3716, 4
        %v3719 = vrot.slane %v2976, 5
        %v3720 = vsel %vm1815, %v3718, %v3719
        %v3721 = vrot.slane %v2977, 5
        %v3722 = vrot.slane %v3721, 4
        %v3723 = vrot.slane %v2978, 5
        %v3724 = vsel %vm1815, %v3722, %v3723
        %v3725 = vrot.slane %v3723, 4
        %v3726 = vrot.slane %v2979, 5
        %v3727 = vsel %vm1815, %v3725, %v3726
        %v3728 = vrot.slane %v2980, 5
        %v3729 = vrot.slane %v3728, 4
        %v3730 = vrot.slane %v2981, 5
        %v3731 = vsel %vm1815, %v3729, %v3730
        %v3732 = vrot.slane %v3730, 4
        %v3733 = vrot.slane %v2982, 5
        %v3734 = vsel %vm1815, %v3732, %v3733
        %v3735 = vrot.slane %v2983, 5
        %v3736 = vrot.slane %v3735, 4
        %v3737 = vrot.slane %v2984, 5
        %v3738 = vsel %vm1815, %v3736, %v3737
        %v3739 = vrot.slane %v3737, 4
        %v3740 = vrot.slane %v2985, 5
        %v3741 = vsel %vm1815, %v3739, %v3740
        %v3742 = vrot.slane %v2986, 5
        %v3743 = vrot.slane %v3742, 4
        %v3744 = vrot.slane %v2987, 5
        %v3745 = vsel %vm1815, %v3743, %v3744
        %v3746 = vrot.slane %v3744, 4
        %v3747 = vrot.slane %v2988, 5
        %v3748 = vsel %vm1815, %v3746, %v3747
        %v3749 = vrot.slane %v2989, 5
        %v3750 = vrot.slane %v3749, 4
        %v3751 = vrot.slane %v2990, 5
        %v3752 = vsel %vm1815, %v3750, %v3751
        %v3753 = vrot.slane %v3751, 4
        %v3754 = vrot.slane %v2991, 5
        %v3755 = vsel %vm1815, %v3753, %v3754
        %v3756 = vrot.slane %v2992, 5
        %v3757 = vrot.slane %v3756, 4
        %v3758 = vrot.slane %v2993, 5
        %v3759 = vsel %vm1815, %v3757, %v3758
        %v3760 = vrot.slane %v3758, 4
        %v3761 = vrot.slane %v2994, 5
        %v3762 = vsel %vm1815, %v3760, %v3761
        %v3763 = vrot.slane %v2995, 5
        %v3764 = vrot.slane %v3763, 4
        %v3765 = vrot.slane %v2996, 5
        %v3766 = vsel %vm1815, %v3764, %v3765
        %v3767 = vrot.slane %v3765, 4
        %v3768 = vrot.slane %v2997, 5
        %v3769 = vsel %vm1815, %v3767, %v3768
        %v3770 = vrot.slane %v2998, 5
        %v3771 = vrot.slane %v3770, 4
        %v3772 = vrot.slane %v2999, 5
        %v3773 = vsel %vm1815, %v3771, %v3772
        %v3774 = vrot.slane %v3772, 4
        %v3775 = vrot.slane %v3000, 5
        %v3776 = vsel %vm1815, %v3774, %v3775
        %v3777 = vrot.slane %v3001, 5
        %v3778 = vrot.slane %v3777, 4
        %v3779 = vrot.slane %v3002, 5
        %v3780 = vsel %vm1815, %v3778, %v3779
        %v3781 = vrot.slane %v3779, 4
        %v3782 = vrot.slane %v3003, 5
        %v3783 = vsel %vm1815, %v3781, %v3782
        %v3784 = vrot.slane %v3004, 5
        %v3785 = vrot.slane %v3784, 4
        %v3786 = vrot.slane %v3005, 5
        %v3787 = vsel %vm1815, %v3785, %v3786
        %v3788 = vrot.slane %v3786, 4
        %v3789 = vrot.slane %v3006, 5
        %v3790 = vsel %vm1815, %v3788, %v3789
        %v3791 = vrot.slane %v3007, 5
        %v3792 = vrot.slane %v3791, 4
        %v3793 = vrot.slane %v3008, 5
        %v3794 = vsel %vm1815, %v3792, %v3793
        %v3795 = vrot.slane %v3793, 4
        %v3796 = vrot.slane %v3009, 5
        %v3797 = vsel %vm1815, %v3795, %v3796
        %v3798 = vrot.slane %v3010, 5
        %v3799 = vrot.slane %v3798, 4
        %v3800 = vrot.slane %v3011, 5
        %v3801 = vsel %vm1815, %v3799, %v3800
        %v3802 = vrot.slane %v3800, 4
        %v3803 = vrot.slane %v3012, 5
        %v3804 = vsel %vm1815, %v3802, %v3803
        %v3805 = vrot.slane %v3013, 5
        %v3806 = vrot.slane %v3805, 4
        %v3807 = vrot.slane %v3014, 5
        %v3808 = vsel %vm1815, %v3806, %v3807
        %v3809 = vrot.slane %v3807, 4
        %v3810 = vrot.slane %v3015, 5
        %v3811 = vsel %vm1815, %v3809, %v3810
        %v3812 = vrot.slane %v3016, 5
        %v3813 = vrot.slane %v3812, 4
        %v3814 = vrot.slane %v3017, 5
        %v3815 = vsel %vm1815, %v3813, %v3814
        %v3816 = vrot.slane %v3814, 4
        %v3817 = vrot.slane %v3018, 5
        %v3818 = vsel %vm1815, %v3816, %v3817
        %3851 = vst.msk [vmem:[#allocation3 + $0x8] sm:$0xf] %vm1044, %v3710
        %3852 = vst.msk [vmem:[#allocation3 + $0x14] sm:$0xf] %vm1044, %v3713
        %3853 = vst.msk [vmem:[#allocation3 + $0x20] sm:$0xf] %vm1044, %v3717
        %3854 = vst.msk [vmem:[#allocation3 + $0x2c] sm:$0xf] %vm1044, %v3720
        %3855 = vst.msk [vmem:[#allocation3 + $0x38] sm:$0xf] %vm1044, %v3724
        %3856 = vst.msk [vmem:[#allocation3 + $0x44] sm:$0xf] %vm1044, %v3727
        %3857 = vst.msk [vmem:[#allocation3 + $0x50] sm:$0xf] %vm1044, %v3731
        %3858 = vst.msk [vmem:[#allocation3 + $0x5c] sm:$0xf] %vm1044, %v3734
        %3859 = vst.msk [vmem:[#allocation3 + $0x68] sm:$0xf] %vm1044, %v3738
        %3860 = vst.msk [vmem:[#allocation3 + $0x74] sm:$0xf] %vm1044, %v3741
        %3861 = vst.msk [vmem:[#allocation3 + $0x80] sm:$0xf] %vm1044, %v3745
        %3862 = vst.msk [vmem:[#allocation3 + $0x8c] sm:$0xf] %vm1044, %v3748
        %3863 = vst.msk [vmem:[#allocation3 + $0x98] sm:$0xf] %vm1044, %v3752
        %3864 = vst.msk [vmem:[#allocation3 + $0xa4] sm:$0xf] %vm1044, %v3755
        %3865 = vst.msk [vmem:[#allocation3 + $0xb0] sm:$0xf] %vm1044, %v3759
        %3866 = vst.msk [vmem:[#allocation3 + $0xbc] sm:$0xf] %vm1044, %v3762
        %3867 = vst.msk [vmem:[#allocation3 + $0xc8] sm:$0xf] %vm1044, %v3766
        %3868 = vst.msk [vmem:[#allocation3 + $0xd4] sm:$0xf] %vm1044, %v3769
        %3869 = vst.msk [vmem:[#allocation3 + $0xe0] sm:$0xf] %vm1044, %v3773
        %3870 = vst.msk [vmem:[#allocation3 + $0xec] sm:$0xf] %vm1044, %v3776
        %3871 = vst.msk [vmem:[#allocation3 + $0xf8] sm:$0xf] %vm1044, %v3780
        %3872 = vst.msk [vmem:[#allocation3 + $0x104] sm:$0xf] %vm1044, %v3783
        %3873 = vst.msk [vmem:[#allocation3 + $0x110] sm:$0xf] %vm1044, %v3787
        %3874 = vst.msk [vmem:[#allocation3 + $0x11c] sm:$0xf] %vm1044, %v3790
        %3875 = vst.msk [vmem:[#allocation3 + $0x128] sm:$0xf] %vm1044, %v3794
        %3876 = vst.msk [vmem:[#allocation3 + $0x134] sm:$0xf] %vm1044, %v3797
        %3877 = vst.msk [vmem:[#allocation3 + $0x140] sm:$0xf] %vm1044, %v3801
        %3878 = vst.msk [vmem:[#allocation3 + $0x14c] sm:$0xf] %vm1044, %v3804
        %3879 = vst.msk [vmem:[#allocation3 + $0x158] sm:$0xf] %vm1044, %v3808
        %3880 = vst.msk [vmem:[#allocation3 + $0x164] sm:$0xf] %vm1044, %v3811
        %3881 = vst.msk [vmem:[#allocation3 + $0x170] sm:$0xf] %vm1044, %v3815
        %3882 = vst.msk [vmem:[#allocation3 + $0x17c] sm:$0xf] %vm1044, %v3818
        %v3883 = vld [vmem:[#allocation3] sm:$0xff]
        %v3884 = vld [vmem:[#allocation3 + $0x8] sm:$0xf]
        %v3885 = vld [vmem:[#allocation3 + $0xc] sm:$0xff]
        %v3886 = vld [vmem:[#allocation3 + $0x14] sm:$0xf]
        %v3887 = vld [vmem:[#allocation3 + $0x18] sm:$0xff]
        %v3888 = vld [vmem:[#allocation3 + $0x20] sm:$0xf]
        %v3889 = vld [vmem:[#allocation3 + $0x24] sm:$0xff]
        %v3890 = vld [vmem:[#allocation3 + $0x2c] sm:$0xf]
        %v3891 = vld [vmem:[#allocation3 + $0x30] sm:$0xff]
        %v3892 = vld [vmem:[#allocation3 + $0x38] sm:$0xf]
        %v3893 = vld [vmem:[#allocation3 + $0x3c] sm:$0xff]
        %v3894 = vld [vmem:[#allocation3 + $0x44] sm:$0xf]
        %v3895 = vld [vmem:[#allocation3 + $0x48] sm:$0xff]
        %v3896 = vld [vmem:[#allocation3 + $0x50] sm:$0xf]
        %v3897 = vld [vmem:[#allocation3 + $0x54] sm:$0xff]
        %v3898 = vld [vmem:[#allocation3 + $0x5c] sm:$0xf]
        %v3899 = vld [vmem:[#allocation3 + $0x60] sm:$0xff]
        %v3900 = vld [vmem:[#allocation3 + $0x68] sm:$0xf]
        %v3901 = vld [vmem:[#allocation3 + $0x6c] sm:$0xff]
        %v3902 = vld [vmem:[#allocation3 + $0x74] sm:$0xf]
        %v3903 = vld [vmem:[#allocation3 + $0x78] sm:$0xff]
        %v3904 = vld [vmem:[#allocation3 + $0x80] sm:$0xf]
        %v3905 = vld [vmem:[#allocation3 + $0x84] sm:$0xff]
        %v3906 = vld [vmem:[#allocation3 + $0x8c] sm:$0xf]
        %v3907 = vld [vmem:[#allocation3 + $0x90] sm:$0xff]
        %v3908 = vld [vmem:[#allocation3 + $0x98] sm:$0xf]
        %v3909 = vld [vmem:[#allocation3 + $0x9c] sm:$0xff]
        %v3910 = vld [vmem:[#allocation3 + $0xa4] sm:$0xf]
        %v3911 = vld [vmem:[#allocation3 + $0xa8] sm:$0xff]
        %v3912 = vld [vmem:[#allocation3 + $0xb0] sm:$0xf]
        %v3913 = vld [vmem:[#allocation3 + $0xb4] sm:$0xff]
        %v3914 = vld [vmem:[#allocation3 + $0xbc] sm:$0xf]
        %v3915 = vld [vmem:[#allocation3 + $0xc0] sm:$0xff]
        %v3916 = vld [vmem:[#allocation3 + $0xc8] sm:$0xf]
        %v3917 = vld [vmem:[#allocation3 + $0xcc] sm:$0xff]
        %v3918 = vld [vmem:[#allocation3 + $0xd4] sm:$0xf]
        %v3919 = vld [vmem:[#allocation3 + $0xd8] sm:$0xff]
        %v3920 = vld [vmem:[#allocation3 + $0xe0] sm:$0xf]
        %v3921 = vld [vmem:[#allocation3 + $0xe4] sm:$0xff]
        %v3922 = vld [vmem:[#allocation3 + $0xec] sm:$0xf]
        %v3923 = vld [vmem:[#allocation3 + $0xf0] sm:$0xff]
        %v3924 = vld [vmem:[#allocation3 + $0xf8] sm:$0xf]
        %v3925 = vld [vmem:[#allocation3 + $0xfc] sm:$0xff]
        %v3926 = vld [vmem:[#allocation3 + $0x104] sm:$0xf]
        %v3927 = vld [vmem:[#allocation3 + $0x108] sm:$0xff]
        %v3928 = vld [vmem:[#allocation3 + $0x110] sm:$0xf]
        %v3929 = vld [vmem:[#allocation3 + $0x114] sm:$0xff]
        %v3930 = vld [vmem:[#allocation3 + $0x11c] sm:$0xf]
        %v3931 = vld [vmem:[#allocation3 + $0x120] sm:$0xff]
        %v3932 = vld [vmem:[#allocation3 + $0x128] sm:$0xf]
        %v3933 = vld [vmem:[#allocation3 + $0x12c] sm:$0xff]
        %v3934 = vld [vmem:[#allocation3 + $0x134] sm:$0xf]
        %v3935 = vld [vmem:[#allocation3 + $0x138] sm:$0xff]
        %v3936 = vld [vmem:[#allocation3 + $0x140] sm:$0xf]
        %v3937 = vld [vmem:[#allocation3 + $0x144] sm:$0xff]
        %v3938 = vld [vmem:[#allocation3 + $0x14c] sm:$0xf]
        %v3939 = vld [vmem:[#allocation3 + $0x150] sm:$0xff]
        %v3940 = vld [vmem:[#allocation3 + $0x158] sm:$0xf]
        %v3941 = vld [vmem:[#allocation3 + $0x15c] sm:$0xff]
        %v3942 = vld [vmem:[#allocation3 + $0x164] sm:$0xf]
        %v3943 = vld [vmem:[#allocation3 + $0x168] sm:$0xff]
        %v3944 = vld [vmem:[#allocation3 + $0x170] sm:$0xf]
        %v3945 = vld [vmem:[#allocation3 + $0x174] sm:$0xff]
        %v3946 = vld [vmem:[#allocation3 + $0x17c] sm:$0xf]
        %v3947 = vld [vmem:[#allocation7] sm:$0xf]
        %v3948 = vld [vmem:[#allocation7 + $0x4] sm:$0xf]
        %v3949 = vld [vmem:[#allocation7 + $0x8] sm:$0xf]
        %v3950 = vld [vmem:[#allocation7 + $0xc] sm:$0xf]
        %v3951 = vld [vmem:[#allocation7 + $0x10] sm:$0xf]
        %v3952 = vld [vmem:[#allocation7 + $0x14] sm:$0xf]
        %v3953 = vld [vmem:[#allocation7 + $0x18] sm:$0xf]
        %v3954 = vld [vmem:[#allocation7 + $0x1c] sm:$0xf]
        %v3955 = vld [vmem:[#allocation7 + $0x20] sm:$0xf]
        %v3956 = vld [vmem:[#allocation7 + $0x24] sm:$0xf]
        %v3957 = vld [vmem:[#allocation7 + $0x28] sm:$0xf]
        %v3958 = vld [vmem:[#allocation7 + $0x2c] sm:$0xf]
        %v3959 = vld [vmem:[#allocation7 + $0x30] sm:$0xf]
        %v3960 = vld [vmem:[#allocation7 + $0x34] sm:$0xf]
        %v3961 = vld [vmem:[#allocation7 + $0x38] sm:$0xf]
        %v3962 = vld [vmem:[#allocation7 + $0x3c] sm:$0xf]
        %v3963 = vld [vmem:[#allocation7 + $0x40] sm:$0xf]
        %v3964 = vld [vmem:[#allocation7 + $0x44] sm:$0xf]
        %v3965 = vld [vmem:[#allocation7 + $0x48] sm:$0xf]
        %v3966 = vld [vmem:[#allocation7 + $0x4c] sm:$0xf]
        %v3967 = vld [vmem:[#allocation7 + $0x50] sm:$0xf]
        %v3968 = vld [vmem:[#allocation7 + $0x54] sm:$0xf]
        %v3969 = vld [vmem:[#allocation7 + $0x58] sm:$0xf]
        %v3970 = vld [vmem:[#allocation7 + $0x5c] sm:$0xf]
        %v3971 = vld [vmem:[#allocation7 + $0x60] sm:$0xf]
        %v3972 = vld [vmem:[#allocation7 + $0x64] sm:$0xf]
        %v3973 = vld [vmem:[#allocation7 + $0x68] sm:$0xf]
        %v3974 = vld [vmem:[#allocation7 + $0x6c] sm:$0xf]
        %v3975 = vld [vmem:[#allocation7 + $0x70] sm:$0xf]
        %v3976 = vld [vmem:[#allocation7 + $0x74] sm:$0xf]
        %v3977 = vld [vmem:[#allocation7 + $0x78] sm:$0xf]
        %v3978 = vld [vmem:[#allocation7 + $0x7c] sm:$0xf]
        %v3979 = vld [vmem:[#allocation7 + $0x80] sm:$0xf]
        %v3980 = vld [vmem:[#allocation7 + $0x84] sm:$0xf]
        %v3981 = vld [vmem:[#allocation7 + $0x88] sm:$0xf]
        %v3982 = vld [vmem:[#allocation7 + $0x8c] sm:$0xf]
        %v3983 = vld [vmem:[%s5] sm:$0x1]
        %v3985 = vperm.slane %v3983, 0
        %v4051 = vunpack.c.l.b16 %v3883
        %v4052 = vunpack.c.h.b16 %v3883
        %v4053 = vunpack.c.l.b16 %v3884
        %v4054 = vunpack.c.l.b16 %v3885
        %v4055 = vunpack.c.h.b16 %v3885
        %v4056 = vunpack.c.l.b16 %v3886
        %v4057 = vunpack.c.l.b16 %v3887
        %v4058 = vunpack.c.h.b16 %v3887
        %v4059 = vunpack.c.l.b16 %v3888
        %v4060 = vunpack.c.l.b16 %v3889
        %v4061 = vunpack.c.h.b16 %v3889
        %v4062 = vunpack.c.l.b16 %v3890
        %v4063 = vunpack.c.l.b16 %v3891
        %v4064 = vunpack.c.h.b16 %v3891
        %v4065 = vunpack.c.l.b16 %v3892
        %v4066 = vunpack.c.l.b16 %v3893
        %v4067 = vunpack.c.h.b16 %v3893
        %v4068 = vunpack.c.l.b16 %v3894
        %v4069 = vunpack.c.l.b16 %v3895
        %v4070 = vunpack.c.h.b16 %v3895
        %v4071 = vunpack.c.l.b16 %v3896
        %v4072 = vunpack.c.l.b16 %v3897
        %v4073 = vunpack.c.h.b16 %v3897
        %v4074 = vunpack.c.l.b16 %v3898
        %v4075 = vunpack.c.l.b16 %v3899
        %v4076 = vunpack.c.h.b16 %v3899
        %v4077 = vunpack.c.l.b16 %v3900
        %v4078 = vunpack.c.l.b16 %v3901
        %v4079 = vunpack.c.h.b16 %v3901
        %v4080 = vunpack.c.l.b16 %v3902
        %v4081 = vunpack.c.l.b16 %v3903
        %v4082 = vunpack.c.h.b16 %v3903
        %v4083 = vunpack.c.l.b16 %v3904
        %v4084 = vunpack.c.l.b16 %v3905
        %v4085 = vunpack.c.h.b16 %v3905
        %v4086 = vunpack.c.l.b16 %v3906
        %v4087 = vunpack.c.l.b16 %v3907
        %v4088 = vunpack.c.h.b16 %v3907
        %v4089 = vunpack.c.l.b16 %v3908
        %v4090 = vunpack.c.l.b16 %v3909
        %v4091 = vunpack.c.h.b16 %v3909
        %v4092 = vunpack.c.l.b16 %v3910
        %v4093 = vunpack.c.l.b16 %v3911
        %v4094 = vunpack.c.h.b16 %v3911
        %v4095 = vunpack.c.l.b16 %v3912
        %v4096 = vunpack.c.l.b16 %v3913
        %v4097 = vunpack.c.h.b16 %v3913
        %v4098 = vunpack.c.l.b16 %v3914
        %v4099 = vunpack.c.l.b16 %v3915
        %v4100 = vunpack.c.h.b16 %v3915
        %v4101 = vunpack.c.l.b16 %v3916
        %v4102 = vunpack.c.l.b16 %v3917
        %v4103 = vunpack.c.h.b16 %v3917
        %v4104 = vunpack.c.l.b16 %v3918
        %v4105 = vunpack.c.l.b16 %v3919
        %v4106 = vunpack.c.h.b16 %v3919
        %v4107 = vunpack.c.l.b16 %v3920
        %v4108 = vunpack.c.l.b16 %v3921
        %v4109 = vunpack.c.h.b16 %v3921
        %v4110 = vunpack.c.l.b16 %v3922
        %v4111 = vunpack.c.l.b16 %v3923
        %v4112 = vunpack.c.h.b16 %v3923
        %v4113 = vunpack.c.l.b16 %v3924
        %v4114 = vunpack.c.l.b16 %v3925
        %v4115 = vunpack.c.h.b16 %v3925
        %v4116 = vunpack.c.l.b16 %v3926
        %v4117 = vunpack.c.l.b16 %v3927
        %v4118 = vunpack.c.h.b16 %v3927
        %v4119 = vunpack.c.l.b16 %v3928
        %v4120 = vunpack.c.l.b16 %v3929
        %v4121 = vunpack.c.h.b16 %v3929
        %v4122 = vunpack.c.l.b16 %v3930
        %v4123 = vunpack.c.l.b16 %v3931
        %v4124 = vunpack.c.h.b16 %v3931
        %v4125 = vunpack.c.l.b16 %v3932
        %v4126 = vunpack.c.l.b16 %v3933
        %v4127 = vunpack.c.h.b16 %v3933
        %v4128 = vunpack.c.l.b16 %v3934
        %v4129 = vunpack.c.l.b16 %v3935
        %v4130 = vunpack.c.h.b16 %v3935
        %v4131 = vunpack.c.l.b16 %v3936
        %v4132 = vunpack.c.l.b16 %v3937
        %v4133 = vunpack.c.h.b16 %v3937
        %v4134 = vunpack.c.l.b16 %v3938
        %v4135 = vunpack.c.l.b16 %v3939
        %v4136 = vunpack.c.h.b16 %v3939
        %v4137 = vunpack.c.l.b16 %v3940
        %v4138 = vunpack.c.l.b16 %v3941
        %v4139 = vunpack.c.h.b16 %v3941
        %v4140 = vunpack.c.l.b16 %v3942
        %v4141 = vunpack.c.l.b16 %v3943
        %v4142 = vunpack.c.h.b16 %v3943
        %v4143 = vunpack.c.l.b16 %v3944
        %v4144 = vunpack.c.l.b16 %v3945
        %v4145 = vunpack.c.h.b16 %v3945
        %v4146 = vunpack.c.l.b16 %v3946
        %v4147 = vpack.c.b16 %v4054, %v4051
        %v4148 = vpack.c.b16 %v4055, %v4052
        %v4149 = vpack.c.b16 %v4056, %v4053
        %v4150 = vpack.c.b16 %v4060, %v4057
        %v4151 = vpack.c.b16 %v4061, %v4058
        %v4152 = vpack.c.b16 %v4062, %v4059
        %v4153 = vpack.c.b16 %v4066, %v4063
        %v4154 = vpack.c.b16 %v4067, %v4064
        %v4155 = vpack.c.b16 %v4068, %v4065
        %v4156 = vpack.c.b16 %v4072, %v4069
        %v4157 = vpack.c.b16 %v4073, %v4070
        %v4158 = vpack.c.b16 %v4074, %v4071
        %v4159 = vpack.c.b16 %v4078, %v4075
        %v4160 = vpack.c.b16 %v4079, %v4076
        %v4161 = vpack.c.b16 %v4080, %v4077
        %v4162 = vpack.c.b16 %v4084, %v4081
        %v4163 = vpack.c.b16 %v4085, %v4082
        %v4164 = vpack.c.b16 %v4086, %v4083
        %v4165 = vpack.c.b16 %v4090, %v4087
        %v4166 = vpack.c.b16 %v4091, %v4088
        %v4167 = vpack.c.b16 %v4092, %v4089
        %v4168 = vpack.c.b16 %v4096, %v4093
        %v4169 = vpack.c.b16 %v4097, %v4094
        %v4170 = vpack.c.b16 %v4098, %v4095
        %v4171 = vpack.c.b16 %v4102, %v4099
        %v4172 = vpack.c.b16 %v4103, %v4100
        %v4173 = vpack.c.b16 %v4104, %v4101
        %v4174 = vpack.c.b16 %v4108, %v4105
        %v4175 = vpack.c.b16 %v4109, %v4106
        %v4176 = vpack.c.b16 %v4110, %v4107
        %v4177 = vpack.c.b16 %v4114, %v4111
        %v4178 = vpack.c.b16 %v4115, %v4112
        %v4179 = vpack.c.b16 %v4116, %v4113
        %v4180 = vpack.c.b16 %v4120, %v4117
        %v4181 = vpack.c.b16 %v4121, %v4118
        %v4182 = vpack.c.b16 %v4122, %v4119
        %v4183 = vpack.c.b16 %v4126, %v4123
        %v4184 = vpack.c.b16 %v4127, %v4124
        %v4185 = vpack.c.b16 %v4128, %v4125
        %v4186 = vpack.c.b16 %v4132, %v4129
        %v4187 = vpack.c.b16 %v4133, %v4130
        %v4188 = vpack.c.b16 %v4134, %v4131
        %v4189 = vpack.c.b16 %v4138, %v4135
        %v4190 = vpack.c.b16 %v4139, %v4136
        %v4191 = vpack.c.b16 %v4140, %v4137
        %v4192 = vpack.c.b16 %v4144, %v4141
        %v4193 = vpack.c.b16 %v4145, %v4142
        %v4194 = vpack.c.b16 %v4146, %v4143
        %v4263 = vunpack.c.l.b16 %v3947
        %v4264 = vunpack.c.l.b16 %v3948
        %v4265 = vunpack.c.l.b16 %v3949
        %v4266 = vunpack.c.l.b16 %v3950
        %v4267 = vunpack.c.l.b16 %v3951
        %v4268 = vunpack.c.l.b16 %v3952
        %v4269 = vunpack.c.l.b16 %v3953
        %v4270 = vunpack.c.l.b16 %v3954
        %v4271 = vunpack.c.l.b16 %v3955
        %v4272 = vunpack.c.l.b16 %v3956
        %v4273 = vunpack.c.l.b16 %v3957
        %v4274 = vunpack.c.l.b16 %v3958
        %v4275 = vunpack.c.l.b16 %v3959
        %v4276 = vunpack.c.l.b16 %v3960
        %v4277 = vunpack.c.l.b16 %v3961
        %v4278 = vunpack.c.l.b16 %v3962
        %v4279 = vunpack.c.l.b16 %v3963
        %v4280 = vunpack.c.l.b16 %v3964
        %v4281 = vunpack.c.l.b16 %v3965
        %v4282 = vunpack.c.l.b16 %v3966
        %v4283 = vunpack.c.l.b16 %v3967
        %v4284 = vunpack.c.l.b16 %v3968
        %v4285 = vunpack.c.l.b16 %v3969
        %v4286 = vunpack.c.l.b16 %v3970
        %v4287 = vunpack.c.l.b16 %v3971
        %v4288 = vunpack.c.l.b16 %v3972
        %v4289 = vunpack.c.l.b16 %v3973
        %v4290 = vunpack.c.l.b16 %v3974
        %v4291 = vunpack.c.l.b16 %v3975
        %v4292 = vunpack.c.l.b16 %v3976
        %v4293 = vunpack.c.l.b16 %v3977
        %v4294 = vunpack.c.l.b16 %v3978
        %v4295 = vunpack.c.l.b16 %v3979
        %v4296 = vunpack.c.l.b16 %v3980
        %v4297 = vunpack.c.l.b16 %v3981
        %v4298 = vunpack.c.l.b16 %v3982
        %v4299 = vpack.c.b16 %v4264, %v4263
        %v4300 = vpack.c.b16 %v4266, %v4265
        %v4301 = vpack.c.b16 %v4268, %v4267
        %v4302 = vpack.c.b16 %v4270, %v4269
        %v4303 = vpack.c.b16 %v4272, %v4271
        %v4304 = vpack.c.b16 %v4274, %v4273
        %v4305 = vpack.c.b16 %v4276, %v4275
        %v4306 = vpack.c.b16 %v4278, %v4277
        %v4307 = vpack.c.b16 %v4280, %v4279
        %v4308 = vpack.c.b16 %v4282, %v4281
        %v4309 = vpack.c.b16 %v4284, %v4283
        %v4310 = vpack.c.b16 %v4286, %v4285
        %v4311 = vpack.c.b16 %v4288, %v4287
        %v4312 = vpack.c.b16 %v4290, %v4289
        %v4313 = vpack.c.b16 %v4292, %v4291
        %v4314 = vpack.c.b16 %v4294, %v4293
        %v4315 = vpack.c.b16 %v4296, %v4295
        %v4316 = vpack.c.b16 %v4298, %v4297
        %vm4335 = vcmask 261120
        %v4337 = vsel %vm4335, %v4149, 0
        %v4340 = vsel %vm4335, %v4152, 0
        %v4343 = vsel %vm4335, %v4155, 0
        %v4346 = vsel %vm4335, %v4158, 0
        %v4349 = vsel %vm4335, %v4161, 0
        %v4352 = vsel %vm4335, %v4164, 0
        %v4355 = vsel %vm4335, %v4167, 0
        %v4358 = vsel %vm4335, %v4170, 0
        %v4361 = vsel %vm4335, %v4173, 0
        %v4364 = vsel %vm4335, %v4176, 0
        %v4367 = vsel %vm4335, %v4179, 0
        %v4370 = vsel %vm4335, %v4182, 0
        %v4373 = vsel %vm4335, %v4185, 0
        %v4376 = vsel %vm4335, %v4188, 0
        %v4379 = vsel %vm4335, %v4191, 0
        %v4382 = vsel %vm4335, %v4194, 0
        %4384 = vmatpush.bf16.msra.mxu0 %v4306
        %4385 = vmatpush.bf16.msra.mxu0 %v4305
        %4386 = vmatpush.bf16.msra.mxu0 %v4304
        %4387 = vmatpush.bf16.msra.mxu0 %v4303
        %4388 = vmatpush.bf16.msra.mxu0 %v4302
        %4389 = vmatpush.bf16.msra.mxu0 %v4301
        %4390 = vmatpush.bf16.msra.mxu0 %v4300
        %4391 = vmatpush.bf16.msra.mxu0 %v4299
        %4392 = vmatmul.bf16.gmra.mxu0 %v4147
        %v4393 = vpop.f32.mrf.mxu0
        %v4394 = vadd.f32 %v3985, %v4393
        %v4395 = vpop.f32.mrf.mxu0
        %v4396 = vadd.f32 %v3985, %v4395
        %4397 = vmatmul.bf16.gmra.mxu0 %v4150
        %v4398 = vpop.f32.mrf.mxu0
        %v4399 = vadd.f32 %v3985, %v4398
        %v4400 = vpop.f32.mrf.mxu0
        %v4401 = vadd.f32 %v3985, %v4400
        %4402 = vmatmul.bf16.gmra.mxu0 %v4153
        %v4403 = vpop.f32.mrf.mxu0
        %v4404 = vadd.f32 %v3985, %v4403
        %v4405 = vpop.f32.mrf.mxu0
        %v4406 = vadd.f32 %v3985, %v4405
        %4407 = vmatmul.bf16.gmra.mxu0 %v4156
        %v4408 = vpop.f32.mrf.mxu0
        %v4409 = vadd.f32 %v3985, %v4408
        %v4410 = vpop.f32.mrf.mxu0
        %v4411 = vadd.f32 %v3985, %v4410
        %4412 = vmatmul.bf16.gmra.mxu0 %v4159
        %v4413 = vpop.f32.mrf.mxu0
        %v4414 = vadd.f32 %v3985, %v4413
        %v4415 = vpop.f32.mrf.mxu0
        %v4416 = vadd.f32 %v3985, %v4415
        %4417 = vmatmul.bf16.gmra.mxu0 %v4162
        %v4418 = vpop.f32.mrf.mxu0
        %v4419 = vadd.f32 %v3985, %v4418
        %v4420 = vpop.f32.mrf.mxu0
        %v4421 = vadd.f32 %v3985, %v4420
        %4422 = vmatmul.bf16.gmra.mxu0 %v4165
        %v4423 = vpop.f32.mrf.mxu0
        %v4424 = vadd.f32 %v3985, %v4423
        %v4425 = vpop.f32.mrf.mxu0
        %v4426 = vadd.f32 %v3985, %v4425
        %4427 = vmatmul.bf16.gmra.mxu0 %v4168
        %v4428 = vpop.f32.mrf.mxu0
        %v4429 = vadd.f32 %v3985, %v4428
        %v4430 = vpop.f32.mrf.mxu0
        %v4431 = vadd.f32 %v3985, %v4430
        %4432 = vmatmul.bf16.gmra.mxu0 %v4171
        %v4433 = vpop.f32.mrf.mxu0
        %v4434 = vadd.f32 %v3985, %v4433
        %v4435 = vpop.f32.mrf.mxu0
        %v4436 = vadd.f32 %v3985, %v4435
        %4437 = vmatmul.bf16.gmra.mxu0 %v4174
        %v4438 = vpop.f32.mrf.mxu0
        %v4439 = vadd.f32 %v3985, %v4438
        %v4440 = vpop.f32.mrf.mxu0
        %v4441 = vadd.f32 %v3985, %v4440
        %4442 = vmatmul.bf16.gmra.mxu0 %v4177
        %v4443 = vpop.f32.mrf.mxu0
        %v4444 = vadd.f32 %v3985, %v4443
        %v4445 = vpop.f32.mrf.mxu0
        %v4446 = vadd.f32 %v3985, %v4445
        %4447 = vmatmul.bf16.gmra.mxu0 %v4180
        %v4448 = vpop.f32.mrf.mxu0
        %v4449 = vadd.f32 %v3985, %v4448
        %v4450 = vpop.f32.mrf.mxu0
        %v4451 = vadd.f32 %v3985, %v4450
        %4452 = vmatmul.bf16.gmra.mxu0 %v4183
        %v4453 = vpop.f32.mrf.mxu0
        %v4454 = vadd.f32 %v3985, %v4453
        %v4455 = vpop.f32.mrf.mxu0
        %v4456 = vadd.f32 %v3985, %v4455
        %4457 = vmatmul.bf16.gmra.mxu0 %v4186
        %v4458 = vpop.f32.mrf.mxu0
        %v4459 = vadd.f32 %v3985, %v4458
        %v4460 = vpop.f32.mrf.mxu0
        %v4461 = vadd.f32 %v3985, %v4460
        %4462 = vmatmul.bf16.gmra.mxu0 %v4189
        %v4463 = vpop.f32.mrf.mxu0
        %v4464 = vadd.f32 %v3985, %v4463
        %v4465 = vpop.f32.mrf.mxu0
        %v4466 = vadd.f32 %v3985, %v4465
        %4467 = vmatmul.bf16.gmra.mxu0 %v4192
        %v4468 = vpop.f32.mrf.mxu0
        %v4469 = vadd.f32 %v3985, %v4468
        %v4470 = vpop.f32.mrf.mxu0
        %v4471 = vadd.f32 %v3985, %v4470
        %4472 = vdwg.mxu0
        %4473 = vmatpush.bf16.msra.mxu0 %v4314
        %4474 = vmatpush.bf16.msra.mxu0 %v4313
        %4475 = vmatpush.bf16.msra.mxu0 %v4312
        %4476 = vmatpush.bf16.msra.mxu0 %v4311
        %4477 = vmatpush.bf16.msra.mxu0 %v4310
        %4478 = vmatpush.bf16.msra.mxu0 %v4309
        %4479 = vmatpush.bf16.msra.mxu0 %v4308
        %4480 = vmatpush.bf16.msra.mxu0 %v4307
        %4481 = vmatmul.bf16.gmra.mxu0 %v4148
        %v4482 = vpop.f32.mrf.mxu0
        %v4483 = vadd.f32 %v4394, %v4482
        %v4484 = vpop.f32.mrf.mxu0
        %v4485 = vadd.f32 %v4396, %v4484
        %4486 = vmatmul.bf16.gmra.mxu0 %v4151
        %v4487 = vpop.f32.mrf.mxu0
        %v4488 = vadd.f32 %v4399, %v4487
        %v4489 = vpop.f32.mrf.mxu0
        %v4490 = vadd.f32 %v4401, %v4489
        %4491 = vmatmul.bf16.gmra.mxu0 %v4154
        %v4492 = vpop.f32.mrf.mxu0
        %v4493 = vadd.f32 %v4404, %v4492
        %v4494 = vpop.f32.mrf.mxu0
        %v4495 = vadd.f32 %v4406, %v4494
        %4496 = vmatmul.bf16.gmra.mxu0 %v4157
        %v4497 = vpop.f32.mrf.mxu0
        %v4498 = vadd.f32 %v4409, %v4497
        %v4499 = vpop.f32.mrf.mxu0
        %v4500 = vadd.f32 %v4411, %v4499
        %4501 = vmatmul.bf16.gmra.mxu0 %v4160
        %v4502 = vpop.f32.mrf.mxu0
        %v4503 = vadd.f32 %v4414, %v4502
        %v4504 = vpop.f32.mrf.mxu0
        %v4505 = vadd.f32 %v4416, %v4504
        %4506 = vmatmul.bf16.gmra.mxu0 %v4163
        %v4507 = vpop.f32.mrf.mxu0
        %v4508 = vadd.f32 %v4419, %v4507
        %v4509 = vpop.f32.mrf.mxu0
        %v4510 = vadd.f32 %v4421, %v4509
        %4511 = vmatmul.bf16.gmra.mxu0 %v4166
        %v4512 = vpop.f32.mrf.mxu0
        %v4513 = vadd.f32 %v4424, %v4512
        %v4514 = vpop.f32.mrf.mxu0
        %v4515 = vadd.f32 %v4426, %v4514
        %4516 = vmatmul.bf16.gmra.mxu0 %v4169
        %v4517 = vpop.f32.mrf.mxu0
        %v4518 = vadd.f32 %v4429, %v4517
        %v4519 = vpop.f32.mrf.mxu0
        %v4520 = vadd.f32 %v4431, %v4519
        %4521 = vmatmul.bf16.gmra.mxu0 %v4172
        %v4522 = vpop.f32.mrf.mxu0
        %v4523 = vadd.f32 %v4434, %v4522
        %v4524 = vpop.f32.mrf.mxu0
        %v4525 = vadd.f32 %v4436, %v4524
        %4526 = vmatmul.bf16.gmra.mxu0 %v4175
        %v4527 = vpop.f32.mrf.mxu0
        %v4528 = vadd.f32 %v4439, %v4527
        %v4529 = vpop.f32.mrf.mxu0
        %v4530 = vadd.f32 %v4441, %v4529
        %4531 = vmatmul.bf16.gmra.mxu0 %v4178
        %v4532 = vpop.f32.mrf.mxu0
        %v4533 = vadd.f32 %v4444, %v4532
        %v4534 = vpop.f32.mrf.mxu0
        %v4535 = vadd.f32 %v4446, %v4534
        %4536 = vmatmul.bf16.gmra.mxu0 %v4181
        %v4537 = vpop.f32.mrf.mxu0
        %v4538 = vadd.f32 %v4449, %v4537
        %v4539 = vpop.f32.mrf.mxu0
        %v4540 = vadd.f32 %v4451, %v4539
        %4541 = vmatmul.bf16.gmra.mxu0 %v4184
        %v4542 = vpop.f32.mrf.mxu0
        %v4543 = vadd.f32 %v4454, %v4542
        %v4544 = vpop.f32.mrf.mxu0
        %v4545 = vadd.f32 %v4456, %v4544
        %4546 = vmatmul.bf16.gmra.mxu0 %v4187
        %v4547 = vpop.f32.mrf.mxu0
        %v4548 = vadd.f32 %v4459, %v4547
        %v4549 = vpop.f32.mrf.mxu0
        %v4550 = vadd.f32 %v4461, %v4549
        %4551 = vmatmul.bf16.gmra.mxu0 %v4190
        %v4552 = vpop.f32.mrf.mxu0
        %v4553 = vadd.f32 %v4464, %v4552
        %v4554 = vpop.f32.mrf.mxu0
        %v4555 = vadd.f32 %v4466, %v4554
        %4556 = vmatmul.bf16.gmra.mxu0 %v4193
        %v4557 = vpop.f32.mrf.mxu0
        %v4558 = vadd.f32 %v4469, %v4557
        %v4559 = vpop.f32.mrf.mxu0
        %v4560 = vadd.f32 %v4471, %v4559
        %4561 = vdwg.mxu0
        %4562 = vmatpush.bf16.msra.mxu0 0
        %4563 = vmatpush.bf16.msra.mxu0 0
        %4564 = vmatpush.bf16.msra.mxu0 0
        %4565 = vmatpush.bf16.msra.mxu0 0
        %4566 = vmatpush.bf16.msra.mxu0 0
        %4567 = vmatpush.bf16.msra.mxu0 0
        %4568 = vmatpush.bf16.msra.mxu0 %v4316
        %4569 = vmatpush.bf16.msra.mxu0 %v4315
        %4570 = vmatmul.bf16.gmra.mxu0 %v4337
        %v4571 = vpop.f32.mrf.mxu0
        %v4572 = vadd.f32 %v4483, %v4571
        %v4573 = vpop.f32.mrf.mxu0
        %v4574 = vadd.f32 %v4485, %v4573
        %4575 = vmatmul.bf16.gmra.mxu0 %v4340
        %v4576 = vpop.f32.mrf.mxu0
        %v4577 = vadd.f32 %v4488, %v4576
        %v4578 = vpop.f32.mrf.mxu0
        %v4579 = vadd.f32 %v4490, %v4578
        %4580 = vmatmul.bf16.gmra.mxu0 %v4343
        %v4581 = vpop.f32.mrf.mxu0
        %v4582 = vadd.f32 %v4493, %v4581
        %v4583 = vpop.f32.mrf.mxu0
        %v4584 = vadd.f32 %v4495, %v4583
        %4585 = vmatmul.bf16.gmra.mxu0 %v4346
        %v4586 = vpop.f32.mrf.mxu0
        %v4587 = vadd.f32 %v4498, %v4586
        %v4588 = vpop.f32.mrf.mxu0
        %v4589 = vadd.f32 %v4500, %v4588
        %4590 = vmatmul.bf16.gmra.mxu0 %v4349
        %v4591 = vpop.f32.mrf.mxu0
        %v4592 = vadd.f32 %v4503, %v4591
        %v4593 = vpop.f32.mrf.mxu0
        %v4594 = vadd.f32 %v4505, %v4593
        %4595 = vmatmul.bf16.gmra.mxu0 %v4352
        %v4596 = vpop.f32.mrf.mxu0
        %v4597 = vadd.f32 %v4508, %v4596
        %v4598 = vpop.f32.mrf.mxu0
        %v4599 = vadd.f32 %v4510, %v4598
        %4600 = vmatmul.bf16.gmra.mxu0 %v4355
        %v4601 = vpop.f32.mrf.mxu0
        %v4602 = vadd.f32 %v4513, %v4601
        %v4603 = vpop.f32.mrf.mxu0
        %v4604 = vadd.f32 %v4515, %v4603
        %4605 = vmatmul.bf16.gmra.mxu0 %v4358
        %v4606 = vpop.f32.mrf.mxu0
        %v4607 = vadd.f32 %v4518, %v4606
        %v4608 = vpop.f32.mrf.mxu0
        %v4609 = vadd.f32 %v4520, %v4608
        %4610 = vmatmul.bf16.gmra.mxu0 %v4361
        %v4611 = vpop.f32.mrf.mxu0
        %v4612 = vadd.f32 %v4523, %v4611
        %v4613 = vpop.f32.mrf.mxu0
        %v4614 = vadd.f32 %v4525, %v4613
        %4615 = vmatmul.bf16.gmra.mxu0 %v4364
        %v4616 = vpop.f32.mrf.mxu0
        %v4617 = vadd.f32 %v4528, %v4616
        %v4618 = vpop.f32.mrf.mxu0
        %v4619 = vadd.f32 %v4530, %v4618
        %4620 = vmatmul.bf16.gmra.mxu0 %v4367
        %v4621 = vpop.f32.mrf.mxu0
        %v4622 = vadd.f32 %v4533, %v4621
        %v4623 = vpop.f32.mrf.mxu0
        %v4624 = vadd.f32 %v4535, %v4623
        %4625 = vmatmul.bf16.gmra.mxu0 %v4370
        %v4626 = vpop.f32.mrf.mxu0
        %v4627 = vadd.f32 %v4538, %v4626
        %v4628 = vpop.f32.mrf.mxu0
        %v4629 = vadd.f32 %v4540, %v4628
        %4630 = vmatmul.bf16.gmra.mxu0 %v4373
        %v4631 = vpop.f32.mrf.mxu0
        %v4632 = vadd.f32 %v4543, %v4631
        %v4633 = vpop.f32.mrf.mxu0
        %v4634 = vadd.f32 %v4545, %v4633
        %4635 = vmatmul.bf16.gmra.mxu0 %v4376
        %v4636 = vpop.f32.mrf.mxu0
        %v4637 = vadd.f32 %v4548, %v4636
        %v4638 = vpop.f32.mrf.mxu0
        %v4639 = vadd.f32 %v4550, %v4638
        %4640 = vmatmul.bf16.gmra.mxu0 %v4379
        %v4641 = vpop.f32.mrf.mxu0
        %v4642 = vadd.f32 %v4553, %v4641
        %v4643 = vpop.f32.mrf.mxu0
        %v4644 = vadd.f32 %v4555, %v4643
        %4645 = vmatmul.bf16.gmra.mxu0 %v4382
        %v4646 = vpop.f32.mrf.mxu0
        %v4647 = vadd.f32 %v4558, %v4646
        %v4648 = vpop.f32.mrf.mxu0
        %v4649 = vadd.f32 %v4560, %v4648
        %4650 = vdwg.mxu0
        %v4651 = vmax.f32 %v4572, 0.0
        %v4652 = vmax.f32 %v4574, 0.0
        %v4653 = vmax.f32 %v4577, 0.0
        %v4654 = vmax.f32 %v4579, 0.0
        %v4655 = vmax.f32 %v4582, 0.0
        %v4656 = vmax.f32 %v4584, 0.0
        %v4657 = vmax.f32 %v4587, 0.0
        %v4658 = vmax.f32 %v4589, 0.0
        %v4659 = vmax.f32 %v4592, 0.0
        %v4660 = vmax.f32 %v4594, 0.0
        %v4661 = vmax.f32 %v4597, 0.0
        %v4662 = vmax.f32 %v4599, 0.0
        %v4663 = vmax.f32 %v4602, 0.0
        %v4664 = vmax.f32 %v4604, 0.0
        %v4665 = vmax.f32 %v4607, 0.0
        %v4666 = vmax.f32 %v4609, 0.0
        %v4667 = vmax.f32 %v4612, 0.0
        %v4668 = vmax.f32 %v4614, 0.0
        %v4669 = vmax.f32 %v4617, 0.0
        %v4670 = vmax.f32 %v4619, 0.0
        %v4671 = vmax.f32 %v4622, 0.0
        %v4672 = vmax.f32 %v4624, 0.0
        %v4673 = vmax.f32 %v4627, 0.0
        %v4674 = vmax.f32 %v4629, 0.0
        %v4675 = vmax.f32 %v4632, 0.0
        %v4676 = vmax.f32 %v4634, 0.0
        %v4677 = vmax.f32 %v4637, 0.0
        %v4678 = vmax.f32 %v4639, 0.0
        %v4679 = vmax.f32 %v4642, 0.0
        %v4680 = vmax.f32 %v4644, 0.0
        %v4681 = vmax.f32 %v4647, 0.0
        %v4682 = vmax.f32 %v4649, 0.0
        %v4683 = vpack.c.bf16 %v4652, %v4651
        %v4684 = vpack.c.bf16 %v4654, %v4653
        %v4685 = vpack.c.bf16 %v4656, %v4655
        %v4686 = vpack.c.bf16 %v4658, %v4657
        %v4687 = vpack.c.bf16 %v4660, %v4659
        %v4688 = vpack.c.bf16 %v4662, %v4661
        %v4689 = vpack.c.bf16 %v4664, %v4663
        %v4690 = vpack.c.bf16 %v4666, %v4665
        %v4691 = vpack.c.bf16 %v4668, %v4667
        %v4692 = vpack.c.bf16 %v4670, %v4669
        %v4693 = vpack.c.bf16 %v4672, %v4671
        %v4694 = vpack.c.bf16 %v4674, %v4673
        %v4695 = vpack.c.bf16 %v4676, %v4675
        %v4696 = vpack.c.bf16 %v4678, %v4677
        %v4697 = vpack.c.bf16 %v4680, %v4679
        %v4698 = vpack.c.bf16 %v4682, %v4681
        %v4699 = vld [vmem:[%s3] sm:$0xf]
        %v4700 = vld [vmem:[%s3 + $0x4] sm:$0xf]
        %v4701 = vld [vmem:[%s3 + $0x8] sm:$0xf]
        %v4702 = vld [vmem:[%s3 + $0xc] sm:$0xf]
        %v4703 = vld [vmem:[%s6] sm:$0x1]
        %v4705 = vperm.slane %v4703, 0
        %v4711 = vunpack.c.l.b16 %v4699
        %v4712 = vunpack.c.l.b16 %v4700
        %v4713 = vunpack.c.l.b16 %v4701
        %v4714 = vunpack.c.l.b16 %v4702
        %v4715 = vpack.c.b16 %v4712, %v4711
        %v4716 = vpack.c.b16 %v4714, %v4713
        %v4720 = vsel %vm4335, %v4683, 0
        %v4723 = vsel %vm4335, %v4684, 0
        %v4726 = vsel %vm4335, %v4685, 0
        %v4729 = vsel %vm4335, %v4686, 0
        %v4732 = vsel %vm4335, %v4687, 0
        %v4735 = vsel %vm4335, %v4688, 0
        %v4738 = vsel %vm4335, %v4689, 0
        %v4741 = vsel %vm4335, %v4690, 0
        %v4744 = vsel %vm4335, %v4691, 0
        %v4747 = vsel %vm4335, %v4692, 0
        %v4750 = vsel %vm4335, %v4693, 0
        %v4753 = vsel %vm4335, %v4694, 0
        %v4756 = vsel %vm4335, %v4695, 0
        %v4759 = vsel %vm4335, %v4696, 0
        %v4762 = vsel %vm4335, %v4697, 0
        %v4765 = vsel %vm4335, %v4698, 0
        %4767 = vmatpush.bf16.msra.mxu0 0
        %4768 = vmatpush.bf16.msra.mxu0 0
        %4769 = vmatpush.bf16.msra.mxu0 0
        %4770 = vmatpush.bf16.msra.mxu0 0
        %4771 = vmatpush.bf16.msra.mxu0 0
        %4772 = vmatpush.bf16.msra.mxu0 0
        %4773 = vmatpush.bf16.msra.mxu0 %v4716
        %4774 = vmatpush.bf16.msra.mxu0 %v4715
        %4775 = vmatmul.bf16.gmra.mxu0 %v4720
        %v4776 = vpop.f32.mrf.mxu0
        %v4777 = vadd.f32 %v4705, %v4776
        %v4778 = vpop.f32.mrf.mxu0
        %v4779 = vadd.f32 %v4705, %v4778
        %4780 = vmatmul.bf16.gmra.mxu0 %v4723
        %v4781 = vpop.f32.mrf.mxu0
        %v4782 = vadd.f32 %v4705, %v4781
        %v4783 = vpop.f32.mrf.mxu0
        %v4784 = vadd.f32 %v4705, %v4783
        %4785 = vmatmul.bf16.gmra.mxu0 %v4726
        %v4786 = vpop.f32.mrf.mxu0
        %v4787 = vadd.f32 %v4705, %v4786
        %v4788 = vpop.f32.mrf.mxu0
        %v4789 = vadd.f32 %v4705, %v4788
        %4790 = vmatmul.bf16.gmra.mxu0 %v4729
        %v4791 = vpop.f32.mrf.mxu0
        %v4792 = vadd.f32 %v4705, %v4791
        %v4793 = vpop.f32.mrf.mxu0
        %v4794 = vadd.f32 %v4705, %v4793
        %4795 = vmatmul.bf16.gmra.mxu0 %v4732
        %v4796 = vpop.f32.mrf.mxu0
        %v4797 = vadd.f32 %v4705, %v4796
        %v4798 = vpop.f32.mrf.mxu0
        %v4799 = vadd.f32 %v4705, %v4798
        %4800 = vmatmul.bf16.gmra.mxu0 %v4735
        %v4801 = vpop.f32.mrf.mxu0
        %v4802 = vadd.f32 %v4705, %v4801
        %v4803 = vpop.f32.mrf.mxu0
        %v4804 = vadd.f32 %v4705, %v4803
        %4805 = vmatmul.bf16.gmra.mxu0 %v4738
        %v4806 = vpop.f32.mrf.mxu0
        %v4807 = vadd.f32 %v4705, %v4806
        %v4808 = vpop.f32.mrf.mxu0
        %v4809 = vadd.f32 %v4705, %v4808
        %4810 = vmatmul.bf16.gmra.mxu0 %v4741
        %v4811 = vpop.f32.mrf.mxu0
        %v4812 = vadd.f32 %v4705, %v4811
        %v4813 = vpop.f32.mrf.mxu0
        %v4814 = vadd.f32 %v4705, %v4813
        %4815 = vmatmul.bf16.gmra.mxu0 %v4744
        %v4816 = vpop.f32.mrf.mxu0
        %v4817 = vadd.f32 %v4705, %v4816
        %v4818 = vpop.f32.mrf.mxu0
        %v4819 = vadd.f32 %v4705, %v4818
        %4820 = vmatmul.bf16.gmra.mxu0 %v4747
        %v4821 = vpop.f32.mrf.mxu0
        %v4822 = vadd.f32 %v4705, %v4821
        %v4823 = vpop.f32.mrf.mxu0
        %v4824 = vadd.f32 %v4705, %v4823
        %4825 = vmatmul.bf16.gmra.mxu0 %v4750
        %v4826 = vpop.f32.mrf.mxu0
        %v4827 = vadd.f32 %v4705, %v4826
        %v4828 = vpop.f32.mrf.mxu0
        %v4829 = vadd.f32 %v4705, %v4828
        %4830 = vmatmul.bf16.gmra.mxu0 %v4753
        %v4831 = vpop.f32.mrf.mxu0
        %v4832 = vadd.f32 %v4705, %v4831
        %v4833 = vpop.f32.mrf.mxu0
        %v4834 = vadd.f32 %v4705, %v4833
        %4835 = vmatmul.bf16.gmra.mxu0 %v4756
        %v4836 = vpop.f32.mrf.mxu0
        %v4837 = vadd.f32 %v4705, %v4836
        %v4838 = vpop.f32.mrf.mxu0
        %v4839 = vadd.f32 %v4705, %v4838
        %4840 = vmatmul.bf16.gmra.mxu0 %v4759
        %v4841 = vpop.f32.mrf.mxu0
        %v4842 = vadd.f32 %v4705, %v4841
        %v4843 = vpop.f32.mrf.mxu0
        %v4844 = vadd.f32 %v4705, %v4843
        %4845 = vmatmul.bf16.gmra.mxu0 %v4762
        %v4846 = vpop.f32.mrf.mxu0
        %v4847 = vadd.f32 %v4705, %v4846
        %v4848 = vpop.f32.mrf.mxu0
        %v4849 = vadd.f32 %v4705, %v4848
        %4850 = vmatmul.bf16.gmra.mxu0 %v4765
        %v4851 = vpop.f32.mrf.mxu0
        %v4852 = vadd.f32 %v4705, %v4851
        %v4853 = vpop.f32.mrf.mxu0
        %v4854 = vadd.f32 %v4705, %v4853
        %4855 = vdwg.mxu0
        %v4856 = vld [vmem:[%s446] sm:$0xff]
        %v4857 = vld [vmem:[%s446 + $0x8] sm:$0xff]
        %v4858 = vld [vmem:[%s446 + $0x10] sm:$0xff]
        %v4859 = vld [vmem:[%s446 + $0x18] sm:$0xff]
        %v4860 = vld [vmem:[%s446 + $0x20] sm:$0xff]
        %v4861 = vld [vmem:[%s446 + $0x28] sm:$0xff]
        %v4862 = vld [vmem:[%s446 + $0x30] sm:$0xff]
        %v4863 = vld [vmem:[%s446 + $0x38] sm:$0xff]
        %v4864 = vld [vmem:[%s446 + $0x40] sm:$0xff]
        %v4865 = vld [vmem:[%s446 + $0x48] sm:$0xff]
        %v4866 = vld [vmem:[%s446 + $0x50] sm:$0xff]
        %v4867 = vld [vmem:[%s446 + $0x58] sm:$0xff]
        %v4868 = vld [vmem:[%s446 + $0x60] sm:$0xff]
        %v4869 = vld [vmem:[%s446 + $0x68] sm:$0xff]
        %v4870 = vld [vmem:[%s446 + $0x70] sm:$0xff]
        %v4871 = vld [vmem:[%s446 + $0x78] sm:$0xff]
        %v4872 = vld [vmem:[%s446 + $0x80] sm:$0xff]
        %v4873 = vld [vmem:[%s446 + $0x88] sm:$0xff]
        %v4874 = vld [vmem:[%s446 + $0x90] sm:$0xff]
        %v4875 = vld [vmem:[%s446 + $0x98] sm:$0xff]
        %v4876 = vld [vmem:[%s446 + $0xa0] sm:$0xff]
        %v4877 = vld [vmem:[%s446 + $0xa8] sm:$0xff]
        %v4878 = vld [vmem:[%s446 + $0xb0] sm:$0xff]
        %v4879 = vld [vmem:[%s446 + $0xb8] sm:$0xff]
        %v4880 = vld [vmem:[%s446 + $0xc0] sm:$0xff]
        %v4881 = vld [vmem:[%s446 + $0xc8] sm:$0xff]
        %v4882 = vld [vmem:[%s446 + $0xd0] sm:$0xff]
        %v4883 = vld [vmem:[%s446 + $0xd8] sm:$0xff]
        %v4884 = vld [vmem:[%s446 + $0xe0] sm:$0xff]
        %v4885 = vld [vmem:[%s446 + $0xe8] sm:$0xff]
        %v4886 = vld [vmem:[%s446 + $0xf0] sm:$0xff]
        %v4887 = vld [vmem:[%s446 + $0xf8] sm:$0xff]
        %v4888 = vadd.f32 %v4777, %v4856
        %v4889 = vadd.f32 %v4779, %v4857
        %v4890 = vadd.f32 %v4782, %v4858
        %v4891 = vadd.f32 %v4784, %v4859
        %v4892 = vadd.f32 %v4787, %v4860
        %v4893 = vadd.f32 %v4789, %v4861
        %v4894 = vadd.f32 %v4792, %v4862
        %v4895 = vadd.f32 %v4794, %v4863
        %v4896 = vadd.f32 %v4797, %v4864
        %v4897 = vadd.f32 %v4799, %v4865
        %v4898 = vadd.f32 %v4802, %v4866
        %v4899 = vadd.f32 %v4804, %v4867
        %v4900 = vadd.f32 %v4807, %v4868
        %v4901 = vadd.f32 %v4809, %v4869
        %v4902 = vadd.f32 %v4812, %v4870
        %v4903 = vadd.f32 %v4814, %v4871
        %v4904 = vadd.f32 %v4817, %v4872
        %v4905 = vadd.f32 %v4819, %v4873
        %v4906 = vadd.f32 %v4822, %v4874
        %v4907 = vadd.f32 %v4824, %v4875
        %v4908 = vadd.f32 %v4827, %v4876
        %v4909 = vadd.f32 %v4829, %v4877
        %v4910 = vadd.f32 %v4832, %v4878
        %v4911 = vadd.f32 %v4834, %v4879
        %v4912 = vadd.f32 %v4837, %v4880
        %v4913 = vadd.f32 %v4839, %v4881
        %v4914 = vadd.f32 %v4842, %v4882
        %v4915 = vadd.f32 %v4844, %v4883
        %v4916 = vadd.f32 %v4847, %v4884
        %v4917 = vadd.f32 %v4849, %v4885
        %v4918 = vadd.f32 %v4852, %v4886
        %v4919 = vadd.f32 %v4854, %v4887
        %v4920 = vmax.f32 %v4888, 0.0
        %v4921 = vmax.f32 %v4889, 0.0
        %v4922 = vmax.f32 %v4890, 0.0
        %v4923 = vmax.f32 %v4891, 0.0
        %v4924 = vmax.f32 %v4892, 0.0
        %v4925 = vmax.f32 %v4893, 0.0
        %v4926 = vmax.f32 %v4894, 0.0
        %v4927 = vmax.f32 %v4895, 0.0
        %v4928 = vmax.f32 %v4896, 0.0
        %v4929 = vmax.f32 %v4897, 0.0
        %v4930 = vmax.f32 %v4898, 0.0
        %v4931 = vmax.f32 %v4899, 0.0
        %v4932 = vmax.f32 %v4900, 0.0
        %v4933 = vmax.f32 %v4901, 0.0
        %v4934 = vmax.f32 %v4902, 0.0
        %v4935 = vmax.f32 %v4903, 0.0
        %v4936 = vmax.f32 %v4904, 0.0
        %v4937 = vmax.f32 %v4905, 0.0
        %v4938 = vmax.f32 %v4906, 0.0
        %v4939 = vmax.f32 %v4907, 0.0
        %v4940 = vmax.f32 %v4908, 0.0
        %v4941 = vmax.f32 %v4909, 0.0
        %v4942 = vmax.f32 %v4910, 0.0
        %v4943 = vmax.f32 %v4911, 0.0
        %v4944 = vmax.f32 %v4912, 0.0
        %v4945 = vmax.f32 %v4913, 0.0
        %v4946 = vmax.f32 %v4914, 0.0
        %v4947 = vmax.f32 %v4915, 0.0
        %v4948 = vmax.f32 %v4916, 0.0
        %v4949 = vmax.f32 %v4917, 0.0
        %v4950 = vmax.f32 %v4918, 0.0
        %v4951 = vmax.f32 %v4919, 0.0
        %4952 = vst [vmem:[%s329] sm:$0xff] %v4920
        %4953 = vst [vmem:[%s329 + $0x8] sm:$0xff] %v4921
        %4954 = vst [vmem:[%s329 + $0x10] sm:$0xff] %v4922
        %4955 = vst [vmem:[%s329 + $0x18] sm:$0xff] %v4923
        %4956 = vst [vmem:[%s329 + $0x20] sm:$0xff] %v4924
        %4957 = vst [vmem:[%s329 + $0x28] sm:$0xff] %v4925
        %4958 = vst [vmem:[%s329 + $0x30] sm:$0xff] %v4926
        %4959 = vst [vmem:[%s329 + $0x38] sm:$0xff] %v4927
        %4960 = vst [vmem:[%s329 + $0x40] sm:$0xff] %v4928
        %4961 = vst [vmem:[%s329 + $0x48] sm:$0xff] %v4929
        %4962 = vst [vmem:[%s329 + $0x50] sm:$0xff] %v4930
        %4963 = vst [vmem:[%s329 + $0x58] sm:$0xff] %v4931
        %4964 = vst [vmem:[%s329 + $0x60] sm:$0xff] %v4932
        %4965 = vst [vmem:[%s329 + $0x68] sm:$0xff] %v4933
        %4966 = vst [vmem:[%s329 + $0x70] sm:$0xff] %v4934
        %4967 = vst [vmem:[%s329 + $0x78] sm:$0xff] %v4935
        %4968 = vst [vmem:[%s329 + $0x80] sm:$0xff] %v4936
        %4969 = vst [vmem:[%s329 + $0x88] sm:$0xff] %v4937
        %4970 = vst [vmem:[%s329 + $0x90] sm:$0xff] %v4938
        %4971 = vst [vmem:[%s329 + $0x98] sm:$0xff] %v4939
        %4972 = vst [vmem:[%s329 + $0xa0] sm:$0xff] %v4940
        %4973 = vst [vmem:[%s329 + $0xa8] sm:$0xff] %v4941
        %4974 = vst [vmem:[%s329 + $0xb0] sm:$0xff] %v4942
        %4975 = vst [vmem:[%s329 + $0xb8] sm:$0xff] %v4943
        %4976 = vst [vmem:[%s329 + $0xc0] sm:$0xff] %v4944
        %4977 = vst [vmem:[%s329 + $0xc8] sm:$0xff] %v4945
        %4978 = vst [vmem:[%s329 + $0xd0] sm:$0xff] %v4946
        %4979 = vst [vmem:[%s329 + $0xd8] sm:$0xff] %v4947
        %4980 = vst [vmem:[%s329 + $0xe0] sm:$0xff] %v4948
        %4981 = vst [vmem:[%s329 + $0xe8] sm:$0xff] %v4949
        %4982 = vst [vmem:[%s329 + $0xf0] sm:$0xff] %v4950
        %4983 = vst [vmem:[%s329 + $0xf8] sm:$0xff] %v4951
        %s4984 = sand.u32 %s199, 1
        %s4985 = scalar_lea.sflag [#allocation6], %s4984
        %s4986 = sand.u32 %s199, 1
        %s4987 = smul.addr %s4986, 256
        %s4988 = scalar_lea.vmem [#allocation9], %s4987
        // Predicated region
        $region57: #{basic_block_forward.1} parent=47 // pred_check
          %p4989 = pneg %p209
        $region58: #{basic_block_forward.1} parent=47 // pred_check_branch
          %4991 = sbr.rel (%p4989) target = $region60
        $region59: #{basic_block_forward.1} parent=47 // pred_region
          %s4992 = smul.u32 32, %s30
          %4994 = vsyncadd %s4985, 0
          %s4995 = smul.addr %s29, 32
          %s4996 = sadd.s32 %s4992, %s4995
          %s4997 = smul.addr %s4996, 8
          %s4998 = scalar_lea.hbm %s7, %s4997
          %s4999 = sshll.u32 %s4988, 4
          %s5000 = int_to_ptr.vmem [resolvable:$true] %s4999
          %s5001 = sshll.u32 %s4998, 4
          %s5002 = int_to_ptr.hbm [resolvable:$true] %s5001
          %5007 = dma.vmem_to_hbm [thread:$0]  %s5000, 4096, %s5002, %s4985, 128, 128, 8
        $region60: #{basic_block_forward.1} parent=47 // pred_fallthru
          _
      $region48: #{basic_block_forward.1} parent=5 // pred_fallthru
        _
      %p5008 = scmp.le.s32.totalorder 2, %s20
      // Predicated region
      $region61: #{basic_block_forward.1} parent=5 // pred_check
        %p5009 = pneg %p5008
      $region62: #{basic_block_forward.1} parent=5 // pred_check_branch
        %5011 = sbr.rel (%p5009) target = $region64
      $region63: #{basic_block_forward.1} parent=5 // pred_region
        %s5012 = ssub.s32 %s20, 2
        // Predicated region
        $region65: #{basic_block_forward.1} parent=63 // pred_check
          %p5013 = pneg %p215
        $region66: #{basic_block_forward.1} parent=63 // pred_check_branch
          %5015 = sbr.rel (%p5013) target = $region68
        $region67: #{basic_block_forward.1} parent=63 // pred_region
          %s5016 = sand.u32 %s200, 1
          %s5017 = scalar_lea.sflag [#allocation6], %s5016
          %s5018 = sand.u32 %s200, 1
          %s5019 = smul.addr %s5018, 256
          %s5020 = scalar_lea.vmem [#allocation9], %s5019
          %5022 = dma.done %s5017, 4096
        $region68: #{basic_block_forward.1} parent=63 // pred_fallthru
          _
      $region64: #{basic_block_forward.1} parent=5 // pred_fallthru
        _
    $region6: #{basic_block_forward.1} parent=1 // loop_footer
      %s24 = sadd.s32 1, %s20
    $region7: #{basic_block_forward.1} parent=1 // loop_footer_branch
      %19 = sbr.rel target = $region3
    $region8: #{basic_block_forward.1} parent=1 // loop_exit
      _
    %5023 = vsyncpa [#allocation5], 1
    %s5024 = scalar_lea.sflag [#allocation5], 1
    %5025 = vsyncpa %s5024, 1
    %5026 = vsyncpa [#allocation8], 1
    %5027 = vsyncpa [#allocation6], 1
    %s5028 = scalar_lea.sflag [#allocation6], 1
    %5029 = vsyncpa %s5028, 1

</llo_original>
